<compile_context>
chip_gen: v7x
topology: tpu7x:2x2x1
jax: 0.10.0
libtpu: 0.0.40
codegen_flags: <defaults>
</compile_context>

<pallas_src>
import jax
import jax.numpy as jnp
from jax.experimental import pallas as pl
from jax.experimental.pallas import tpu as pltpu


def _softmax_last(x):
    """Numerically stable softmax over the last axis; EUP reciprocal."""
    m = jnp.max(x, axis=-1, keepdims=True)
    p = jnp.exp(x - m)
    s = jnp.sum(p, axis=-1, keepdims=True)
    return p * pl.reciprocal(s, approx=True)


def _mlp(x, w1, b1, w2, b2):
    """Linear -> ReLU -> (Dropout p=0) -> Linear -> ReLU (2-D rows x H)."""
    h1 = jnp.maximum(
        jnp.dot(x, w1, preferred_element_type=jnp.float32) + b1, 0.0)
    return jnp.maximum(
        jnp.dot(h1, w2, preferred_element_type=jnp.float32) + b2, 0.0)


def _mlp_split(xa, xb, w1a, w1b, b1, w2, b2):
    """MLP whose first layer takes concat([xa, xb], -1) @ [[w1a],[w1b]] — the
    lane-axis concat is replaced by two HxH matmuls summed together."""
    h1 = jnp.maximum(
        jnp.dot(xa, w1a, preferred_element_type=jnp.float32)
        + jnp.dot(xb, w1b, preferred_element_type=jnp.float32) + b1, 0.0)
    return jnp.maximum(
        jnp.dot(h1, w2, preferred_element_type=jnp.float32) + b2, 0.0)


def self_attention_kernel(a_ref, b_ref, w_ref, bias_ref, o_ref):
    bt, l_a, H = a_ref.shape
    _, l_b, _ = b_ref.shape

    # Hoisted weight / bias loads (each operand is a single stacked array).
    wf1, wf2 = w_ref[0], w_ref[1]
    wg1a, wg1b, wg2 = w_ref[2], w_ref[3], w_ref[4]
    wh1a, wh1b, wh2 = w_ref[5], w_ref[6], w_ref[7]
    biases = bias_ref[...]
    bf1, bf2 = biases[0:1], biases[1:2]
    bg1, bg2 = biases[2:3], biases[3:4]
    bh1, bh2 = biases[4:5], biases[5:6]

    a = a_ref[...]                                   # (bt, l_a, H)
    b = b_ref[...]                                   # (bt, l_b, H)

    # --- F MLP, batched over the flattened (bt*L, H) slab ---
    a2f = _mlp(a.reshape(bt * l_a, H), wf1, bf1, wf2, bf2)   # (bt*l_a, H)
    b2f = _mlp(b.reshape(bt * l_b, H), wf1, bf1, wf2, bf2)   # (bt*l_b, H)
    a2 = a2f.reshape(bt, l_a, H)
    b2 = b2f.reshape(bt, l_b, H)

    # --- attention scores (batched matmuls, no materialized transpose) ---
    e_ab = jnp.einsum("bik,bjk->bij", a2, b2,
                      preferred_element_type=jnp.float32)    # (bt, l_a, l_b)
    e_ba = jnp.einsum("bjk,bik->bji", b2, a2,
                      preferred_element_type=jnp.float32)    # (bt, l_b, l_a)

    beta = jnp.einsum("bij,bjk->bik", _softmax_last(e_ab), b2,
                      preferred_element_type=jnp.float32)    # (bt, l_a, H)
    alpha = jnp.einsum("bji,bik->bjk", _softmax_last(e_ba), a2,
                       preferred_element_type=jnp.float32)   # (bt, l_b, H)

    # --- G MLP on [x, aligned] via split weights, then sum over sequence ---
    v1f = _mlp_split(a2f, beta.reshape(bt * l_a, H),
                     wg1a, wg1b, bg1, wg2, bg2)              # (bt*l_a, H)
    v2f = _mlp_split(b2f, alpha.reshape(bt * l_b, H),
                     wg1a, wg1b, bg1, wg2, bg2)              # (bt*l_b, H)
    v1 = jnp.sum(v1f.reshape(bt, l_a, H), axis=1)            # (bt, H)
    v2 = jnp.sum(v2f.reshape(bt, l_b, H), axis=1)            # (bt, H)

    # --- final H MLP on [v1, v2] via split weights ---
    h = _mlp_split(v1, v2, wh1a, wh1b, bh1, wh2, bh2)        # (bt, H)
    o_ref[...] = h.astype(o_ref.dtype)


def self_attention_forward(a, b, params, block_b=8):
    B, l_a, H = a.shape
    _, l_b, _ = b.shape

    (wf1, bf1, wf2, bf2,
     wg1, bg1, wg2, bg2,
     wh1, bh1, wh2, bh2) = params

    # Split the 2H-wide first-layer weights so the kernel never concatenates
    # along the lane axis, and stack everything into two operands.
    wg1a, wg1b = wg1[:H], wg1[H:]
    wh1a, wh1b = wh1[:H], wh1[H:]
    w_stack = jnp.stack([wf1, wf2, wg1a, wg1b, wg2, wh1a, wh1b, wh2])  # (8,H,H)
    b_stack = jnp.concatenate(
        [bf1, bf2, bg1, bg2, bh1, bh2,
         jnp.zeros((2, H), jnp.float32)], axis=0)                      # (8,H)

    # Batch-tile: BT batch elements per grid step (sublane-dense output).
    bt = block_b
    Bp = pl.cdiv(B, bt) * bt
    if Bp != B:
        pad = Bp - B
        a = jnp.pad(a, ((0, pad), (0, 0), (0, 0)))
        b = jnp.pad(b, ((0, pad), (0, 0), (0, 0)))

    in_specs = [
        pl.BlockSpec((bt, l_a, H), lambda i: (i, 0, 0)),
        pl.BlockSpec((bt, l_b, H), lambda i: (i, 0, 0)),
        pl.BlockSpec((8, H, H), lambda i: (0, 0, 0)),   # weights (invariant)
        pl.BlockSpec((8, H), lambda i: (0, 0)),          # biases  (invariant)
    ]

    # Advisory cost estimate for XLA's scheduler.
    flops = Bp * (10 * (l_a + l_b) * H * H + 8 * l_a * l_b * H + 6 * H * H)
    transcendentals = Bp * 2 * l_a * l_b
    bytes_accessed = 4 * (Bp * (l_a + l_b) * H + 8 * H * H + 8 * H + Bp * H)

    out = pl.pallas_call(
        self_attention_kernel,
        out_shape=jax.ShapeDtypeStruct((Bp, H), jnp.float32),
        grid_spec=pltpu.PrefetchScalarGridSpec(
            num_scalar_prefetch=0,
            grid=(Bp // bt,),
            in_specs=in_specs,
            out_specs=pl.BlockSpec((bt, H), lambda i: (i, 0)),
        ),
        compiler_params=pltpu.CompilerParams(
            dimension_semantics=("parallel",),
            vmem_limit_bytes=32 * 1024 * 1024),
        cost_estimate=pl.CostEstimate(
            flops=flops,
            transcendentals=transcendentals,
            bytes_accessed=bytes_accessed),
    )(a, b, w_stack, b_stack)

    return out[:B]


def reference_forward(a, b, params):
    """Pure-JAX reference mirroring the PyTorch forward exactly."""
    (wf1, bf1, wf2, bf2,
     wg1, bg1, wg2, bg2,
     wh1, bh1, wh2, bh2) = params

    def mlp(x, w1, b1, w2, b2):
        h1 = jnp.maximum(x @ w1 + b1, 0.0)
        return jnp.maximum(h1 @ w2 + b2, 0.0)

    a2 = mlp(a, wf1, bf1, wf2, bf2)
    b2 = mlp(b, wf1, bf1, wf2, bf2)
    e = jnp.einsum("bik,bjk->bij", a2, b2)
    beta = jnp.einsum("bij,bjk->bik", jax.nn.softmax(e, axis=2), b2)
    alpha = jnp.einsum("bij,bjk->bik",
                       jax.nn.softmax(jnp.swapaxes(e, 1, 2), axis=2), a2)
    v1 = mlp(jnp.concatenate([a2, beta], axis=-1), wg1, bg1, wg2, bg2)
    v2 = mlp(jnp.concatenate([b2, alpha], axis=-1), wg1, bg1, wg2, bg2)
    v1 = jnp.sum(v1, axis=1)
    v2 = jnp.sum(v2, axis=1)
    return mlp(jnp.concatenate([v1, v2], axis=-1), wh1, bh1, wh2, bh2)


def init_params(key, hidden_dim):
    H = hidden_dim
    ks = jax.random.split(key, 6)
    scale = 0.1
    # weights stored in (in_features, out_features) orientation (y = x @ W + b)
    wf1 = scale * jax.random.normal(ks[0], (H, H), jnp.float32)
    wf2 = scale * jax.random.normal(ks[1], (H, H), jnp.float32)
    wg1 = scale * jax.random.normal(ks[2], (2 * H, H), jnp.float32)
    wg2 = scale * jax.random.normal(ks[3], (H, H), jnp.float32)
    wh1 = scale * jax.random.normal(ks[4], (2 * H, H), jnp.float32)
    wh2 = scale * jax.random.normal(ks[5], (H, H), jnp.float32)
    bf1 = jnp.full((1, H), 0.01, jnp.float32)
    bf2 = jnp.full((1, H), 0.02, jnp.float32)
    bg1 = jnp.full((1, H), 0.03, jnp.float32)
    bg2 = jnp.full((1, H), 0.04, jnp.float32)
    bh1 = jnp.full((1, H), 0.05, jnp.float32)
    bh2 = jnp.full((1, H), 0.06, jnp.float32)
    return (wf1, bf1, wf2, bf2, wg1, bg1, wg2, bg2, wh1, bh1, wh2, bh2)


if __name__ == "__main__":
    B, L_A, L_B, HIDDEN = 2, 8, 8, 32

    key = jax.random.PRNGKey(0)
    k_a, k_b, k_p = jax.random.split(key, 3)
    a = jax.random.normal(k_a, (B, L_A, HIDDEN), jnp.float32)
    b = jax.random.normal(k_b, (B, L_B, HIDDEN), jnp.float32)
    params = init_params(k_p, HIDDEN)

    out = jax.block_until_ready(jax.jit(self_attention_forward)(a, b, params))
    ref = jax.block_until_ready(reference_forward(a, b, params))

    assert out.shape == (B, HIDDEN)
    # Tolerance accounts for the EUP approximate reciprocal used only in the
    # softmax denominator (everything else is exact f32 with f32 accumulation).
    assert jnp.allclose(out, ref, atol=5e-3, rtol=5e-3), "mismatch vs reference"
    print("KERNEL_OK")
</pallas_src>

<mosaic_0001>
module attributes {stable_mosaic.version = 11 : i64} {
  func.func @self_attention_kernel(%arg0: i32, %arg1: memref<8x8x32xf32, #tpu.memory_space<vmem>>, %arg2: memref<8x8x32xf32, #tpu.memory_space<vmem>>, %arg3: memref<8x32x32xf32, #tpu.memory_space<vmem>>, %arg4: memref<8x32xf32, #tpu.memory_space<vmem>>, %arg5: memref<8x32xf32, #tpu.memory_space<vmem>>) attributes {dimension_semantics = [#tpu.dimension_semantics<parallel>], iteration_bounds = array<i64: 1>, scalar_prefetch = 0 : i64, scratch_operands = 0 : i64, tpu.core_type = #tpu.core_type<tc>, window_params = [{transform_indices = @transform_0, window_bounds = array<i64: 8, 8, 32>}, {transform_indices = @transform_1, window_bounds = array<i64: 8, 8, 32>}, {pipeline_mode = #tpu.pipeline_mode<synchronous>, transform_indices = @transform_2, window_bounds = array<i64: 8, 32, 32>}, {pipeline_mode = #tpu.pipeline_mode<synchronous>, transform_indices = @transform_3, window_bounds = array<i64: 8, 32>}, {transform_indices = @transform_4, window_bounds = array<i64: 8, 32>}]} {
    %c0 = arith.constant 0 : index
    %c0_0 = arith.constant 0 : index
    %c0_1 = arith.constant 0 : index
    %0 = vector.load %arg3[%c0, %c0_0, %c0_1] : memref<8x32x32xf32, #tpu.memory_space<vmem>>, vector<1x32x32xf32>
    %1 = vector.shape_cast %0 : vector<1x32x32xf32> to vector<32x32xf32>
    %c1 = arith.constant 1 : index
    %c0_2 = arith.constant 0 : index
    %c0_3 = arith.constant 0 : index
    %2 = vector.load %arg3[%c1, %c0_2, %c0_3] : memref<8x32x32xf32, #tpu.memory_space<vmem>>, vector<1x32x32xf32>
    %3 = vector.shape_cast %2 : vector<1x32x32xf32> to vector<32x32xf32>
    %c2 = arith.constant 2 : index
    %c0_4 = arith.constant 0 : index
    %c0_5 = arith.constant 0 : index
    %4 = vector.load %arg3[%c2, %c0_4, %c0_5] : memref<8x32x32xf32, #tpu.memory_space<vmem>>, vector<1x32x32xf32>
    %5 = vector.shape_cast %4 : vector<1x32x32xf32> to vector<32x32xf32>
    %c3 = arith.constant 3 : index
    %c0_6 = arith.constant 0 : index
    %c0_7 = arith.constant 0 : index
    %6 = vector.load %arg3[%c3, %c0_6, %c0_7] : memref<8x32x32xf32, #tpu.memory_space<vmem>>, vector<1x32x32xf32>
    %7 = vector.shape_cast %6 : vector<1x32x32xf32> to vector<32x32xf32>
    %c4 = arith.constant 4 : index
    %c0_8 = arith.constant 0 : index
    %c0_9 = arith.constant 0 : index
    %8 = vector.load %arg3[%c4, %c0_8, %c0_9] : memref<8x32x32xf32, #tpu.memory_space<vmem>>, vector<1x32x32xf32>
    %9 = vector.shape_cast %8 : vector<1x32x32xf32> to vector<32x32xf32>
    %c5 = arith.constant 5 : index
    %c0_10 = arith.constant 0 : index
    %c0_11 = arith.constant 0 : index
    %10 = vector.load %arg3[%c5, %c0_10, %c0_11] : memref<8x32x32xf32, #tpu.memory_space<vmem>>, vector<1x32x32xf32>
    %11 = vector.shape_cast %10 : vector<1x32x32xf32> to vector<32x32xf32>
    %c6 = arith.constant 6 : index
    %c0_12 = arith.constant 0 : index
    %c0_13 = arith.constant 0 : index
    %12 = vector.load %arg3[%c6, %c0_12, %c0_13] : memref<8x32x32xf32, #tpu.memory_space<vmem>>, vector<1x32x32xf32>
    %13 = vector.shape_cast %12 : vector<1x32x32xf32> to vector<32x32xf32>
    %c7 = arith.constant 7 : index
    %c0_14 = arith.constant 0 : index
    %c0_15 = arith.constant 0 : index
    %14 = vector.load %arg3[%c7, %c0_14, %c0_15] : memref<8x32x32xf32, #tpu.memory_space<vmem>>, vector<1x32x32xf32>
    %15 = vector.shape_cast %14 : vector<1x32x32xf32> to vector<32x32xf32>
    %c0_16 = arith.constant 0 : index
    %c0_17 = arith.constant 0 : index
    %16 = vector.load %arg4[%c0_16, %c0_17] : memref<8x32xf32, #tpu.memory_space<vmem>>, vector<8x32xf32>
    %17 = vector.extract_strided_slice %16 {offsets = [0, 0], sizes = [1, 32], strides = [1, 1]} : vector<8x32xf32> to vector<1x32xf32>
    %18 = vector.extract_strided_slice %16 {offsets = [1, 0], sizes = [1, 32], strides = [1, 1]} : vector<8x32xf32> to vector<1x32xf32>
    %19 = vector.extract_strided_slice %16 {offsets = [2, 0], sizes = [1, 32], strides = [1, 1]} : vector<8x32xf32> to vector<1x32xf32>
    %20 = vector.extract_strided_slice %16 {offsets = [3, 0], sizes = [1, 32], strides = [1, 1]} : vector<8x32xf32> to vector<1x32xf32>
    %21 = vector.extract_strided_slice %16 {offsets = [4, 0], sizes = [1, 32], strides = [1, 1]} : vector<8x32xf32> to vector<1x32xf32>
    %22 = vector.extract_strided_slice %16 {offsets = [5, 0], sizes = [1, 32], strides = [1, 1]} : vector<8x32xf32> to vector<1x32xf32>
    %c0_18 = arith.constant 0 : index
    %c0_19 = arith.constant 0 : index
    %c0_20 = arith.constant 0 : index
    %23 = vector.load %arg1[%c0_18, %c0_19, %c0_20] : memref<8x8x32xf32, #tpu.memory_space<vmem>>, vector<8x8x32xf32>
    %c0_21 = arith.constant 0 : index
    %c0_22 = arith.constant 0 : index
    %c0_23 = arith.constant 0 : index
    %24 = vector.load %arg2[%c0_21, %c0_22, %c0_23] : memref<8x8x32xf32, #tpu.memory_space<vmem>>, vector<8x8x32xf32>
    %25 = vector.shape_cast %23 : vector<8x8x32xf32> to vector<64x32xf32>
    %cst = arith.constant dense<0.000000e+00> : vector<64x32xf32>
    %26 = tpu.matmul %25, %1, %cst {dimension_numbers = #tpu.dot_dimension_numbers<[1], [0], [0], [1], [0, 0, 1, 1], [], []>} : vector<64x32xf32>, vector<32x32xf32>, vector<64x32xf32> -> vector<64x32xf32>
    %27 = vector.broadcast %17 : vector<1x32xf32> to vector<64x32xf32>
    %28 = arith.addf %26, %27 : vector<64x32xf32>
    %cst_24 = arith.constant 0.000000e+00 : f32
    %29 = vector.broadcast %cst_24 : f32 to vector<64x32xf32>
    %30 = arith.maximumf %28, %29 : vector<64x32xf32>
    %cst_25 = arith.constant dense<0.000000e+00> : vector<64x32xf32>
    %31 = tpu.matmul %30, %3, %cst_25 {dimension_numbers = #tpu.dot_dimension_numbers<[1], [0], [0], [1], [0, 0, 1, 1], [], []>} : vector<64x32xf32>, vector<32x32xf32>, vector<64x32xf32> -> vector<64x32xf32>
    %32 = vector.broadcast %18 : vector<1x32xf32> to vector<64x32xf32>
    %33 = arith.addf %31, %32 : vector<64x32xf32>
    %cst_26 = arith.constant 0.000000e+00 : f32
    %34 = vector.broadcast %cst_26 : f32 to vector<64x32xf32>
    %35 = arith.maximumf %33, %34 : vector<64x32xf32>
    %36 = vector.shape_cast %24 : vector<8x8x32xf32> to vector<64x32xf32>
    %cst_27 = arith.constant dense<0.000000e+00> : vector<64x32xf32>
    %37 = tpu.matmul %36, %1, %cst_27 {dimension_numbers = #tpu.dot_dimension_numbers<[1], [0], [0], [1], [0, 0, 1, 1], [], []>} : vector<64x32xf32>, vector<32x32xf32>, vector<64x32xf32> -> vector<64x32xf32>
    %38 = vector.broadcast %17 : vector<1x32xf32> to vector<64x32xf32>
    %39 = arith.addf %37, %38 : vector<64x32xf32>
    %cst_28 = arith.constant 0.000000e+00 : f32
    %40 = vector.broadcast %cst_28 : f32 to vector<64x32xf32>
    %41 = arith.maximumf %39, %40 : vector<64x32xf32>
    %cst_29 = arith.constant dense<0.000000e+00> : vector<64x32xf32>
    %42 = tpu.matmul %41, %3, %cst_29 {dimension_numbers = #tpu.dot_dimension_numbers<[1], [0], [0], [1], [0, 0, 1, 1], [], []>} : vector<64x32xf32>, vector<32x32xf32>, vector<64x32xf32> -> vector<64x32xf32>
    %43 = vector.broadcast %18 : vector<1x32xf32> to vector<64x32xf32>
    %44 = arith.addf %42, %43 : vector<64x32xf32>
    %cst_30 = arith.constant 0.000000e+00 : f32
    %45 = vector.broadcast %cst_30 : f32 to vector<64x32xf32>
    %46 = arith.maximumf %44, %45 : vector<64x32xf32>
    %47 = vector.shape_cast %35 : vector<64x32xf32> to vector<8x8x32xf32>
    %48 = vector.shape_cast %46 : vector<64x32xf32> to vector<8x8x32xf32>
    "tpu.trace_start"() <{level = 10 : i32, message = "bik,bjk->bij"}> : () -> ()
    %cst_31 = arith.constant dense<0.000000e+00> : vector<8x8x8xf32>
    %49 = tpu.matmul %47, %48, %cst_31 {dimension_numbers = #tpu.dot_dimension_numbers<[2], [2], [1], [1], [0, 0, 0, 1, 1, 1], [0], [0]>} : vector<8x8x32xf32>, vector<8x8x32xf32>, vector<8x8x8xf32> -> vector<8x8x8xf32>
    "tpu.trace_stop"() : () -> ()
    "tpu.trace_start"() <{level = 10 : i32, message = "bjk,bik->bji"}> : () -> ()
    %cst_32 = arith.constant dense<0.000000e+00> : vector<8x8x8xf32>
    %50 = tpu.matmul %48, %47, %cst_32 {dimension_numbers = #tpu.dot_dimension_numbers<[2], [2], [1], [1], [0, 0, 0, 1, 1, 1], [0], [0]>} : vector<8x8x32xf32>, vector<8x8x32xf32>, vector<8x8x8xf32> -> vector<8x8x8xf32>
    "tpu.trace_stop"() : () -> ()
    %cst_33 = arith.constant dense<0xFF800000> : vector<8x8xf32>
    %51 = vector.multi_reduction <maximumf>, %49, %cst_33 [2] : vector<8x8x8xf32> to vector<8x8xf32>
    %52 = vector.shape_cast %51 : vector<8x8xf32> to vector<8x8x1xf32>
    %53 = vector.broadcast %52 : vector<8x8x1xf32> to vector<8x8x8xf32>
    %54 = arith.subf %49, %53 : vector<8x8x8xf32>
    %55 = math.exp %54 : vector<8x8x8xf32>
    %cst_34 = arith.constant dense<0.000000e+00> : vector<8x8xf32>
    %56 = vector.multi_reduction <add>, %55, %cst_34 [2] : vector<8x8x8xf32> to vector<8x8xf32>
    %57 = vector.shape_cast %56 : vector<8x8xf32> to vector<8x8x1xf32>
    %58 = tpu.reciprocal %57 {approx = true} : vector<8x8x1xf32> -> vector<8x8x1xf32>
    %59 = vector.broadcast %58 : vector<8x8x1xf32> to vector<8x8x8xf32>
    %60 = arith.mulf %55, %59 : vector<8x8x8xf32>
    "tpu.trace_start"() <{level = 10 : i32, message = "bij,bjk->bik"}> : () -> ()
    %cst_35 = arith.constant dense<0.000000e+00> : vector<8x8x32xf32>
    %61 = tpu.matmul %60, %48, %cst_35 {dimension_numbers = #tpu.dot_dimension_numbers<[2], [1], [1], [2], [0, 0, 0, 1, 1, 2], [0], [0]>} : vector<8x8x8xf32>, vector<8x8x32xf32>, vector<8x8x32xf32> -> vector<8x8x32xf32>
    "tpu.trace_stop"() : () -> ()
    %cst_36 = arith.constant dense<0xFF800000> : vector<8x8xf32>
    %62 = vector.multi_reduction <maximumf>, %50, %cst_36 [2] : vector<8x8x8xf32> to vector<8x8xf32>
    %63 = vector.shape_cast %62 : vector<8x8xf32> to vector<8x8x1xf32>
    %64 = vector.broadcast %63 : vector<8x8x1xf32> to vector<8x8x8xf32>
    %65 = arith.subf %50, %64 : vector<8x8x8xf32>
    %66 = math.exp %65 : vector<8x8x8xf32>
    %cst_37 = arith.constant dense<0.000000e+00> : vector<8x8xf32>
    %67 = vector.multi_reduction <add>, %66, %cst_37 [2] : vector<8x8x8xf32> to vector<8x8xf32>
    %68 = vector.shape_cast %67 : vector<8x8xf32> to vector<8x8x1xf32>
    %69 = tpu.reciprocal %68 {approx = true} : vector<8x8x1xf32> -> vector<8x8x1xf32>
    %70 = vector.broadcast %69 : vector<8x8x1xf32> to vector<8x8x8xf32>
    %71 = arith.mulf %66, %70 : vector<8x8x8xf32>
    "tpu.trace_start"() <{level = 10 : i32, message = "bji,bik->bjk"}> : () -> ()
    %cst_38 = arith.constant dense<0.000000e+00> : vector<8x8x32xf32>
    %72 = tpu.matmul %71, %47, %cst_38 {dimension_numbers = #tpu.dot_dimension_numbers<[2], [1], [1], [2], [0, 0, 0, 1, 1, 2], [0], [0]>} : vector<8x8x8xf32>, vector<8x8x32xf32>, vector<8x8x32xf32> -> vector<8x8x32xf32>
    "tpu.trace_stop"() : () -> ()
    %73 = vector.shape_cast %61 : vector<8x8x32xf32> to vector<64x32xf32>
    %cst_39 = arith.constant dense<0.000000e+00> : vector<64x32xf32>
    %74 = tpu.matmul %35, %5, %cst_39 {dimension_numbers = #tpu.dot_dimension_numbers<[1], [0], [0], [1], [0, 0, 1, 1], [], []>} : vector<64x32xf32>, vector<32x32xf32>, vector<64x32xf32> -> vector<64x32xf32>
    %cst_40 = arith.constant dense<0.000000e+00> : vector<64x32xf32>
    %75 = tpu.matmul %73, %7, %cst_40 {dimension_numbers = #tpu.dot_dimension_numbers<[1], [0], [0], [1], [0, 0, 1, 1], [], []>} : vector<64x32xf32>, vector<32x32xf32>, vector<64x32xf32> -> vector<64x32xf32>
    %76 = arith.addf %74, %75 : vector<64x32xf32>
    %77 = vector.broadcast %19 : vector<1x32xf32> to vector<64x32xf32>
    %78 = arith.addf %76, %77 : vector<64x32xf32>
    %cst_41 = arith.constant 0.000000e+00 : f32
    %79 = vector.broadcast %cst_41 : f32 to vector<64x32xf32>
    %80 = arith.maximumf %78, %79 : vector<64x32xf32>
    %cst_42 = arith.constant dense<0.000000e+00> : vector<64x32xf32>
    %81 = tpu.matmul %80, %9, %cst_42 {dimension_numbers = #tpu.dot_dimension_numbers<[1], [0], [0], [1], [0, 0, 1, 1], [], []>} : vector<64x32xf32>, vector<32x32xf32>, vector<64x32xf32> -> vector<64x32xf32>
    %82 = vector.broadcast %20 : vector<1x32xf32> to vector<64x32xf32>
    %83 = arith.addf %81, %82 : vector<64x32xf32>
    %cst_43 = arith.constant 0.000000e+00 : f32
    %84 = vector.broadcast %cst_43 : f32 to vector<64x32xf32>
    %85 = arith.maximumf %83, %84 : vector<64x32xf32>
    %86 = vector.shape_cast %72 : vector<8x8x32xf32> to vector<64x32xf32>
    %cst_44 = arith.constant dense<0.000000e+00> : vector<64x32xf32>
    %87 = tpu.matmul %46, %5, %cst_44 {dimension_numbers = #tpu.dot_dimension_numbers<[1], [0], [0], [1], [0, 0, 1, 1], [], []>} : vector<64x32xf32>, vector<32x32xf32>, vector<64x32xf32> -> vector<64x32xf32>
    %cst_45 = arith.constant dense<0.000000e+00> : vector<64x32xf32>
    %88 = tpu.matmul %86, %7, %cst_45 {dimension_numbers = #tpu.dot_dimension_numbers<[1], [0], [0], [1], [0, 0, 1, 1], [], []>} : vector<64x32xf32>, vector<32x32xf32>, vector<64x32xf32> -> vector<64x32xf32>
    %89 = arith.addf %87, %88 : vector<64x32xf32>
    %90 = vector.broadcast %19 : vector<1x32xf32> to vector<64x32xf32>
    %91 = arith.addf %89, %90 : vector<64x32xf32>
    %cst_46 = arith.constant 0.000000e+00 : f32
    %92 = vector.broadcast %cst_46 : f32 to vector<64x32xf32>
    %93 = arith.maximumf %91, %92 : vector<64x32xf32>
    %cst_47 = arith.constant dense<0.000000e+00> : vector<64x32xf32>
    %94 = tpu.matmul %93, %9, %cst_47 {dimension_numbers = #tpu.dot_dimension_numbers<[1], [0], [0], [1], [0, 0, 1, 1], [], []>} : vector<64x32xf32>, vector<32x32xf32>, vector<64x32xf32> -> vector<64x32xf32>
    %95 = vector.broadcast %20 : vector<1x32xf32> to vector<64x32xf32>
    %96 = arith.addf %94, %95 : vector<64x32xf32>
    %cst_48 = arith.constant 0.000000e+00 : f32
    %97 = vector.broadcast %cst_48 : f32 to vector<64x32xf32>
    %98 = arith.maximumf %96, %97 : vector<64x32xf32>
    %99 = vector.shape_cast %85 : vector<64x32xf32> to vector<8x8x32xf32>
    %cst_49 = arith.constant dense<0.000000e+00> : vector<8x32xf32>
    %100 = vector.multi_reduction <add>, %99, %cst_49 [1] : vector<8x8x32xf32> to vector<8x32xf32>
    %101 = vector.shape_cast %98 : vector<64x32xf32> to vector<8x8x32xf32>
    %cst_50 = arith.constant dense<0.000000e+00> : vector<8x32xf32>
    %102 = vector.multi_reduction <add>, %101, %cst_50 [1] : vector<8x8x32xf32> to vector<8x32xf32>
    %cst_51 = arith.constant dense<0.000000e+00> : vector<8x32xf32>
    %103 = tpu.matmul %100, %11, %cst_51 {dimension_numbers = #tpu.dot_dimension_numbers<[1], [0], [0], [1], [0, 0, 1, 1], [], []>} : vector<8x32xf32>, vector<32x32xf32>, vector<8x32xf32> -> vector<8x32xf32>
    %cst_52 = arith.constant dense<0.000000e+00> : vector<8x32xf32>
    %104 = tpu.matmul %102, %13, %cst_52 {dimension_numbers = #tpu.dot_dimension_numbers<[1], [0], [0], [1], [0, 0, 1, 1], [], []>} : vector<8x32xf32>, vector<32x32xf32>, vector<8x32xf32> -> vector<8x32xf32>
    %105 = arith.addf %103, %104 : vector<8x32xf32>
    %106 = vector.broadcast %21 : vector<1x32xf32> to vector<8x32xf32>
    %107 = arith.addf %105, %106 : vector<8x32xf32>
    %cst_53 = arith.constant 0.000000e+00 : f32
    %108 = vector.broadcast %cst_53 : f32 to vector<8x32xf32>
    %109 = arith.maximumf %107, %108 : vector<8x32xf32>
    %cst_54 = arith.constant dense<0.000000e+00> : vector<8x32xf32>
    %110 = tpu.matmul %109, %15, %cst_54 {dimension_numbers = #tpu.dot_dimension_numbers<[1], [0], [0], [1], [0, 0, 1, 1], [], []>} : vector<8x32xf32>, vector<32x32xf32>, vector<8x32xf32> -> vector<8x32xf32>
    %111 = vector.broadcast %22 : vector<1x32xf32> to vector<8x32xf32>
    %112 = arith.addf %110, %111 : vector<8x32xf32>
    %cst_55 = arith.constant 0.000000e+00 : f32
    %113 = vector.broadcast %cst_55 : f32 to vector<8x32xf32>
    %114 = arith.maximumf %112, %113 : vector<8x32xf32>
    %c0_56 = arith.constant 0 : index
    %c0_57 = arith.constant 0 : index
    %115 = vector.load %arg5[%c0_56, %c0_57] : memref<8x32xf32, #tpu.memory_space<vmem>>, vector<8x32xf32>
    tpu.vector_store %arg5[%c0_56, %c0_57], %114 {strides = array<i32>} : memref<8x32xf32, #tpu.memory_space<vmem>>, vector<8x32xf32>,
    return
  }
  func.func @transform_0(%arg0: i32) -> (i32, i32, i32) {
    %c0_i32 = arith.constant 0 : i32
    %c0_i32_0 = arith.constant 0 : i32
    %c0_i32_1 = arith.constant 0 : i32
    return %arg0, %c0_i32, %c0_i32_0 : i32, i32, i32
  }
  func.func @transform_1(%arg0: i32) -> (i32, i32, i32) {
    %c0_i32 = arith.constant 0 : i32
    %c0_i32_0 = arith.constant 0 : i32
    %c0_i32_1 = arith.constant 0 : i32
    return %arg0, %c0_i32, %c0_i32_0 : i32, i32, i32
  }
  func.func @transform_2(%arg0: i32) -> (i32, i32, i32) {
    %c0_i32 = arith.constant 0 : i32
    %c0_i32_0 = arith.constant 0 : i32
    %c0_i32_1 = arith.constant 0 : i32
    %c0_i32_2 = arith.constant 0 : i32
    return %c0_i32, %c0_i32_0, %c0_i32_1 : i32, i32, i32
  }
  func.func @transform_3(%arg0: i32) -> (i32, i32) {
    %c0_i32 = arith.constant 0 : i32
    %c0_i32_0 = arith.constant 0 : i32
    %c0_i32_1 = arith.constant 0 : i32
    return %c0_i32, %c0_i32_0 : i32, i32
  }
  func.func @transform_4(%arg0: i32) -> (i32, i32) {
    %c0_i32 = arith.constant 0 : i32
    %c0_i32_0 = arith.constant 0 : i32
    return %arg0, %c0_i32 : i32, i32
  }
}

</mosaic_0001>

<llo_original>
// kernel: self_attention_forward.1
$region0: #{self_attention_forward.1}
  #allocation0 [shape = 'u32[]', space=smem, size = 0x4, offset = 0x4, fixed_abs, tag = 'smem constant byte address 0x4 - core index']
  #allocation1 [shape = 'u32[144,128]{1,0:T(1,128)}', space=vmem, size = 0x12000, scoped, tag = 'internal scratch']
  %s0 = inlined_call_operand.vmem [shape: f32[8,8,32], index: 0, kind: input, shape index: {}]
  %s1 = inlined_call_operand.vmem [shape: f32[8,8,32], index: 1, kind: input, shape index: {}]
  %s2 = inlined_call_operand.vmem [shape: f32[8,32,32], index: 2, kind: input, shape index: {}]
  %s3 = inlined_call_operand.vmem [shape: f32[8,32], index: 3, kind: input, shape index: {}]
  %s4 = inlined_call_operand.vmem [shape: f32[8,32], index: 4, kind: output, shape index: {}]
  %s5 = sld [smem:[#allocation0]]
  $region26: #{self_attention_forward.1} parent=0
    _
  %s7 = ssub.s32 1, %s5
  %s8 = scalar_select 0, %s7, %s5
  // Predicated region
  $region2: #{self_attention_forward.1} parent=0 // pred_check
    _
  $region3: #{self_attention_forward.1} parent=0 // pred_check_branch
    %10 = sbr.rel (0) target = $region5
  $region4: #{self_attention_forward.1} parent=0 // pred_region
    _
  $region5: #{self_attention_forward.1} parent=0 // pred_fallthru
    _
  // Predicated region
  $region6: #{self_attention_forward.1} parent=0 // pred_check
    _
  $region7: #{self_attention_forward.1} parent=0 // pred_check_branch
    %12 = sbr.rel (0) target = $region9
  $region8: #{self_attention_forward.1} parent=0 // pred_region
    _
  $region9: #{self_attention_forward.1} parent=0 // pred_fallthru
    _
  // Predicated region
  $region10: #{self_attention_forward.1} parent=0 // pred_check
    _
  $region11: #{self_attention_forward.1} parent=0 // pred_check_branch
    %14 = sbr.rel (0) target = $region13
  $region12: #{self_attention_forward.1} parent=0 // pred_region
    _
  $region13: #{self_attention_forward.1} parent=0 // pred_fallthru
    _
  // Predicated region
  $region14: #{self_attention_forward.1} parent=0 // pred_check
    _
  $region15: #{self_attention_forward.1} parent=0 // pred_check_branch
    %16 = sbr.rel (0) target = $region17
  $region16: #{self_attention_forward.1} parent=0 // pred_region
    _
  $region17: #{self_attention_forward.1} parent=0 // pred_fallthru
    _
  %v17 = vld [vmem:[%s2] sm:$0xff]
  %v18 = vld [vmem:[%s2 + $0x8] sm:$0xff]
  %v19 = vld [vmem:[%s2 + $0x10] sm:$0xff]
  %v20 = vld [vmem:[%s2 + $0x18] sm:$0xff]
  %s21 = scalar_lea.vmem %s2, 32
  %v22 = vld [vmem:[%s21] sm:$0xff]
  %v23 = vld [vmem:[%s21 + $0x8] sm:$0xff]
  %v24 = vld [vmem:[%s21 + $0x10] sm:$0xff]
  %v25 = vld [vmem:[%s21 + $0x18] sm:$0xff]
  %s26 = scalar_lea.vmem %s2, 64
  %v27 = vld [vmem:[%s26] sm:$0xff]
  %v28 = vld [vmem:[%s26 + $0x8] sm:$0xff]
  %v29 = vld [vmem:[%s26 + $0x10] sm:$0xff]
  %v30 = vld [vmem:[%s26 + $0x18] sm:$0xff]
  %s31 = scalar_lea.vmem %s2, 96
  %v32 = vld [vmem:[%s31] sm:$0xff]
  %v33 = vld [vmem:[%s31 + $0x8] sm:$0xff]
  %v34 = vld [vmem:[%s31 + $0x10] sm:$0xff]
  %v35 = vld [vmem:[%s31 + $0x18] sm:$0xff]
  %s36 = scalar_lea.vmem %s2, 128
  %v37 = vld [vmem:[%s36] sm:$0xff]
  %v38 = vld [vmem:[%s36 + $0x8] sm:$0xff]
  %v39 = vld [vmem:[%s36 + $0x10] sm:$0xff]
  %v40 = vld [vmem:[%s36 + $0x18] sm:$0xff]
  %s41 = scalar_lea.vmem %s2, 160
  %v42 = vld [vmem:[%s41] sm:$0xff]
  %v43 = vld [vmem:[%s41 + $0x8] sm:$0xff]
  %v44 = vld [vmem:[%s41 + $0x10] sm:$0xff]
  %v45 = vld [vmem:[%s41 + $0x18] sm:$0xff]
  %s46 = scalar_lea.vmem %s2, 192
  %v47 = vld [vmem:[%s46] sm:$0xff]
  %v48 = vld [vmem:[%s46 + $0x8] sm:$0xff]
  %v49 = vld [vmem:[%s46 + $0x10] sm:$0xff]
  %v50 = vld [vmem:[%s46 + $0x18] sm:$0xff]
  %s51 = scalar_lea.vmem %s2, 224
  %v52 = vld [vmem:[%s51] sm:$0xff]
  %v53 = vld [vmem:[%s51 + $0x8] sm:$0xff]
  %v54 = vld [vmem:[%s51 + $0x10] sm:$0xff]
  %v55 = vld [vmem:[%s51 + $0x18] sm:$0xff]
  %v56 = vld [vmem:[%s3] sm:$0xff]
  %v57 = vld [vmem:[%s0] sm:$0xff]
  %v58 = vld [vmem:[%s0 + $0x8] sm:$0xff]
  %v59 = vld [vmem:[%s0 + $0x10] sm:$0xff]
  %v60 = vld [vmem:[%s0 + $0x18] sm:$0xff]
  %v61 = vld [vmem:[%s0 + $0x20] sm:$0xff]
  %v62 = vld [vmem:[%s0 + $0x28] sm:$0xff]
  %v63 = vld [vmem:[%s0 + $0x30] sm:$0xff]
  %v64 = vld [vmem:[%s0 + $0x38] sm:$0xff]
  %v65 = vld [vmem:[%s1] sm:$0xff]
  %v66 = vld [vmem:[%s1 + $0x8] sm:$0xff]
  %v67 = vld [vmem:[%s1 + $0x10] sm:$0xff]
  %v68 = vld [vmem:[%s1 + $0x18] sm:$0xff]
  %v69 = vld [vmem:[%s1 + $0x20] sm:$0xff]
  %v70 = vld [vmem:[%s1 + $0x28] sm:$0xff]
  %v71 = vld [vmem:[%s1 + $0x30] sm:$0xff]
  %v72 = vld [vmem:[%s1 + $0x38] sm:$0xff]
  %v73 = vlaneseq
  %v74 = vshrl.u32 %v73, 7
  %v75 = vsub.s32 0, %v74
  %v76 = vrot.slane %v56, %v75
  %vm77 = vcmask 261120
  %v79 = vsel %vm77, %v57, 0
  %v82 = vsel %vm77, %v58, 0
  %v85 = vsel %vm77, %v59, 0
  %v88 = vsel %vm77, %v60, 0
  %v91 = vsel %vm77, %v61, 0
  %v94 = vsel %vm77, %v62, 0
  %v97 = vsel %vm77, %v63, 0
  %v100 = vsel %vm77, %v64, 0
  %102 = vmatprep.subr.mxu0 0.0
  %103 = vmatpush1.msra.mxu0 %v17
  %104 = vmatprep.subr.mxu0 0.0
  %105 = vmatpush1.msra.mxu0 %v18
  %106 = vmatprep.subr.mxu0 0.0
  %107 = vmatpush1.msra.mxu0 %v19
  %108 = vmatprep.subr.mxu0 0.0
  %109 = vmatpush1.msra.mxu0 %v20
  %110 = vmatprep.subr.mxu0 0.0
  %111 = vmatpush1.msra.mxu0 0.0
  %112 = vmatprep.subr.mxu0 0.0
  %113 = vmatpush1.msra.mxu0 0.0
  %114 = vmatprep.subr.mxu0 0.0
  %115 = vmatpush1.msra.mxu0 0.0
  %116 = vmatprep.subr.mxu0 0.0
  %117 = vmatpush1.msra.mxu0 0.0
  %118 = vmatprep.subr.mxu0 0.0
  %119 = vmatpush1.msra.mxu0 0.0
  %120 = vmatprep.subr.mxu0 0.0
  %121 = vmatpush1.msra.mxu0 0.0
  %122 = vmatprep.subr.mxu0 0.0
  %123 = vmatpush1.msra.mxu0 0.0
  %124 = vmatprep.subr.mxu0 0.0
  %125 = vmatpush1.msra.mxu0 0.0
  %126 = vmatprep.subr.mxu0 0.0
  %127 = vmatpush1.msra.mxu0 0.0
  %128 = vmatprep.subr.mxu0 0.0
  %129 = vmatpush1.msra.mxu0 0.0
  %130 = vmatprep.subr.mxu0 0.0
  %131 = vmatpush1.msra.mxu0 0.0
  %132 = vmatprep.subr.mxu0 0.0
  %133 = vmatpush1.msra.mxu0 0.0
  %134 = vmatprep.subr.mxu0 0.0
  %135 = vmatpush1.msra.mxu0 0.0
  %136 = vmatprep.subr.mxu0 0.0
  %137 = vmatpush1.msra.mxu0 0.0
  %138 = vmatprep.subr.mxu0 0.0
  %139 = vmatpush1.msra.mxu0 0.0
  %140 = vmatprep.subr.mxu0 0.0
  %141 = vmatpush1.msra.mxu0 0.0
  %142 = vmatprep.subr.mxu0 0.0
  %143 = vmatpush1.msra.mxu0 0.0
  %144 = vmatprep.subr.mxu0 0.0
  %145 = vmatpush1.msra.mxu0 0.0
  %146 = vmatprep.subr.mxu0 0.0
  %147 = vmatpush1.msra.mxu0 0.0
  %148 = vmatprep.subr.mxu0 0.0
  %149 = vmatpush1.msra.mxu0 0.0
  %150 = vmatprep.subr.mxu0 0.0
  %151 = vmatpush1.msra.mxu0 0.0
  %152 = vmatprep.subr.mxu0 0.0
  %153 = vmatpush1.msra.mxu0 0.0
  %154 = vmatprep.subr.mxu0 0.0
  %155 = vmatpush1.msra.mxu0 0.0
  %156 = vmatprep.subr.mxu0 0.0
  %157 = vmatpush1.msra.mxu0 0.0
  %158 = vmatprep.subr.mxu0 0.0
  %159 = vmatpush1.msra.mxu0 0.0
  %160 = vmatprep.subr.mxu0 0.0
  %161 = vmatpush1.msra.mxu0 0.0
  %162 = vmatprep.subr.mxu0 0.0
  %163 = vmatpush1.msra.mxu0 0.0
  %164 = vmatprep.subr.mxu0 0.0
  %165 = vmatpush1.msra.mxu0 0.0
  %166 = vmatprep.mubr.f32.mxu0 0.0
  %167 = vmatmul.mubr.f32.gmra.mrb[0].mxu0 %v79
  %v168 = vpop.f32.mrb[0].mxu0
  %v169 = vadd.f32 %v76, %v168
  %v170 = vpop.f32.mrb[0].mxu0
  %171 = vmatprep.mubr.f32.mxu0 0.0
  %172 = vmatmul.mubr.f32.gmra.mrb[0].mxu0 %v82
  %v173 = vpop.f32.mrb[0].mxu0
  %v174 = vadd.f32 %v76, %v173
  %v175 = vpop.f32.mrb[0].mxu0
  %176 = vmatprep.mubr.f32.mxu0 0.0
  %177 = vmatmul.mubr.f32.gmra.mrb[0].mxu0 %v85
  %v178 = vpop.f32.mrb[0].mxu0
  %v179 = vadd.f32 %v76, %v178
  %v180 = vpop.f32.mrb[0].mxu0
  %181 = vmatprep.mubr.f32.mxu0 0.0
  %182 = vmatmul.mubr.f32.gmra.mrb[0].mxu0 %v88
  %v183 = vpop.f32.mrb[0].mxu0
  %v184 = vadd.f32 %v76, %v183
  %v185 = vpop.f32.mrb[0].mxu0
  %186 = vmatprep.mubr.f32.mxu0 0.0
  %187 = vmatmul.mubr.f32.gmra.mrb[0].mxu0 %v91
  %v188 = vpop.f32.mrb[0].mxu0
  %v189 = vadd.f32 %v76, %v188
  %v190 = vpop.f32.mrb[0].mxu0
  %191 = vmatprep.mubr.f32.mxu0 0.0
  %192 = vmatmul.mubr.f32.gmra.mrb[0].mxu0 %v94
  %v193 = vpop.f32.mrb[0].mxu0
  %v194 = vadd.f32 %v76, %v193
  %v195 = vpop.f32.mrb[0].mxu0
  %196 = vmatprep.mubr.f32.mxu0 0.0
  %197 = vmatmul.mubr.f32.gmra.mrb[0].mxu0 %v97
  %v198 = vpop.f32.mrb[0].mxu0
  %v199 = vadd.f32 %v76, %v198
  %v200 = vpop.f32.mrb[0].mxu0
  %201 = vmatprep.mubr.f32.mxu0 0.0
  %202 = vmatmul.mubr.f32.gmra.mrb[0].mxu0 %v100
  %v203 = vpop.f32.mrb[0].mxu0
  %v204 = vadd.f32 %v76, %v203
  %v205 = vpop.f32.mrb[0].mxu0
  %206 = vdwg.mxu0
  %v207 = vmax.f32 %v169, 0.0
  %v208 = vmax.f32 %v174, 0.0
  %v209 = vmax.f32 %v179, 0.0
  %v210 = vmax.f32 %v184, 0.0
  %v211 = vmax.f32 %v189, 0.0
  %v212 = vmax.f32 %v194, 0.0
  %v213 = vmax.f32 %v199, 0.0
  %v214 = vmax.f32 %v204, 0.0
  %v215 = vlaneseq
  %v216 = vshrl.u32 %v215, 7
  %v217 = vsub.s32 1, %v216
  %v218 = vrot.slane %v56, %v217
  %v220 = vsel %vm77, %v207, 0
  %v223 = vsel %vm77, %v208, 0
  %v226 = vsel %vm77, %v209, 0
  %v229 = vsel %vm77, %v210, 0
  %v232 = vsel %vm77, %v211, 0
  %v235 = vsel %vm77, %v212, 0
  %v238 = vsel %vm77, %v213, 0
  %v241 = vsel %vm77, %v214, 0
  %243 = vmatprep.subr.mxu0 0.0
  %244 = vmatpush1.msra.mxu0 %v22
  %245 = vmatprep.subr.mxu0 0.0
  %246 = vmatpush1.msra.mxu0 %v23
  %247 = vmatprep.subr.mxu0 0.0
  %248 = vmatpush1.msra.mxu0 %v24
  %249 = vmatprep.subr.mxu0 0.0
  %250 = vmatpush1.msra.mxu0 %v25
  %251 = vmatprep.subr.mxu0 0.0
  %252 = vmatpush1.msra.mxu0 0.0
  %253 = vmatprep.subr.mxu0 0.0
  %254 = vmatpush1.msra.mxu0 0.0
  %255 = vmatprep.subr.mxu0 0.0
  %256 = vmatpush1.msra.mxu0 0.0
  %257 = vmatprep.subr.mxu0 0.0
  %258 = vmatpush1.msra.mxu0 0.0
  %259 = vmatprep.subr.mxu0 0.0
  %260 = vmatpush1.msra.mxu0 0.0
  %261 = vmatprep.subr.mxu0 0.0
  %262 = vmatpush1.msra.mxu0 0.0
  %263 = vmatprep.subr.mxu0 0.0
  %264 = vmatpush1.msra.mxu0 0.0
  %265 = vmatprep.subr.mxu0 0.0
  %266 = vmatpush1.msra.mxu0 0.0
  %267 = vmatprep.subr.mxu0 0.0
  %268 = vmatpush1.msra.mxu0 0.0
  %269 = vmatprep.subr.mxu0 0.0
  %270 = vmatpush1.msra.mxu0 0.0
  %271 = vmatprep.subr.mxu0 0.0
  %272 = vmatpush1.msra.mxu0 0.0
  %273 = vmatprep.subr.mxu0 0.0
  %274 = vmatpush1.msra.mxu0 0.0
  %275 = vmatprep.subr.mxu0 0.0
  %276 = vmatpush1.msra.mxu0 0.0
  %277 = vmatprep.subr.mxu0 0.0
  %278 = vmatpush1.msra.mxu0 0.0
  %279 = vmatprep.subr.mxu0 0.0
  %280 = vmatpush1.msra.mxu0 0.0
  %281 = vmatprep.subr.mxu0 0.0
  %282 = vmatpush1.msra.mxu0 0.0
  %283 = vmatprep.subr.mxu0 0.0
  %284 = vmatpush1.msra.mxu0 0.0
  %285 = vmatprep.subr.mxu0 0.0
  %286 = vmatpush1.msra.mxu0 0.0
  %287 = vmatprep.subr.mxu0 0.0
  %288 = vmatpush1.msra.mxu0 0.0
  %289 = vmatprep.subr.mxu0 0.0
  %290 = vmatpush1.msra.mxu0 0.0
  %291 = vmatprep.subr.mxu0 0.0
  %292 = vmatpush1.msra.mxu0 0.0
  %293 = vmatprep.subr.mxu0 0.0
  %294 = vmatpush1.msra.mxu0 0.0
  %295 = vmatprep.subr.mxu0 0.0
  %296 = vmatpush1.msra.mxu0 0.0
  %297 = vmatprep.subr.mxu0 0.0
  %298 = vmatpush1.msra.mxu0 0.0
  %299 = vmatprep.subr.mxu0 0.0
  %300 = vmatpush1.msra.mxu0 0.0
  %301 = vmatprep.subr.mxu0 0.0
  %302 = vmatpush1.msra.mxu0 0.0
  %303 = vmatprep.subr.mxu0 0.0
  %304 = vmatpush1.msra.mxu0 0.0
  %305 = vmatprep.subr.mxu0 0.0
  %306 = vmatpush1.msra.mxu0 0.0
  %307 = vmatprep.mubr.f32.mxu0 0.0
  %308 = vmatmul.mubr.f32.gmra.mrb[0].mxu0 %v220
  %v309 = vpop.f32.mrb[0].mxu0
  %v310 = vadd.f32 %v218, %v309
  %v311 = vpop.f32.mrb[0].mxu0
  %312 = vmatprep.mubr.f32.mxu0 0.0
  %313 = vmatmul.mubr.f32.gmra.mrb[0].mxu0 %v223
  %v314 = vpop.f32.mrb[0].mxu0
  %v315 = vadd.f32 %v218, %v314
  %v316 = vpop.f32.mrb[0].mxu0
  %317 = vmatprep.mubr.f32.mxu0 0.0
  %318 = vmatmul.mubr.f32.gmra.mrb[0].mxu0 %v226
  %v319 = vpop.f32.mrb[0].mxu0
  %v320 = vadd.f32 %v218, %v319
  %v321 = vpop.f32.mrb[0].mxu0
  %322 = vmatprep.mubr.f32.mxu0 0.0
  %323 = vmatmul.mubr.f32.gmra.mrb[0].mxu0 %v229
  %v324 = vpop.f32.mrb[0].mxu0
  %v325 = vadd.f32 %v218, %v324
  %v326 = vpop.f32.mrb[0].mxu0
  %327 = vmatprep.mubr.f32.mxu0 0.0
  %328 = vmatmul.mubr.f32.gmra.mrb[0].mxu0 %v232
  %v329 = vpop.f32.mrb[0].mxu0
  %v330 = vadd.f32 %v218, %v329
  %v331 = vpop.f32.mrb[0].mxu0
  %332 = vmatprep.mubr.f32.mxu0 0.0
  %333 = vmatmul.mubr.f32.gmra.mrb[0].mxu0 %v235
  %v334 = vpop.f32.mrb[0].mxu0
  %v335 = vadd.f32 %v218, %v334
  %v336 = vpop.f32.mrb[0].mxu0
  %337 = vmatprep.mubr.f32.mxu0 0.0
  %338 = vmatmul.mubr.f32.gmra.mrb[0].mxu0 %v238
  %v339 = vpop.f32.mrb[0].mxu0
  %v340 = vadd.f32 %v218, %v339
  %v341 = vpop.f32.mrb[0].mxu0
  %342 = vmatprep.mubr.f32.mxu0 0.0
  %343 = vmatmul.mubr.f32.gmra.mrb[0].mxu0 %v241
  %v344 = vpop.f32.mrb[0].mxu0
  %v345 = vadd.f32 %v218, %v344
  %v346 = vpop.f32.mrb[0].mxu0
  %347 = vdwg.mxu0
  %v348 = vmax.f32 %v310, 0.0
  %v349 = vmax.f32 %v315, 0.0
  %v350 = vmax.f32 %v320, 0.0
  %v351 = vmax.f32 %v325, 0.0
  %v352 = vmax.f32 %v330, 0.0
  %v353 = vmax.f32 %v335, 0.0
  %v354 = vmax.f32 %v340, 0.0
  %v355 = vmax.f32 %v345, 0.0
  %v357 = vsel %vm77, %v65, 0
  %v360 = vsel %vm77, %v66, 0
  %v363 = vsel %vm77, %v67, 0
  %v366 = vsel %vm77, %v68, 0
  %v369 = vsel %vm77, %v69, 0
  %v372 = vsel %vm77, %v70, 0
  %v375 = vsel %vm77, %v71, 0
  %v378 = vsel %vm77, %v72, 0
  %380 = vmatprep.subr.mxu0 0.0
  %381 = vmatpush1.msra.mxu0 %v17
  %382 = vmatprep.subr.mxu0 0.0
  %383 = vmatpush1.msra.mxu0 %v18
  %384 = vmatprep.subr.mxu0 0.0
  %385 = vmatpush1.msra.mxu0 %v19
  %386 = vmatprep.subr.mxu0 0.0
  %387 = vmatpush1.msra.mxu0 %v20
  %388 = vmatprep.subr.mxu0 0.0
  %389 = vmatpush1.msra.mxu0 0.0
  %390 = vmatprep.subr.mxu0 0.0
  %391 = vmatpush1.msra.mxu0 0.0
  %392 = vmatprep.subr.mxu0 0.0
  %393 = vmatpush1.msra.mxu0 0.0
  %394 = vmatprep.subr.mxu0 0.0
  %395 = vmatpush1.msra.mxu0 0.0
  %396 = vmatprep.subr.mxu0 0.0
  %397 = vmatpush1.msra.mxu0 0.0
  %398 = vmatprep.subr.mxu0 0.0
  %399 = vmatpush1.msra.mxu0 0.0
  %400 = vmatprep.subr.mxu0 0.0
  %401 = vmatpush1.msra.mxu0 0.0
  %402 = vmatprep.subr.mxu0 0.0
  %403 = vmatpush1.msra.mxu0 0.0
  %404 = vmatprep.subr.mxu0 0.0
  %405 = vmatpush1.msra.mxu0 0.0
  %406 = vmatprep.subr.mxu0 0.0
  %407 = vmatpush1.msra.mxu0 0.0
  %408 = vmatprep.subr.mxu0 0.0
  %409 = vmatpush1.msra.mxu0 0.0
  %410 = vmatprep.subr.mxu0 0.0
  %411 = vmatpush1.msra.mxu0 0.0
  %412 = vmatprep.subr.mxu0 0.0
  %413 = vmatpush1.msra.mxu0 0.0
  %414 = vmatprep.subr.mxu0 0.0
  %415 = vmatpush1.msra.mxu0 0.0
  %416 = vmatprep.subr.mxu0 0.0
  %417 = vmatpush1.msra.mxu0 0.0
  %418 = vmatprep.subr.mxu0 0.0
  %419 = vmatpush1.msra.mxu0 0.0
  %420 = vmatprep.subr.mxu0 0.0
  %421 = vmatpush1.msra.mxu0 0.0
  %422 = vmatprep.subr.mxu0 0.0
  %423 = vmatpush1.msra.mxu0 0.0
  %424 = vmatprep.subr.mxu0 0.0
  %425 = vmatpush1.msra.mxu0 0.0
  %426 = vmatprep.subr.mxu0 0.0
  %427 = vmatpush1.msra.mxu0 0.0
  %428 = vmatprep.subr.mxu0 0.0
  %429 = vmatpush1.msra.mxu0 0.0
  %430 = vmatprep.subr.mxu0 0.0
  %431 = vmatpush1.msra.mxu0 0.0
  %432 = vmatprep.subr.mxu0 0.0
  %433 = vmatpush1.msra.mxu0 0.0
  %434 = vmatprep.subr.mxu0 0.0
  %435 = vmatpush1.msra.mxu0 0.0
  %436 = vmatprep.subr.mxu0 0.0
  %437 = vmatpush1.msra.mxu0 0.0
  %438 = vmatprep.subr.mxu0 0.0
  %439 = vmatpush1.msra.mxu0 0.0
  %440 = vmatprep.subr.mxu0 0.0
  %441 = vmatpush1.msra.mxu0 0.0
  %442 = vmatprep.subr.mxu0 0.0
  %443 = vmatpush1.msra.mxu0 0.0
  %444 = vmatprep.mubr.f32.mxu0 0.0
  %445 = vmatmul.mubr.f32.gmra.mrb[0].mxu0 %v357
  %v446 = vpop.f32.mrb[0].mxu0
  %v447 = vadd.f32 %v76, %v446
  %v448 = vpop.f32.mrb[0].mxu0
  %449 = vmatprep.mubr.f32.mxu0 0.0
  %450 = vmatmul.mubr.f32.gmra.mrb[0].mxu0 %v360
  %v451 = vpop.f32.mrb[0].mxu0
  %v452 = vadd.f32 %v76, %v451
  %v453 = vpop.f32.mrb[0].mxu0
  %454 = vmatprep.mubr.f32.mxu0 0.0
  %455 = vmatmul.mubr.f32.gmra.mrb[0].mxu0 %v363
  %v456 = vpop.f32.mrb[0].mxu0
  %v457 = vadd.f32 %v76, %v456
  %v458 = vpop.f32.mrb[0].mxu0
  %459 = vmatprep.mubr.f32.mxu0 0.0
  %460 = vmatmul.mubr.f32.gmra.mrb[0].mxu0 %v366
  %v461 = vpop.f32.mrb[0].mxu0
  %v462 = vadd.f32 %v76, %v461
  %v463 = vpop.f32.mrb[0].mxu0
  %464 = vmatprep.mubr.f32.mxu0 0.0
  %465 = vmatmul.mubr.f32.gmra.mrb[0].mxu0 %v369
  %v466 = vpop.f32.mrb[0].mxu0
  %v467 = vadd.f32 %v76, %v466
  %v468 = vpop.f32.mrb[0].mxu0
  %469 = vmatprep.mubr.f32.mxu0 0.0
  %470 = vmatmul.mubr.f32.gmra.mrb[0].mxu0 %v372
  %v471 = vpop.f32.mrb[0].mxu0
  %v472 = vadd.f32 %v76, %v471
  %v473 = vpop.f32.mrb[0].mxu0
  %474 = vmatprep.mubr.f32.mxu0 0.0
  %475 = vmatmul.mubr.f32.gmra.mrb[0].mxu0 %v375
  %v476 = vpop.f32.mrb[0].mxu0
  %v477 = vadd.f32 %v76, %v476
  %v478 = vpop.f32.mrb[0].mxu0
  %479 = vmatprep.mubr.f32.mxu0 0.0
  %480 = vmatmul.mubr.f32.gmra.mrb[0].mxu0 %v378
  %v481 = vpop.f32.mrb[0].mxu0
  %v482 = vadd.f32 %v76, %v481
  %v483 = vpop.f32.mrb[0].mxu0
  %484 = vdwg.mxu0
  %v485 = vmax.f32 %v447, 0.0
  %v486 = vmax.f32 %v452, 0.0
  %v487 = vmax.f32 %v457, 0.0
  %v488 = vmax.f32 %v462, 0.0
  %v489 = vmax.f32 %v467, 0.0
  %v490 = vmax.f32 %v472, 0.0
  %v491 = vmax.f32 %v477, 0.0
  %v492 = vmax.f32 %v482, 0.0
  %v494 = vsel %vm77, %v485, 0
  %v497 = vsel %vm77, %v486, 0
  %v500 = vsel %vm77, %v487, 0
  %v503 = vsel %vm77, %v488, 0
  %v506 = vsel %vm77, %v489, 0
  %v509 = vsel %vm77, %v490, 0
  %v512 = vsel %vm77, %v491, 0
  %v515 = vsel %vm77, %v492, 0
  %517 = vmatprep.subr.mxu0 0.0
  %518 = vmatpush1.msra.mxu0 %v22
  %519 = vmatprep.subr.mxu0 0.0
  %520 = vmatpush1.msra.mxu0 %v23
  %521 = vmatprep.subr.mxu0 0.0
  %522 = vmatpush1.msra.mxu0 %v24
  %523 = vmatprep.subr.mxu0 0.0
  %524 = vmatpush1.msra.mxu0 %v25
  %525 = vmatprep.subr.mxu0 0.0
  %526 = vmatpush1.msra.mxu0 0.0
  %527 = vmatprep.subr.mxu0 0.0
  %528 = vmatpush1.msra.mxu0 0.0
  %529 = vmatprep.subr.mxu0 0.0
  %530 = vmatpush1.msra.mxu0 0.0
  %531 = vmatprep.subr.mxu0 0.0
  %532 = vmatpush1.msra.mxu0 0.0
  %533 = vmatprep.subr.mxu0 0.0
  %534 = vmatpush1.msra.mxu0 0.0
  %535 = vmatprep.subr.mxu0 0.0
  %536 = vmatpush1.msra.mxu0 0.0
  %537 = vmatprep.subr.mxu0 0.0
  %538 = vmatpush1.msra.mxu0 0.0
  %539 = vmatprep.subr.mxu0 0.0
  %540 = vmatpush1.msra.mxu0 0.0
  %541 = vmatprep.subr.mxu0 0.0
  %542 = vmatpush1.msra.mxu0 0.0
  %543 = vmatprep.subr.mxu0 0.0
  %544 = vmatpush1.msra.mxu0 0.0
  %545 = vmatprep.subr.mxu0 0.0
  %546 = vmatpush1.msra.mxu0 0.0
  %547 = vmatprep.subr.mxu0 0.0
  %548 = vmatpush1.msra.mxu0 0.0
  %549 = vmatprep.subr.mxu0 0.0
  %550 = vmatpush1.msra.mxu0 0.0
  %551 = vmatprep.subr.mxu0 0.0
  %552 = vmatpush1.msra.mxu0 0.0
  %553 = vmatprep.subr.mxu0 0.0
  %554 = vmatpush1.msra.mxu0 0.0
  %555 = vmatprep.subr.mxu0 0.0
  %556 = vmatpush1.msra.mxu0 0.0
  %557 = vmatprep.subr.mxu0 0.0
  %558 = vmatpush1.msra.mxu0 0.0
  %559 = vmatprep.subr.mxu0 0.0
  %560 = vmatpush1.msra.mxu0 0.0
  %561 = vmatprep.subr.mxu0 0.0
  %562 = vmatpush1.msra.mxu0 0.0
  %563 = vmatprep.subr.mxu0 0.0
  %564 = vmatpush1.msra.mxu0 0.0
  %565 = vmatprep.subr.mxu0 0.0
  %566 = vmatpush1.msra.mxu0 0.0
  %567 = vmatprep.subr.mxu0 0.0
  %568 = vmatpush1.msra.mxu0 0.0
  %569 = vmatprep.subr.mxu0 0.0
  %570 = vmatpush1.msra.mxu0 0.0
  %571 = vmatprep.subr.mxu0 0.0
  %572 = vmatpush1.msra.mxu0 0.0
  %573 = vmatprep.subr.mxu0 0.0
  %574 = vmatpush1.msra.mxu0 0.0
  %575 = vmatprep.subr.mxu0 0.0
  %576 = vmatpush1.msra.mxu0 0.0
  %577 = vmatprep.subr.mxu0 0.0
  %578 = vmatpush1.msra.mxu0 0.0
  %579 = vmatprep.subr.mxu0 0.0
  %580 = vmatpush1.msra.mxu0 0.0
  %581 = vmatprep.mubr.f32.mxu0 0.0
  %582 = vmatmul.mubr.f32.gmra.mrb[0].mxu0 %v494
  %v583 = vpop.f32.mrb[0].mxu0
  %v584 = vadd.f32 %v218, %v583
  %v585 = vpop.f32.mrb[0].mxu0
  %586 = vmatprep.mubr.f32.mxu0 0.0
  %587 = vmatmul.mubr.f32.gmra.mrb[0].mxu0 %v497
  %v588 = vpop.f32.mrb[0].mxu0
  %v589 = vadd.f32 %v218, %v588
  %v590 = vpop.f32.mrb[0].mxu0
  %591 = vmatprep.mubr.f32.mxu0 0.0
  %592 = vmatmul.mubr.f32.gmra.mrb[0].mxu0 %v500
  %v593 = vpop.f32.mrb[0].mxu0
  %v594 = vadd.f32 %v218, %v593
  %v595 = vpop.f32.mrb[0].mxu0
  %596 = vmatprep.mubr.f32.mxu0 0.0
  %597 = vmatmul.mubr.f32.gmra.mrb[0].mxu0 %v503
  %v598 = vpop.f32.mrb[0].mxu0
  %v599 = vadd.f32 %v218, %v598
  %v600 = vpop.f32.mrb[0].mxu0
  %601 = vmatprep.mubr.f32.mxu0 0.0
  %602 = vmatmul.mubr.f32.gmra.mrb[0].mxu0 %v506
  %v603 = vpop.f32.mrb[0].mxu0
  %v604 = vadd.f32 %v218, %v603
  %v605 = vpop.f32.mrb[0].mxu0
  %606 = vmatprep.mubr.f32.mxu0 0.0
  %607 = vmatmul.mubr.f32.gmra.mrb[0].mxu0 %v509
  %v608 = vpop.f32.mrb[0].mxu0
  %v609 = vadd.f32 %v218, %v608
  %v610 = vpop.f32.mrb[0].mxu0
  %611 = vmatprep.mubr.f32.mxu0 0.0
  %612 = vmatmul.mubr.f32.gmra.mrb[0].mxu0 %v512
  %v613 = vpop.f32.mrb[0].mxu0
  %v614 = vadd.f32 %v218, %v613
  %v615 = vpop.f32.mrb[0].mxu0
  %616 = vmatprep.mubr.f32.mxu0 0.0
  %617 = vmatmul.mubr.f32.gmra.mrb[0].mxu0 %v515
  %v618 = vpop.f32.mrb[0].mxu0
  %v619 = vadd.f32 %v218, %v618
  %v620 = vpop.f32.mrb[0].mxu0
  %621 = vdwg.mxu0
  %v622 = vmax.f32 %v584, 0.0
  %v623 = vmax.f32 %v589, 0.0
  %v624 = vmax.f32 %v594, 0.0
  %v625 = vmax.f32 %v599, 0.0
  %v626 = vmax.f32 %v604, 0.0
  %v627 = vmax.f32 %v609, 0.0
  %v628 = vmax.f32 %v614, 0.0
  %v629 = vmax.f32 %v619, 0.0
  %v631 = vsel %vm77, %v348, 0
  %v634 = vsel %vm77, %v622, 0
  %636 = vmatprep.subr.mxu0 0.0
  %637 = vmatpush1.xpose.msra.mxu0 %v634
  %638 = vmatprep.subr.mxu0 0.0
  %639 = vmatpush1.xpose.msra.mxu0 0.0
  %640 = vmatprep.subr.mxu0 0.0
  %641 = vmatpush1.xpose.msra.mxu0 0.0
  %642 = vmatprep.subr.mxu0 0.0
  %643 = vmatpush1.xpose.msra.mxu0 0.0
  %644 = vmatprep.subr.mxu0 0.0
  %645 = vmatpush1.xpose.msra.mxu0 0.0
  %646 = vmatprep.subr.mxu0 0.0
  %647 = vmatpush1.xpose.msra.mxu0 0.0
  %648 = vmatprep.subr.mxu0 0.0
  %649 = vmatpush1.xpose.msra.mxu0 0.0
  %650 = vmatprep.subr.mxu0 0.0
  %651 = vmatpush1.xpose.msra.mxu0 0.0
  %652 = vmatprep.subr.mxu0 0.0
  %653 = vmatpush1.xpose.msra.mxu0 0.0
  %654 = vmatprep.subr.mxu0 0.0
  %655 = vmatpush1.xpose.msra.mxu0 0.0
  %656 = vmatprep.subr.mxu0 0.0
  %657 = vmatpush1.xpose.msra.mxu0 0.0
  %658 = vmatprep.subr.mxu0 0.0
  %659 = vmatpush1.xpose.msra.mxu0 0.0
  %660 = vmatprep.subr.mxu0 0.0
  %661 = vmatpush1.xpose.msra.mxu0 0.0
  %662 = vmatprep.subr.mxu0 0.0
  %663 = vmatpush1.xpose.msra.mxu0 0.0
  %664 = vmatprep.subr.mxu0 0.0
  %665 = vmatpush1.xpose.msra.mxu0 0.0
  %666 = vmatprep.subr.mxu0 0.0
  %667 = vmatpush1.xpose.msra.mxu0 0.0
  %668 = vmatprep.subr.mxu0 0.0
  %669 = vmatpush1.xpose.msra.mxu0 0.0
  %670 = vmatprep.subr.mxu0 0.0
  %671 = vmatpush1.xpose.msra.mxu0 0.0
  %672 = vmatprep.subr.mxu0 0.0
  %673 = vmatpush1.xpose.msra.mxu0 0.0
  %674 = vmatprep.subr.mxu0 0.0
  %675 = vmatpush1.xpose.msra.mxu0 0.0
  %676 = vmatprep.subr.mxu0 0.0
  %677 = vmatpush1.xpose.msra.mxu0 0.0
  %678 = vmatprep.subr.mxu0 0.0
  %679 = vmatpush1.xpose.msra.mxu0 0.0
  %680 = vmatprep.subr.mxu0 0.0
  %681 = vmatpush1.xpose.msra.mxu0 0.0
  %682 = vmatprep.subr.mxu0 0.0
  %683 = vmatpush1.xpose.msra.mxu0 0.0
  %684 = vmatprep.subr.mxu0 0.0
  %685 = vmatpush1.xpose.msra.mxu0 0.0
  %686 = vmatprep.subr.mxu0 0.0
  %687 = vmatpush1.xpose.msra.mxu0 0.0
  %688 = vmatprep.subr.mxu0 0.0
  %689 = vmatpush1.xpose.msra.mxu0 0.0
  %690 = vmatprep.subr.mxu0 0.0
  %691 = vmatpush1.xpose.msra.mxu0 0.0
  %692 = vmatprep.subr.mxu0 0.0
  %693 = vmatpush1.xpose.msra.mxu0 0.0
  %694 = vmatprep.subr.mxu0 0.0
  %695 = vmatpush1.xpose.msra.mxu0 0.0
  %696 = vmatprep.subr.mxu0 0.0
  %697 = vmatpush1.xpose.msra.mxu0 0.0
  %698 = vmatprep.subr.mxu0 0.0
  %699 = vmatpush1.xpose.msra.mxu0 0.0
  %700 = vmatprep.mubr.f32.mxu0 0.0
  %701 = vmatmul.mubr.f32.gmra.mrb[0].mxu0 %v631
  %v702 = vpop.f32.mrb[0].mxu0
  %v703 = vadd.f32 0.0, %v702
  %v704 = vpop.f32.mrb[0].mxu0
  %705 = vdwg.mxu0
  %v707 = vsel %vm77, %v349, 0
  %v710 = vsel %vm77, %v623, 0
  %712 = vmatprep.subr.mxu0 0.0
  %713 = vmatpush1.xpose.msra.mxu0 %v710
  %714 = vmatprep.subr.mxu0 0.0
  %715 = vmatpush1.xpose.msra.mxu0 0.0
  %716 = vmatprep.subr.mxu0 0.0
  %717 = vmatpush1.xpose.msra.mxu0 0.0
  %718 = vmatprep.subr.mxu0 0.0
  %719 = vmatpush1.xpose.msra.mxu0 0.0
  %720 = vmatprep.subr.mxu0 0.0
  %721 = vmatpush1.xpose.msra.mxu0 0.0
  %722 = vmatprep.subr.mxu0 0.0
  %723 = vmatpush1.xpose.msra.mxu0 0.0
  %724 = vmatprep.subr.mxu0 0.0
  %725 = vmatpush1.xpose.msra.mxu0 0.0
  %726 = vmatprep.subr.mxu0 0.0
  %727 = vmatpush1.xpose.msra.mxu0 0.0
  %728 = vmatprep.subr.mxu0 0.0
  %729 = vmatpush1.xpose.msra.mxu0 0.0
  %730 = vmatprep.subr.mxu0 0.0
  %731 = vmatpush1.xpose.msra.mxu0 0.0
  %732 = vmatprep.subr.mxu0 0.0
  %733 = vmatpush1.xpose.msra.mxu0 0.0
  %734 = vmatprep.subr.mxu0 0.0
  %735 = vmatpush1.xpose.msra.mxu0 0.0
  %736 = vmatprep.subr.mxu0 0.0
  %737 = vmatpush1.xpose.msra.mxu0 0.0
  %738 = vmatprep.subr.mxu0 0.0
  %739 = vmatpush1.xpose.msra.mxu0 0.0
  %740 = vmatprep.subr.mxu0 0.0
  %741 = vmatpush1.xpose.msra.mxu0 0.0
  %742 = vmatprep.subr.mxu0 0.0
  %743 = vmatpush1.xpose.msra.mxu0 0.0
  %744 = vmatprep.subr.mxu0 0.0
  %745 = vmatpush1.xpose.msra.mxu0 0.0
  %746 = vmatprep.subr.mxu0 0.0
  %747 = vmatpush1.xpose.msra.mxu0 0.0
  %748 = vmatprep.subr.mxu0 0.0
  %749 = vmatpush1.xpose.msra.mxu0 0.0
  %750 = vmatprep.subr.mxu0 0.0
  %751 = vmatpush1.xpose.msra.mxu0 0.0
  %752 = vmatprep.subr.mxu0 0.0
  %753 = vmatpush1.xpose.msra.mxu0 0.0
  %754 = vmatprep.subr.mxu0 0.0
  %755 = vmatpush1.xpose.msra.mxu0 0.0
  %756 = vmatprep.subr.mxu0 0.0
  %757 = vmatpush1.xpose.msra.mxu0 0.0
  %758 = vmatprep.subr.mxu0 0.0
  %759 = vmatpush1.xpose.msra.mxu0 0.0
  %760 = vmatprep.subr.mxu0 0.0
  %761 = vmatpush1.xpose.msra.mxu0 0.0
  %762 = vmatprep.subr.mxu0 0.0
  %763 = vmatpush1.xpose.msra.mxu0 0.0
  %764 = vmatprep.subr.mxu0 0.0
  %765 = vmatpush1.xpose.msra.mxu0 0.0
  %766 = vmatprep.subr.mxu0 0.0
  %767 = vmatpush1.xpose.msra.mxu0 0.0
  %768 = vmatprep.subr.mxu0 0.0
  %769 = vmatpush1.xpose.msra.mxu0 0.0
  %770 = vmatprep.subr.mxu0 0.0
  %771 = vmatpush1.xpose.msra.mxu0 0.0
  %772 = vmatprep.subr.mxu0 0.0
  %773 = vmatpush1.xpose.msra.mxu0 0.0
  %774 = vmatprep.subr.mxu0 0.0
  %775 = vmatpush1.xpose.msra.mxu0 0.0
  %776 = vmatprep.mubr.f32.mxu0 0.0
  %777 = vmatmul.mubr.f32.gmra.mrb[0].mxu0 %v707
  %v778 = vpop.f32.mrb[0].mxu0
  %v779 = vadd.f32 0.0, %v778
  %v780 = vpop.f32.mrb[0].mxu0
  %781 = vdwg.mxu0
  %v783 = vsel %vm77, %v350, 0
  %v786 = vsel %vm77, %v624, 0
  %788 = vmatprep.subr.mxu0 0.0
  %789 = vmatpush1.xpose.msra.mxu0 %v786
  %790 = vmatprep.subr.mxu0 0.0
  %791 = vmatpush1.xpose.msra.mxu0 0.0
  %792 = vmatprep.subr.mxu0 0.0
  %793 = vmatpush1.xpose.msra.mxu0 0.0
  %794 = vmatprep.subr.mxu0 0.0
  %795 = vmatpush1.xpose.msra.mxu0 0.0
  %796 = vmatprep.subr.mxu0 0.0
  %797 = vmatpush1.xpose.msra.mxu0 0.0
  %798 = vmatprep.subr.mxu0 0.0
  %799 = vmatpush1.xpose.msra.mxu0 0.0
  %800 = vmatprep.subr.mxu0 0.0
  %801 = vmatpush1.xpose.msra.mxu0 0.0
  %802 = vmatprep.subr.mxu0 0.0
  %803 = vmatpush1.xpose.msra.mxu0 0.0
  %804 = vmatprep.subr.mxu0 0.0
  %805 = vmatpush1.xpose.msra.mxu0 0.0
  %806 = vmatprep.subr.mxu0 0.0
  %807 = vmatpush1.xpose.msra.mxu0 0.0
  %808 = vmatprep.subr.mxu0 0.0
  %809 = vmatpush1.xpose.msra.mxu0 0.0
  %810 = vmatprep.subr.mxu0 0.0
  %811 = vmatpush1.xpose.msra.mxu0 0.0
  %812 = vmatprep.subr.mxu0 0.0
  %813 = vmatpush1.xpose.msra.mxu0 0.0
  %814 = vmatprep.subr.mxu0 0.0
  %815 = vmatpush1.xpose.msra.mxu0 0.0
  %816 = vmatprep.subr.mxu0 0.0
  %817 = vmatpush1.xpose.msra.mxu0 0.0
  %818 = vmatprep.subr.mxu0 0.0
  %819 = vmatpush1.xpose.msra.mxu0 0.0
  %820 = vmatprep.subr.mxu0 0.0
  %821 = vmatpush1.xpose.msra.mxu0 0.0
  %822 = vmatprep.subr.mxu0 0.0
  %823 = vmatpush1.xpose.msra.mxu0 0.0
  %824 = vmatprep.subr.mxu0 0.0
  %825 = vmatpush1.xpose.msra.mxu0 0.0
  %826 = vmatprep.subr.mxu0 0.0
  %827 = vmatpush1.xpose.msra.mxu0 0.0
  %828 = vmatprep.subr.mxu0 0.0
  %829 = vmatpush1.xpose.msra.mxu0 0.0
  %830 = vmatprep.subr.mxu0 0.0
  %831 = vmatpush1.xpose.msra.mxu0 0.0
  %832 = vmatprep.subr.mxu0 0.0
  %833 = vmatpush1.xpose.msra.mxu0 0.0
  %834 = vmatprep.subr.mxu0 0.0
  %835 = vmatpush1.xpose.msra.mxu0 0.0
  %836 = vmatprep.subr.mxu0 0.0
  %837 = vmatpush1.xpose.msra.mxu0 0.0
  %838 = vmatprep.subr.mxu0 0.0
  %839 = vmatpush1.xpose.msra.mxu0 0.0
  %840 = vmatprep.subr.mxu0 0.0
  %841 = vmatpush1.xpose.msra.mxu0 0.0
  %842 = vmatprep.subr.mxu0 0.0
  %843 = vmatpush1.xpose.msra.mxu0 0.0
  %844 = vmatprep.subr.mxu0 0.0
  %845 = vmatpush1.xpose.msra.mxu0 0.0
  %846 = vmatprep.subr.mxu0 0.0
  %847 = vmatpush1.xpose.msra.mxu0 0.0
  %848 = vmatprep.subr.mxu0 0.0
  %849 = vmatpush1.xpose.msra.mxu0 0.0
  %850 = vmatprep.subr.mxu0 0.0
  %851 = vmatpush1.xpose.msra.mxu0 0.0
  %852 = vmatprep.mubr.f32.mxu0 0.0
  %853 = vmatmul.mubr.f32.gmra.mrb[0].mxu0 %v783
  %v854 = vpop.f32.mrb[0].mxu0
  %v855 = vadd.f32 0.0, %v854
  %v856 = vpop.f32.mrb[0].mxu0
  %857 = vdwg.mxu0
  %v859 = vsel %vm77, %v351, 0
  %v862 = vsel %vm77, %v625, 0
  %864 = vmatprep.subr.mxu0 0.0
  %865 = vmatpush1.xpose.msra.mxu0 %v862
  %866 = vmatprep.subr.mxu0 0.0
  %867 = vmatpush1.xpose.msra.mxu0 0.0
  %868 = vmatprep.subr.mxu0 0.0
  %869 = vmatpush1.xpose.msra.mxu0 0.0
  %870 = vmatprep.subr.mxu0 0.0
  %871 = vmatpush1.xpose.msra.mxu0 0.0
  %872 = vmatprep.subr.mxu0 0.0
  %873 = vmatpush1.xpose.msra.mxu0 0.0
  %874 = vmatprep.subr.mxu0 0.0
  %875 = vmatpush1.xpose.msra.mxu0 0.0
  %876 = vmatprep.subr.mxu0 0.0
  %877 = vmatpush1.xpose.msra.mxu0 0.0
  %878 = vmatprep.subr.mxu0 0.0
  %879 = vmatpush1.xpose.msra.mxu0 0.0
  %880 = vmatprep.subr.mxu0 0.0
  %881 = vmatpush1.xpose.msra.mxu0 0.0
  %882 = vmatprep.subr.mxu0 0.0
  %883 = vmatpush1.xpose.msra.mxu0 0.0
  %884 = vmatprep.subr.mxu0 0.0
  %885 = vmatpush1.xpose.msra.mxu0 0.0
  %886 = vmatprep.subr.mxu0 0.0
  %887 = vmatpush1.xpose.msra.mxu0 0.0
  %888 = vmatprep.subr.mxu0 0.0
  %889 = vmatpush1.xpose.msra.mxu0 0.0
  %890 = vmatprep.subr.mxu0 0.0
  %891 = vmatpush1.xpose.msra.mxu0 0.0
  %892 = vmatprep.subr.mxu0 0.0
  %893 = vmatpush1.xpose.msra.mxu0 0.0
  %894 = vmatprep.subr.mxu0 0.0
  %895 = vmatpush1.xpose.msra.mxu0 0.0
  %896 = vmatprep.subr.mxu0 0.0
  %897 = vmatpush1.xpose.msra.mxu0 0.0
  %898 = vmatprep.subr.mxu0 0.0
  %899 = vmatpush1.xpose.msra.mxu0 0.0
  %900 = vmatprep.subr.mxu0 0.0
  %901 = vmatpush1.xpose.msra.mxu0 0.0
  %902 = vmatprep.subr.mxu0 0.0
  %903 = vmatpush1.xpose.msra.mxu0 0.0
  %904 = vmatprep.subr.mxu0 0.0
  %905 = vmatpush1.xpose.msra.mxu0 0.0
  %906 = vmatprep.subr.mxu0 0.0
  %907 = vmatpush1.xpose.msra.mxu0 0.0
  %908 = vmatprep.subr.mxu0 0.0
  %909 = vmatpush1.xpose.msra.mxu0 0.0
  %910 = vmatprep.subr.mxu0 0.0
  %911 = vmatpush1.xpose.msra.mxu0 0.0
  %912 = vmatprep.subr.mxu0 0.0
  %913 = vmatpush1.xpose.msra.mxu0 0.0
  %914 = vmatprep.subr.mxu0 0.0
  %915 = vmatpush1.xpose.msra.mxu0 0.0
  %916 = vmatprep.subr.mxu0 0.0
  %917 = vmatpush1.xpose.msra.mxu0 0.0
  %918 = vmatprep.subr.mxu0 0.0
  %919 = vmatpush1.xpose.msra.mxu0 0.0
  %920 = vmatprep.subr.mxu0 0.0
  %921 = vmatpush1.xpose.msra.mxu0 0.0
  %922 = vmatprep.subr.mxu0 0.0
  %923 = vmatpush1.xpose.msra.mxu0 0.0
  %924 = vmatprep.subr.mxu0 0.0
  %925 = vmatpush1.xpose.msra.mxu0 0.0
  %926 = vmatprep.subr.mxu0 0.0
  %927 = vmatpush1.xpose.msra.mxu0 0.0
  %928 = vmatprep.mubr.f32.mxu0 0.0
  %929 = vmatmul.mubr.f32.gmra.mrb[0].mxu0 %v859
  %v930 = vpop.f32.mrb[0].mxu0
  %v931 = vadd.f32 0.0, %v930
  %v932 = vpop.f32.mrb[0].mxu0
  %933 = vdwg.mxu0
  %v935 = vsel %vm77, %v352, 0
  %v938 = vsel %vm77, %v626, 0
  %940 = vmatprep.subr.mxu0 0.0
  %941 = vmatpush1.xpose.msra.mxu0 %v938
  %942 = vmatprep.subr.mxu0 0.0
  %943 = vmatpush1.xpose.msra.mxu0 0.0
  %944 = vmatprep.subr.mxu0 0.0
  %945 = vmatpush1.xpose.msra.mxu0 0.0
  %946 = vmatprep.subr.mxu0 0.0
  %947 = vmatpush1.xpose.msra.mxu0 0.0
  %948 = vmatprep.subr.mxu0 0.0
  %949 = vmatpush1.xpose.msra.mxu0 0.0
  %950 = vmatprep.subr.mxu0 0.0
  %951 = vmatpush1.xpose.msra.mxu0 0.0
  %952 = vmatprep.subr.mxu0 0.0
  %953 = vmatpush1.xpose.msra.mxu0 0.0
  %954 = vmatprep.subr.mxu0 0.0
  %955 = vmatpush1.xpose.msra.mxu0 0.0
  %956 = vmatprep.subr.mxu0 0.0
  %957 = vmatpush1.xpose.msra.mxu0 0.0
  %958 = vmatprep.subr.mxu0 0.0
  %959 = vmatpush1.xpose.msra.mxu0 0.0
  %960 = vmatprep.subr.mxu0 0.0
  %961 = vmatpush1.xpose.msra.mxu0 0.0
  %962 = vmatprep.subr.mxu0 0.0
  %963 = vmatpush1.xpose.msra.mxu0 0.0
  %964 = vmatprep.subr.mxu0 0.0
  %965 = vmatpush1.xpose.msra.mxu0 0.0
  %966 = vmatprep.subr.mxu0 0.0
  %967 = vmatpush1.xpose.msra.mxu0 0.0
  %968 = vmatprep.subr.mxu0 0.0
  %969 = vmatpush1.xpose.msra.mxu0 0.0
  %970 = vmatprep.subr.mxu0 0.0
  %971 = vmatpush1.xpose.msra.mxu0 0.0
  %972 = vmatprep.subr.mxu0 0.0
  %973 = vmatpush1.xpose.msra.mxu0 0.0
  %974 = vmatprep.subr.mxu0 0.0
  %975 = vmatpush1.xpose.msra.mxu0 0.0
  %976 = vmatprep.subr.mxu0 0.0
  %977 = vmatpush1.xpose.msra.mxu0 0.0
  %978 = vmatprep.subr.mxu0 0.0
  %979 = vmatpush1.xpose.msra.mxu0 0.0
  %980 = vmatprep.subr.mxu0 0.0
  %981 = vmatpush1.xpose.msra.mxu0 0.0
  %982 = vmatprep.subr.mxu0 0.0
  %983 = vmatpush1.xpose.msra.mxu0 0.0
  %984 = vmatprep.subr.mxu0 0.0
  %985 = vmatpush1.xpose.msra.mxu0 0.0
  %986 = vmatprep.subr.mxu0 0.0
  %987 = vmatpush1.xpose.msra.mxu0 0.0
  %988 = vmatprep.subr.mxu0 0.0
  %989 = vmatpush1.xpose.msra.mxu0 0.0
  %990 = vmatprep.subr.mxu0 0.0
  %991 = vmatpush1.xpose.msra.mxu0 0.0
  %992 = vmatprep.subr.mxu0 0.0
  %993 = vmatpush1.xpose.msra.mxu0 0.0
  %994 = vmatprep.subr.mxu0 0.0
  %995 = vmatpush1.xpose.msra.mxu0 0.0
  %996 = vmatprep.subr.mxu0 0.0
  %997 = vmatpush1.xpose.msra.mxu0 0.0
  %998 = vmatprep.subr.mxu0 0.0
  %999 = vmatpush1.xpose.msra.mxu0 0.0
  %1000 = vmatprep.subr.mxu0 0.0
  %1001 = vmatpush1.xpose.msra.mxu0 0.0
  %1002 = vmatprep.subr.mxu0 0.0
  %1003 = vmatpush1.xpose.msra.mxu0 0.0
  %1004 = vmatprep.mubr.f32.mxu0 0.0
  %1005 = vmatmul.mubr.f32.gmra.mrb[0].mxu0 %v935
  %v1006 = vpop.f32.mrb[0].mxu0
  %v1007 = vadd.f32 0.0, %v1006
  %v1008 = vpop.f32.mrb[0].mxu0
  %1009 = vdwg.mxu0
  %v1011 = vsel %vm77, %v353, 0
  %v1014 = vsel %vm77, %v627, 0
  %1016 = vmatprep.subr.mxu0 0.0
  %1017 = vmatpush1.xpose.msra.mxu0 %v1014
  %1018 = vmatprep.subr.mxu0 0.0
  %1019 = vmatpush1.xpose.msra.mxu0 0.0
  %1020 = vmatprep.subr.mxu0 0.0
  %1021 = vmatpush1.xpose.msra.mxu0 0.0
  %1022 = vmatprep.subr.mxu0 0.0
  %1023 = vmatpush1.xpose.msra.mxu0 0.0
  %1024 = vmatprep.subr.mxu0 0.0
  %1025 = vmatpush1.xpose.msra.mxu0 0.0
  %1026 = vmatprep.subr.mxu0 0.0
  %1027 = vmatpush1.xpose.msra.mxu0 0.0
  %1028 = vmatprep.subr.mxu0 0.0
  %1029 = vmatpush1.xpose.msra.mxu0 0.0
  %1030 = vmatprep.subr.mxu0 0.0
  %1031 = vmatpush1.xpose.msra.mxu0 0.0
  %1032 = vmatprep.subr.mxu0 0.0
  %1033 = vmatpush1.xpose.msra.mxu0 0.0
  %1034 = vmatprep.subr.mxu0 0.0
  %1035 = vmatpush1.xpose.msra.mxu0 0.0
  %1036 = vmatprep.subr.mxu0 0.0
  %1037 = vmatpush1.xpose.msra.mxu0 0.0
  %1038 = vmatprep.subr.mxu0 0.0
  %1039 = vmatpush1.xpose.msra.mxu0 0.0
  %1040 = vmatprep.subr.mxu0 0.0
  %1041 = vmatpush1.xpose.msra.mxu0 0.0
  %1042 = vmatprep.subr.mxu0 0.0
  %1043 = vmatpush1.xpose.msra.mxu0 0.0
  %1044 = vmatprep.subr.mxu0 0.0
  %1045 = vmatpush1.xpose.msra.mxu0 0.0
  %1046 = vmatprep.subr.mxu0 0.0
  %1047 = vmatpush1.xpose.msra.mxu0 0.0
  %1048 = vmatprep.subr.mxu0 0.0
  %1049 = vmatpush1.xpose.msra.mxu0 0.0
  %1050 = vmatprep.subr.mxu0 0.0
  %1051 = vmatpush1.xpose.msra.mxu0 0.0
  %1052 = vmatprep.subr.mxu0 0.0
  %1053 = vmatpush1.xpose.msra.mxu0 0.0
  %1054 = vmatprep.subr.mxu0 0.0
  %1055 = vmatpush1.xpose.msra.mxu0 0.0
  %1056 = vmatprep.subr.mxu0 0.0
  %1057 = vmatpush1.xpose.msra.mxu0 0.0
  %1058 = vmatprep.subr.mxu0 0.0
  %1059 = vmatpush1.xpose.msra.mxu0 0.0
  %1060 = vmatprep.subr.mxu0 0.0
  %1061 = vmatpush1.xpose.msra.mxu0 0.0
  %1062 = vmatprep.subr.mxu0 0.0
  %1063 = vmatpush1.xpose.msra.mxu0 0.0
  %1064 = vmatprep.subr.mxu0 0.0
  %1065 = vmatpush1.xpose.msra.mxu0 0.0
  %1066 = vmatprep.subr.mxu0 0.0
  %1067 = vmatpush1.xpose.msra.mxu0 0.0
  %1068 = vmatprep.subr.mxu0 0.0
  %1069 = vmatpush1.xpose.msra.mxu0 0.0
  %1070 = vmatprep.subr.mxu0 0.0
  %1071 = vmatpush1.xpose.msra.mxu0 0.0
  %1072 = vmatprep.subr.mxu0 0.0
  %1073 = vmatpush1.xpose.msra.mxu0 0.0
  %1074 = vmatprep.subr.mxu0 0.0
  %1075 = vmatpush1.xpose.msra.mxu0 0.0
  %1076 = vmatprep.subr.mxu0 0.0
  %1077 = vmatpush1.xpose.msra.mxu0 0.0
  %1078 = vmatprep.subr.mxu0 0.0
  %1079 = vmatpush1.xpose.msra.mxu0 0.0
  %1080 = vmatprep.mubr.f32.mxu0 0.0
  %1081 = vmatmul.mubr.f32.gmra.mrb[0].mxu0 %v1011
  %v1082 = vpop.f32.mrb[0].mxu0
  %v1083 = vadd.f32 0.0, %v1082
  %v1084 = vpop.f32.mrb[0].mxu0
  %1085 = vdwg.mxu0
  %v1087 = vsel %vm77, %v354, 0
  %v1090 = vsel %vm77, %v628, 0
  %1092 = vmatprep.subr.mxu0 0.0
  %1093 = vmatpush1.xpose.msra.mxu0 %v1090
  %1094 = vmatprep.subr.mxu0 0.0
  %1095 = vmatpush1.xpose.msra.mxu0 0.0
  %1096 = vmatprep.subr.mxu0 0.0
  %1097 = vmatpush1.xpose.msra.mxu0 0.0
  %1098 = vmatprep.subr.mxu0 0.0
  %1099 = vmatpush1.xpose.msra.mxu0 0.0
  %1100 = vmatprep.subr.mxu0 0.0
  %1101 = vmatpush1.xpose.msra.mxu0 0.0
  %1102 = vmatprep.subr.mxu0 0.0
  %1103 = vmatpush1.xpose.msra.mxu0 0.0
  %1104 = vmatprep.subr.mxu0 0.0
  %1105 = vmatpush1.xpose.msra.mxu0 0.0
  %1106 = vmatprep.subr.mxu0 0.0
  %1107 = vmatpush1.xpose.msra.mxu0 0.0
  %1108 = vmatprep.subr.mxu0 0.0
  %1109 = vmatpush1.xpose.msra.mxu0 0.0
  %1110 = vmatprep.subr.mxu0 0.0
  %1111 = vmatpush1.xpose.msra.mxu0 0.0
  %1112 = vmatprep.subr.mxu0 0.0
  %1113 = vmatpush1.xpose.msra.mxu0 0.0
  %1114 = vmatprep.subr.mxu0 0.0
  %1115 = vmatpush1.xpose.msra.mxu0 0.0
  %1116 = vmatprep.subr.mxu0 0.0
  %1117 = vmatpush1.xpose.msra.mxu0 0.0
  %1118 = vmatprep.subr.mxu0 0.0
  %1119 = vmatpush1.xpose.msra.mxu0 0.0
  %1120 = vmatprep.subr.mxu0 0.0
  %1121 = vmatpush1.xpose.msra.mxu0 0.0
  %1122 = vmatprep.subr.mxu0 0.0
  %1123 = vmatpush1.xpose.msra.mxu0 0.0
  %1124 = vmatprep.subr.mxu0 0.0
  %1125 = vmatpush1.xpose.msra.mxu0 0.0
  %1126 = vmatprep.subr.mxu0 0.0
  %1127 = vmatpush1.xpose.msra.mxu0 0.0
  %1128 = vmatprep.subr.mxu0 0.0
  %1129 = vmatpush1.xpose.msra.mxu0 0.0
  %1130 = vmatprep.subr.mxu0 0.0
  %1131 = vmatpush1.xpose.msra.mxu0 0.0
  %1132 = vmatprep.subr.mxu0 0.0
  %1133 = vmatpush1.xpose.msra.mxu0 0.0
  %1134 = vmatprep.subr.mxu0 0.0
  %1135 = vmatpush1.xpose.msra.mxu0 0.0
  %1136 = vmatprep.subr.mxu0 0.0
  %1137 = vmatpush1.xpose.msra.mxu0 0.0
  %1138 = vmatprep.subr.mxu0 0.0
  %1139 = vmatpush1.xpose.msra.mxu0 0.0
  %1140 = vmatprep.subr.mxu0 0.0
  %1141 = vmatpush1.xpose.msra.mxu0 0.0
  %1142 = vmatprep.subr.mxu0 0.0
  %1143 = vmatpush1.xpose.msra.mxu0 0.0
  %1144 = vmatprep.subr.mxu0 0.0
  %1145 = vmatpush1.xpose.msra.mxu0 0.0
  %1146 = vmatprep.subr.mxu0 0.0
  %1147 = vmatpush1.xpose.msra.mxu0 0.0
  %1148 = vmatprep.subr.mxu0 0.0
  %1149 = vmatpush1.xpose.msra.mxu0 0.0
  %1150 = vmatprep.subr.mxu0 0.0
  %1151 = vmatpush1.xpose.msra.mxu0 0.0
  %1152 = vmatprep.subr.mxu0 0.0
  %1153 = vmatpush1.xpose.msra.mxu0 0.0
  %1154 = vmatprep.subr.mxu0 0.0
  %1155 = vmatpush1.xpose.msra.mxu0 0.0
  %1156 = vmatprep.mubr.f32.mxu0 0.0
  %1157 = vmatmul.mubr.f32.gmra.mrb[0].mxu0 %v1087
  %v1158 = vpop.f32.mrb[0].mxu0
  %v1159 = vadd.f32 0.0, %v1158
  %v1160 = vpop.f32.mrb[0].mxu0
  %1161 = vdwg.mxu0
  %v1163 = vsel %vm77, %v355, 0
  %v1166 = vsel %vm77, %v629, 0
  %1168 = vmatprep.subr.mxu0 0.0
  %1169 = vmatpush1.xpose.msra.mxu0 %v1166
  %1170 = vmatprep.subr.mxu0 0.0
  %1171 = vmatpush1.xpose.msra.mxu0 0.0
  %1172 = vmatprep.subr.mxu0 0.0
  %1173 = vmatpush1.xpose.msra.mxu0 0.0
  %1174 = vmatprep.subr.mxu0 0.0
  %1175 = vmatpush1.xpose.msra.mxu0 0.0
  %1176 = vmatprep.subr.mxu0 0.0
  %1177 = vmatpush1.xpose.msra.mxu0 0.0
  %1178 = vmatprep.subr.mxu0 0.0
  %1179 = vmatpush1.xpose.msra.mxu0 0.0
  %1180 = vmatprep.subr.mxu0 0.0
  %1181 = vmatpush1.xpose.msra.mxu0 0.0
  %1182 = vmatprep.subr.mxu0 0.0
  %1183 = vmatpush1.xpose.msra.mxu0 0.0
  %1184 = vmatprep.subr.mxu0 0.0
  %1185 = vmatpush1.xpose.msra.mxu0 0.0
  %1186 = vmatprep.subr.mxu0 0.0
  %1187 = vmatpush1.xpose.msra.mxu0 0.0
  %1188 = vmatprep.subr.mxu0 0.0
  %1189 = vmatpush1.xpose.msra.mxu0 0.0
  %1190 = vmatprep.subr.mxu0 0.0
  %1191 = vmatpush1.xpose.msra.mxu0 0.0
  %1192 = vmatprep.subr.mxu0 0.0
  %1193 = vmatpush1.xpose.msra.mxu0 0.0
  %1194 = vmatprep.subr.mxu0 0.0
  %1195 = vmatpush1.xpose.msra.mxu0 0.0
  %1196 = vmatprep.subr.mxu0 0.0
  %1197 = vmatpush1.xpose.msra.mxu0 0.0
  %1198 = vmatprep.subr.mxu0 0.0
  %1199 = vmatpush1.xpose.msra.mxu0 0.0
  %1200 = vmatprep.subr.mxu0 0.0
  %1201 = vmatpush1.xpose.msra.mxu0 0.0
  %1202 = vmatprep.subr.mxu0 0.0
  %1203 = vmatpush1.xpose.msra.mxu0 0.0
  %1204 = vmatprep.subr.mxu0 0.0
  %1205 = vmatpush1.xpose.msra.mxu0 0.0
  %1206 = vmatprep.subr.mxu0 0.0
  %1207 = vmatpush1.xpose.msra.mxu0 0.0
  %1208 = vmatprep.subr.mxu0 0.0
  %1209 = vmatpush1.xpose.msra.mxu0 0.0
  %1210 = vmatprep.subr.mxu0 0.0
  %1211 = vmatpush1.xpose.msra.mxu0 0.0
  %1212 = vmatprep.subr.mxu0 0.0
  %1213 = vmatpush1.xpose.msra.mxu0 0.0
  %1214 = vmatprep.subr.mxu0 0.0
  %1215 = vmatpush1.xpose.msra.mxu0 0.0
  %1216 = vmatprep.subr.mxu0 0.0
  %1217 = vmatpush1.xpose.msra.mxu0 0.0
  %1218 = vmatprep.subr.mxu0 0.0
  %1219 = vmatpush1.xpose.msra.mxu0 0.0
  %1220 = vmatprep.subr.mxu0 0.0
  %1221 = vmatpush1.xpose.msra.mxu0 0.0
  %1222 = vmatprep.subr.mxu0 0.0
  %1223 = vmatpush1.xpose.msra.mxu0 0.0
  %1224 = vmatprep.subr.mxu0 0.0
  %1225 = vmatpush1.xpose.msra.mxu0 0.0
  %1226 = vmatprep.subr.mxu0 0.0
  %1227 = vmatpush1.xpose.msra.mxu0 0.0
  %1228 = vmatprep.subr.mxu0 0.0
  %1229 = vmatpush1.xpose.msra.mxu0 0.0
  %1230 = vmatprep.subr.mxu0 0.0
  %1231 = vmatpush1.xpose.msra.mxu0 0.0
  %1232 = vmatprep.mubr.f32.mxu0 0.0
  %1233 = vmatmul.mubr.f32.gmra.mrb[0].mxu0 %v1163
  %v1234 = vpop.f32.mrb[0].mxu0
  %v1235 = vadd.f32 0.0, %v1234
  %v1236 = vpop.f32.mrb[0].mxu0
  %1237 = vdwg.mxu0
  %1238 = vmatprep.subr.mxu0 0.0
  %1239 = vmatpush1.xpose.msra.mxu0 %v631
  %1240 = vmatprep.subr.mxu0 0.0
  %1241 = vmatpush1.xpose.msra.mxu0 0.0
  %1242 = vmatprep.subr.mxu0 0.0
  %1243 = vmatpush1.xpose.msra.mxu0 0.0
  %1244 = vmatprep.subr.mxu0 0.0
  %1245 = vmatpush1.xpose.msra.mxu0 0.0
  %1246 = vmatprep.subr.mxu0 0.0
  %1247 = vmatpush1.xpose.msra.mxu0 0.0
  %1248 = vmatprep.subr.mxu0 0.0
  %1249 = vmatpush1.xpose.msra.mxu0 0.0
  %1250 = vmatprep.subr.mxu0 0.0
  %1251 = vmatpush1.xpose.msra.mxu0 0.0
  %1252 = vmatprep.subr.mxu0 0.0
  %1253 = vmatpush1.xpose.msra.mxu0 0.0
  %1254 = vmatprep.subr.mxu0 0.0
  %1255 = vmatpush1.xpose.msra.mxu0 0.0
  %1256 = vmatprep.subr.mxu0 0.0
  %1257 = vmatpush1.xpose.msra.mxu0 0.0
  %1258 = vmatprep.subr.mxu0 0.0
  %1259 = vmatpush1.xpose.msra.mxu0 0.0
  %1260 = vmatprep.subr.mxu0 0.0
  %1261 = vmatpush1.xpose.msra.mxu0 0.0
  %1262 = vmatprep.subr.mxu0 0.0
  %1263 = vmatpush1.xpose.msra.mxu0 0.0
  %1264 = vmatprep.subr.mxu0 0.0
  %1265 = vmatpush1.xpose.msra.mxu0 0.0
  %1266 = vmatprep.subr.mxu0 0.0
  %1267 = vmatpush1.xpose.msra.mxu0 0.0
  %1268 = vmatprep.subr.mxu0 0.0
  %1269 = vmatpush1.xpose.msra.mxu0 0.0
  %1270 = vmatprep.subr.mxu0 0.0
  %1271 = vmatpush1.xpose.msra.mxu0 0.0
  %1272 = vmatprep.subr.mxu0 0.0
  %1273 = vmatpush1.xpose.msra.mxu0 0.0
  %1274 = vmatprep.subr.mxu0 0.0
  %1275 = vmatpush1.xpose.msra.mxu0 0.0
  %1276 = vmatprep.subr.mxu0 0.0
  %1277 = vmatpush1.xpose.msra.mxu0 0.0
  %1278 = vmatprep.subr.mxu0 0.0
  %1279 = vmatpush1.xpose.msra.mxu0 0.0
  %1280 = vmatprep.subr.mxu0 0.0
  %1281 = vmatpush1.xpose.msra.mxu0 0.0
  %1282 = vmatprep.subr.mxu0 0.0
  %1283 = vmatpush1.xpose.msra.mxu0 0.0
  %1284 = vmatprep.subr.mxu0 0.0
  %1285 = vmatpush1.xpose.msra.mxu0 0.0
  %1286 = vmatprep.subr.mxu0 0.0
  %1287 = vmatpush1.xpose.msra.mxu0 0.0
  %1288 = vmatprep.subr.mxu0 0.0
  %1289 = vmatpush1.xpose.msra.mxu0 0.0
  %1290 = vmatprep.subr.mxu0 0.0
  %1291 = vmatpush1.xpose.msra.mxu0 0.0
  %1292 = vmatprep.subr.mxu0 0.0
  %1293 = vmatpush1.xpose.msra.mxu0 0.0
  %1294 = vmatprep.subr.mxu0 0.0
  %1295 = vmatpush1.xpose.msra.mxu0 0.0
  %1296 = vmatprep.subr.mxu0 0.0
  %1297 = vmatpush1.xpose.msra.mxu0 0.0
  %1298 = vmatprep.subr.mxu0 0.0
  %1299 = vmatpush1.xpose.msra.mxu0 0.0
  %1300 = vmatprep.subr.mxu0 0.0
  %1301 = vmatpush1.xpose.msra.mxu0 0.0
  %1302 = vmatprep.mubr.f32.mxu0 0.0
  %1303 = vmatmul.mubr.f32.gmra.mrb[0].mxu0 %v634
  %v1304 = vpop.f32.mrb[0].mxu0
  %v1305 = vadd.f32 0.0, %v1304
  %v1306 = vpop.f32.mrb[0].mxu0
  %1307 = vdwg.mxu0
  %1308 = vmatprep.subr.mxu0 0.0
  %1309 = vmatpush1.xpose.msra.mxu0 %v707
  %1310 = vmatprep.subr.mxu0 0.0
  %1311 = vmatpush1.xpose.msra.mxu0 0.0
  %1312 = vmatprep.subr.mxu0 0.0
  %1313 = vmatpush1.xpose.msra.mxu0 0.0
  %1314 = vmatprep.subr.mxu0 0.0
  %1315 = vmatpush1.xpose.msra.mxu0 0.0
  %1316 = vmatprep.subr.mxu0 0.0
  %1317 = vmatpush1.xpose.msra.mxu0 0.0
  %1318 = vmatprep.subr.mxu0 0.0
  %1319 = vmatpush1.xpose.msra.mxu0 0.0
  %1320 = vmatprep.subr.mxu0 0.0
  %1321 = vmatpush1.xpose.msra.mxu0 0.0
  %1322 = vmatprep.subr.mxu0 0.0
  %1323 = vmatpush1.xpose.msra.mxu0 0.0
  %1324 = vmatprep.subr.mxu0 0.0
  %1325 = vmatpush1.xpose.msra.mxu0 0.0
  %1326 = vmatprep.subr.mxu0 0.0
  %1327 = vmatpush1.xpose.msra.mxu0 0.0
  %1328 = vmatprep.subr.mxu0 0.0
  %1329 = vmatpush1.xpose.msra.mxu0 0.0
  %1330 = vmatprep.subr.mxu0 0.0
  %1331 = vmatpush1.xpose.msra.mxu0 0.0
  %1332 = vmatprep.subr.mxu0 0.0
  %1333 = vmatpush1.xpose.msra.mxu0 0.0
  %1334 = vmatprep.subr.mxu0 0.0
  %1335 = vmatpush1.xpose.msra.mxu0 0.0
  %1336 = vmatprep.subr.mxu0 0.0
  %1337 = vmatpush1.xpose.msra.mxu0 0.0
  %1338 = vmatprep.subr.mxu0 0.0
  %1339 = vmatpush1.xpose.msra.mxu0 0.0
  %1340 = vmatprep.subr.mxu0 0.0
  %1341 = vmatpush1.xpose.msra.mxu0 0.0
  %1342 = vmatprep.subr.mxu0 0.0
  %1343 = vmatpush1.xpose.msra.mxu0 0.0
  %1344 = vmatprep.subr.mxu0 0.0
  %1345 = vmatpush1.xpose.msra.mxu0 0.0
  %1346 = vmatprep.subr.mxu0 0.0
  %1347 = vmatpush1.xpose.msra.mxu0 0.0
  %1348 = vmatprep.subr.mxu0 0.0
  %1349 = vmatpush1.xpose.msra.mxu0 0.0
  %1350 = vmatprep.subr.mxu0 0.0
  %1351 = vmatpush1.xpose.msra.mxu0 0.0
  %1352 = vmatprep.subr.mxu0 0.0
  %1353 = vmatpush1.xpose.msra.mxu0 0.0
  %1354 = vmatprep.subr.mxu0 0.0
  %1355 = vmatpush1.xpose.msra.mxu0 0.0
  %1356 = vmatprep.subr.mxu0 0.0
  %1357 = vmatpush1.xpose.msra.mxu0 0.0
  %1358 = vmatprep.subr.mxu0 0.0
  %1359 = vmatpush1.xpose.msra.mxu0 0.0
  %1360 = vmatprep.subr.mxu0 0.0
  %1361 = vmatpush1.xpose.msra.mxu0 0.0
  %1362 = vmatprep.subr.mxu0 0.0
  %1363 = vmatpush1.xpose.msra.mxu0 0.0
  %1364 = vmatprep.subr.mxu0 0.0
  %1365 = vmatpush1.xpose.msra.mxu0 0.0
  %1366 = vmatprep.subr.mxu0 0.0
  %1367 = vmatpush1.xpose.msra.mxu0 0.0
  %1368 = vmatprep.subr.mxu0 0.0
  %1369 = vmatpush1.xpose.msra.mxu0 0.0
  %1370 = vmatprep.subr.mxu0 0.0
  %1371 = vmatpush1.xpose.msra.mxu0 0.0
  %1372 = vmatprep.mubr.f32.mxu0 0.0
  %1373 = vmatmul.mubr.f32.gmra.mrb[0].mxu0 %v710
  %v1374 = vpop.f32.mrb[0].mxu0
  %v1375 = vadd.f32 0.0, %v1374
  %v1376 = vpop.f32.mrb[0].mxu0
  %1377 = vdwg.mxu0
  %1378 = vmatprep.subr.mxu0 0.0
  %1379 = vmatpush1.xpose.msra.mxu0 %v783
  %1380 = vmatprep.subr.mxu0 0.0
  %1381 = vmatpush1.xpose.msra.mxu0 0.0
  %1382 = vmatprep.subr.mxu0 0.0
  %1383 = vmatpush1.xpose.msra.mxu0 0.0
  %1384 = vmatprep.subr.mxu0 0.0
  %1385 = vmatpush1.xpose.msra.mxu0 0.0
  %1386 = vmatprep.subr.mxu0 0.0
  %1387 = vmatpush1.xpose.msra.mxu0 0.0
  %1388 = vmatprep.subr.mxu0 0.0
  %1389 = vmatpush1.xpose.msra.mxu0 0.0
  %1390 = vmatprep.subr.mxu0 0.0
  %1391 = vmatpush1.xpose.msra.mxu0 0.0
  %1392 = vmatprep.subr.mxu0 0.0
  %1393 = vmatpush1.xpose.msra.mxu0 0.0
  %1394 = vmatprep.subr.mxu0 0.0
  %1395 = vmatpush1.xpose.msra.mxu0 0.0
  %1396 = vmatprep.subr.mxu0 0.0
  %1397 = vmatpush1.xpose.msra.mxu0 0.0
  %1398 = vmatprep.subr.mxu0 0.0
  %1399 = vmatpush1.xpose.msra.mxu0 0.0
  %1400 = vmatprep.subr.mxu0 0.0
  %1401 = vmatpush1.xpose.msra.mxu0 0.0
  %1402 = vmatprep.subr.mxu0 0.0
  %1403 = vmatpush1.xpose.msra.mxu0 0.0
  %1404 = vmatprep.subr.mxu0 0.0
  %1405 = vmatpush1.xpose.msra.mxu0 0.0
  %1406 = vmatprep.subr.mxu0 0.0
  %1407 = vmatpush1.xpose.msra.mxu0 0.0
  %1408 = vmatprep.subr.mxu0 0.0
  %1409 = vmatpush1.xpose.msra.mxu0 0.0
  %1410 = vmatprep.subr.mxu0 0.0
  %1411 = vmatpush1.xpose.msra.mxu0 0.0
  %1412 = vmatprep.subr.mxu0 0.0
  %1413 = vmatpush1.xpose.msra.mxu0 0.0
  %1414 = vmatprep.subr.mxu0 0.0
  %1415 = vmatpush1.xpose.msra.mxu0 0.0
  %1416 = vmatprep.subr.mxu0 0.0
  %1417 = vmatpush1.xpose.msra.mxu0 0.0
  %1418 = vmatprep.subr.mxu0 0.0
  %1419 = vmatpush1.xpose.msra.mxu0 0.0
  %1420 = vmatprep.subr.mxu0 0.0
  %1421 = vmatpush1.xpose.msra.mxu0 0.0
  %1422 = vmatprep.subr.mxu0 0.0
  %1423 = vmatpush1.xpose.msra.mxu0 0.0
  %1424 = vmatprep.subr.mxu0 0.0
  %1425 = vmatpush1.xpose.msra.mxu0 0.0
  %1426 = vmatprep.subr.mxu0 0.0
  %1427 = vmatpush1.xpose.msra.mxu0 0.0
  %1428 = vmatprep.subr.mxu0 0.0
  %1429 = vmatpush1.xpose.msra.mxu0 0.0
  %1430 = vmatprep.subr.mxu0 0.0
  %1431 = vmatpush1.xpose.msra.mxu0 0.0
  %1432 = vmatprep.subr.mxu0 0.0
  %1433 = vmatpush1.xpose.msra.mxu0 0.0
  %1434 = vmatprep.subr.mxu0 0.0
  %1435 = vmatpush1.xpose.msra.mxu0 0.0
  %1436 = vmatprep.subr.mxu0 0.0
  %1437 = vmatpush1.xpose.msra.mxu0 0.0
  %1438 = vmatprep.subr.mxu0 0.0
  %1439 = vmatpush1.xpose.msra.mxu0 0.0
  %1440 = vmatprep.subr.mxu0 0.0
  %1441 = vmatpush1.xpose.msra.mxu0 0.0
  %1442 = vmatprep.mubr.f32.mxu0 0.0
  %1443 = vmatmul.mubr.f32.gmra.mrb[0].mxu0 %v786
  %v1444 = vpop.f32.mrb[0].mxu0
  %v1445 = vadd.f32 0.0, %v1444
  %v1446 = vpop.f32.mrb[0].mxu0
  %1447 = vdwg.mxu0
  %1448 = vmatprep.subr.mxu0 0.0
  %1449 = vmatpush1.xpose.msra.mxu0 %v859
  %1450 = vmatprep.subr.mxu0 0.0
  %1451 = vmatpush1.xpose.msra.mxu0 0.0
  %1452 = vmatprep.subr.mxu0 0.0
  %1453 = vmatpush1.xpose.msra.mxu0 0.0
  %1454 = vmatprep.subr.mxu0 0.0
  %1455 = vmatpush1.xpose.msra.mxu0 0.0
  %1456 = vmatprep.subr.mxu0 0.0
  %1457 = vmatpush1.xpose.msra.mxu0 0.0
  %1458 = vmatprep.subr.mxu0 0.0
  %1459 = vmatpush1.xpose.msra.mxu0 0.0
  %1460 = vmatprep.subr.mxu0 0.0
  %1461 = vmatpush1.xpose.msra.mxu0 0.0
  %1462 = vmatprep.subr.mxu0 0.0
  %1463 = vmatpush1.xpose.msra.mxu0 0.0
  %1464 = vmatprep.subr.mxu0 0.0
  %1465 = vmatpush1.xpose.msra.mxu0 0.0
  %1466 = vmatprep.subr.mxu0 0.0
  %1467 = vmatpush1.xpose.msra.mxu0 0.0
  %1468 = vmatprep.subr.mxu0 0.0
  %1469 = vmatpush1.xpose.msra.mxu0 0.0
  %1470 = vmatprep.subr.mxu0 0.0
  %1471 = vmatpush1.xpose.msra.mxu0 0.0
  %1472 = vmatprep.subr.mxu0 0.0
  %1473 = vmatpush1.xpose.msra.mxu0 0.0
  %1474 = vmatprep.subr.mxu0 0.0
  %1475 = vmatpush1.xpose.msra.mxu0 0.0
  %1476 = vmatprep.subr.mxu0 0.0
  %1477 = vmatpush1.xpose.msra.mxu0 0.0
  %1478 = vmatprep.subr.mxu0 0.0
  %1479 = vmatpush1.xpose.msra.mxu0 0.0
  %1480 = vmatprep.subr.mxu0 0.0
  %1481 = vmatpush1.xpose.msra.mxu0 0.0
  %1482 = vmatprep.subr.mxu0 0.0
  %1483 = vmatpush1.xpose.msra.mxu0 0.0
  %1484 = vmatprep.subr.mxu0 0.0
  %1485 = vmatpush1.xpose.msra.mxu0 0.0
  %1486 = vmatprep.subr.mxu0 0.0
  %1487 = vmatpush1.xpose.msra.mxu0 0.0
  %1488 = vmatprep.subr.mxu0 0.0
  %1489 = vmatpush1.xpose.msra.mxu0 0.0
  %1490 = vmatprep.subr.mxu0 0.0
  %1491 = vmatpush1.xpose.msra.mxu0 0.0
  %1492 = vmatprep.subr.mxu0 0.0
  %1493 = vmatpush1.xpose.msra.mxu0 0.0
  %1494 = vmatprep.subr.mxu0 0.0
  %1495 = vmatpush1.xpose.msra.mxu0 0.0
  %1496 = vmatprep.subr.mxu0 0.0
  %1497 = vmatpush1.xpose.msra.mxu0 0.0
  %1498 = vmatprep.subr.mxu0 0.0
  %1499 = vmatpush1.xpose.msra.mxu0 0.0
  %1500 = vmatprep.subr.mxu0 0.0
  %1501 = vmatpush1.xpose.msra.mxu0 0.0
  %1502 = vmatprep.subr.mxu0 0.0
  %1503 = vmatpush1.xpose.msra.mxu0 0.0
  %1504 = vmatprep.subr.mxu0 0.0
  %1505 = vmatpush1.xpose.msra.mxu0 0.0
  %1506 = vmatprep.subr.mxu0 0.0
  %1507 = vmatpush1.xpose.msra.mxu0 0.0
  %1508 = vmatprep.subr.mxu0 0.0
  %1509 = vmatpush1.xpose.msra.mxu0 0.0
  %1510 = vmatprep.subr.mxu0 0.0
  %1511 = vmatpush1.xpose.msra.mxu0 0.0
  %1512 = vmatprep.mubr.f32.mxu0 0.0
  %1513 = vmatmul.mubr.f32.gmra.mrb[0].mxu0 %v862
  %v1514 = vpop.f32.mrb[0].mxu0
  %v1515 = vadd.f32 0.0, %v1514
  %v1516 = vpop.f32.mrb[0].mxu0
  %1517 = vdwg.mxu0
  %1518 = vmatprep.subr.mxu0 0.0
  %1519 = vmatpush1.xpose.msra.mxu0 %v935
  %1520 = vmatprep.subr.mxu0 0.0
  %1521 = vmatpush1.xpose.msra.mxu0 0.0
  %1522 = vmatprep.subr.mxu0 0.0
  %1523 = vmatpush1.xpose.msra.mxu0 0.0
  %1524 = vmatprep.subr.mxu0 0.0
  %1525 = vmatpush1.xpose.msra.mxu0 0.0
  %1526 = vmatprep.subr.mxu0 0.0
  %1527 = vmatpush1.xpose.msra.mxu0 0.0
  %1528 = vmatprep.subr.mxu0 0.0
  %1529 = vmatpush1.xpose.msra.mxu0 0.0
  %1530 = vmatprep.subr.mxu0 0.0
  %1531 = vmatpush1.xpose.msra.mxu0 0.0
  %1532 = vmatprep.subr.mxu0 0.0
  %1533 = vmatpush1.xpose.msra.mxu0 0.0
  %1534 = vmatprep.subr.mxu0 0.0
  %1535 = vmatpush1.xpose.msra.mxu0 0.0
  %1536 = vmatprep.subr.mxu0 0.0
  %1537 = vmatpush1.xpose.msra.mxu0 0.0
  %1538 = vmatprep.subr.mxu0 0.0
  %1539 = vmatpush1.xpose.msra.mxu0 0.0
  %1540 = vmatprep.subr.mxu0 0.0
  %1541 = vmatpush1.xpose.msra.mxu0 0.0
  %1542 = vmatprep.subr.mxu0 0.0
  %1543 = vmatpush1.xpose.msra.mxu0 0.0
  %1544 = vmatprep.subr.mxu0 0.0
  %1545 = vmatpush1.xpose.msra.mxu0 0.0
  %1546 = vmatprep.subr.mxu0 0.0
  %1547 = vmatpush1.xpose.msra.mxu0 0.0
  %1548 = vmatprep.subr.mxu0 0.0
  %1549 = vmatpush1.xpose.msra.mxu0 0.0
  %1550 = vmatprep.subr.mxu0 0.0
  %1551 = vmatpush1.xpose.msra.mxu0 0.0
  %1552 = vmatprep.subr.mxu0 0.0
  %1553 = vmatpush1.xpose.msra.mxu0 0.0
  %1554 = vmatprep.subr.mxu0 0.0
  %1555 = vmatpush1.xpose.msra.mxu0 0.0
  %1556 = vmatprep.subr.mxu0 0.0
  %1557 = vmatpush1.xpose.msra.mxu0 0.0
  %1558 = vmatprep.subr.mxu0 0.0
  %1559 = vmatpush1.xpose.msra.mxu0 0.0
  %1560 = vmatprep.subr.mxu0 0.0
  %1561 = vmatpush1.xpose.msra.mxu0 0.0
  %1562 = vmatprep.subr.mxu0 0.0
  %1563 = vmatpush1.xpose.msra.mxu0 0.0
  %1564 = vmatprep.subr.mxu0 0.0
  %1565 = vmatpush1.xpose.msra.mxu0 0.0
  %1566 = vmatprep.subr.mxu0 0.0
  %1567 = vmatpush1.xpose.msra.mxu0 0.0
  %1568 = vmatprep.subr.mxu0 0.0
  %1569 = vmatpush1.xpose.msra.mxu0 0.0
  %1570 = vmatprep.subr.mxu0 0.0
  %1571 = vmatpush1.xpose.msra.mxu0 0.0
  %1572 = vmatprep.subr.mxu0 0.0
  %1573 = vmatpush1.xpose.msra.mxu0 0.0
  %1574 = vmatprep.subr.mxu0 0.0
  %1575 = vmatpush1.xpose.msra.mxu0 0.0
  %1576 = vmatprep.subr.mxu0 0.0
  %1577 = vmatpush1.xpose.msra.mxu0 0.0
  %1578 = vmatprep.subr.mxu0 0.0
  %1579 = vmatpush1.xpose.msra.mxu0 0.0
  %1580 = vmatprep.subr.mxu0 0.0
  %1581 = vmatpush1.xpose.msra.mxu0 0.0
  %1582 = vmatprep.mubr.f32.mxu0 0.0
  %1583 = vmatmul.mubr.f32.gmra.mrb[0].mxu0 %v938
  %v1584 = vpop.f32.mrb[0].mxu0
  %v1585 = vadd.f32 0.0, %v1584
  %v1586 = vpop.f32.mrb[0].mxu0
  %1587 = vdwg.mxu0
  %1588 = vmatprep.subr.mxu0 0.0
  %1589 = vmatpush1.xpose.msra.mxu0 %v1011
  %1590 = vmatprep.subr.mxu0 0.0
  %1591 = vmatpush1.xpose.msra.mxu0 0.0
  %1592 = vmatprep.subr.mxu0 0.0
  %1593 = vmatpush1.xpose.msra.mxu0 0.0
  %1594 = vmatprep.subr.mxu0 0.0
  %1595 = vmatpush1.xpose.msra.mxu0 0.0
  %1596 = vmatprep.subr.mxu0 0.0
  %1597 = vmatpush1.xpose.msra.mxu0 0.0
  %1598 = vmatprep.subr.mxu0 0.0
  %1599 = vmatpush1.xpose.msra.mxu0 0.0
  %1600 = vmatprep.subr.mxu0 0.0
  %1601 = vmatpush1.xpose.msra.mxu0 0.0
  %1602 = vmatprep.subr.mxu0 0.0
  %1603 = vmatpush1.xpose.msra.mxu0 0.0
  %1604 = vmatprep.subr.mxu0 0.0
  %1605 = vmatpush1.xpose.msra.mxu0 0.0
  %1606 = vmatprep.subr.mxu0 0.0
  %1607 = vmatpush1.xpose.msra.mxu0 0.0
  %1608 = vmatprep.subr.mxu0 0.0
  %1609 = vmatpush1.xpose.msra.mxu0 0.0
  %1610 = vmatprep.subr.mxu0 0.0
  %1611 = vmatpush1.xpose.msra.mxu0 0.0
  %1612 = vmatprep.subr.mxu0 0.0
  %1613 = vmatpush1.xpose.msra.mxu0 0.0
  %1614 = vmatprep.subr.mxu0 0.0
  %1615 = vmatpush1.xpose.msra.mxu0 0.0
  %1616 = vmatprep.subr.mxu0 0.0
  %1617 = vmatpush1.xpose.msra.mxu0 0.0
  %1618 = vmatprep.subr.mxu0 0.0
  %1619 = vmatpush1.xpose.msra.mxu0 0.0
  %1620 = vmatprep.subr.mxu0 0.0
  %1621 = vmatpush1.xpose.msra.mxu0 0.0
  %1622 = vmatprep.subr.mxu0 0.0
  %1623 = vmatpush1.xpose.msra.mxu0 0.0
  %1624 = vmatprep.subr.mxu0 0.0
  %1625 = vmatpush1.xpose.msra.mxu0 0.0
  %1626 = vmatprep.subr.mxu0 0.0
  %1627 = vmatpush1.xpose.msra.mxu0 0.0
  %1628 = vmatprep.subr.mxu0 0.0
  %1629 = vmatpush1.xpose.msra.mxu0 0.0
  %1630 = vmatprep.subr.mxu0 0.0
  %1631 = vmatpush1.xpose.msra.mxu0 0.0
  %1632 = vmatprep.subr.mxu0 0.0
  %1633 = vmatpush1.xpose.msra.mxu0 0.0
  %1634 = vmatprep.subr.mxu0 0.0
  %1635 = vmatpush1.xpose.msra.mxu0 0.0
  %1636 = vmatprep.subr.mxu0 0.0
  %1637 = vmatpush1.xpose.msra.mxu0 0.0
  %1638 = vmatprep.subr.mxu0 0.0
  %1639 = vmatpush1.xpose.msra.mxu0 0.0
  %1640 = vmatprep.subr.mxu0 0.0
  %1641 = vmatpush1.xpose.msra.mxu0 0.0
  %1642 = vmatprep.subr.mxu0 0.0
  %1643 = vmatpush1.xpose.msra.mxu0 0.0
  %1644 = vmatprep.subr.mxu0 0.0
  %1645 = vmatpush1.xpose.msra.mxu0 0.0
  %1646 = vmatprep.subr.mxu0 0.0
  %1647 = vmatpush1.xpose.msra.mxu0 0.0
  %1648 = vmatprep.subr.mxu0 0.0
  %1649 = vmatpush1.xpose.msra.mxu0 0.0
  %1650 = vmatprep.subr.mxu0 0.0
  %1651 = vmatpush1.xpose.msra.mxu0 0.0
  %1652 = vmatprep.mubr.f32.mxu0 0.0
  %1653 = vmatmul.mubr.f32.gmra.mrb[0].mxu0 %v1014
  %v1654 = vpop.f32.mrb[0].mxu0
  %v1655 = vadd.f32 0.0, %v1654
  %v1656 = vpop.f32.mrb[0].mxu0
  %1657 = vdwg.mxu0
  %1658 = vmatprep.subr.mxu0 0.0
  %1659 = vmatpush1.xpose.msra.mxu0 %v1087
  %1660 = vmatprep.subr.mxu0 0.0
  %1661 = vmatpush1.xpose.msra.mxu0 0.0
  %1662 = vmatprep.subr.mxu0 0.0
  %1663 = vmatpush1.xpose.msra.mxu0 0.0
  %1664 = vmatprep.subr.mxu0 0.0
  %1665 = vmatpush1.xpose.msra.mxu0 0.0
  %1666 = vmatprep.subr.mxu0 0.0
  %1667 = vmatpush1.xpose.msra.mxu0 0.0
  %1668 = vmatprep.subr.mxu0 0.0
  %1669 = vmatpush1.xpose.msra.mxu0 0.0
  %1670 = vmatprep.subr.mxu0 0.0
  %1671 = vmatpush1.xpose.msra.mxu0 0.0
  %1672 = vmatprep.subr.mxu0 0.0
  %1673 = vmatpush1.xpose.msra.mxu0 0.0
  %1674 = vmatprep.subr.mxu0 0.0
  %1675 = vmatpush1.xpose.msra.mxu0 0.0
  %1676 = vmatprep.subr.mxu0 0.0
  %1677 = vmatpush1.xpose.msra.mxu0 0.0
  %1678 = vmatprep.subr.mxu0 0.0
  %1679 = vmatpush1.xpose.msra.mxu0 0.0
  %1680 = vmatprep.subr.mxu0 0.0
  %1681 = vmatpush1.xpose.msra.mxu0 0.0
  %1682 = vmatprep.subr.mxu0 0.0
  %1683 = vmatpush1.xpose.msra.mxu0 0.0
  %1684 = vmatprep.subr.mxu0 0.0
  %1685 = vmatpush1.xpose.msra.mxu0 0.0
  %1686 = vmatprep.subr.mxu0 0.0
  %1687 = vmatpush1.xpose.msra.mxu0 0.0
  %1688 = vmatprep.subr.mxu0 0.0
  %1689 = vmatpush1.xpose.msra.mxu0 0.0
  %1690 = vmatprep.subr.mxu0 0.0
  %1691 = vmatpush1.xpose.msra.mxu0 0.0
  %1692 = vmatprep.subr.mxu0 0.0
  %1693 = vmatpush1.xpose.msra.mxu0 0.0
  %1694 = vmatprep.subr.mxu0 0.0
  %1695 = vmatpush1.xpose.msra.mxu0 0.0
  %1696 = vmatprep.subr.mxu0 0.0
  %1697 = vmatpush1.xpose.msra.mxu0 0.0
  %1698 = vmatprep.subr.mxu0 0.0
  %1699 = vmatpush1.xpose.msra.mxu0 0.0
  %1700 = vmatprep.subr.mxu0 0.0
  %1701 = vmatpush1.xpose.msra.mxu0 0.0
  %1702 = vmatprep.subr.mxu0 0.0
  %1703 = vmatpush1.xpose.msra.mxu0 0.0
  %1704 = vmatprep.subr.mxu0 0.0
  %1705 = vmatpush1.xpose.msra.mxu0 0.0
  %1706 = vmatprep.subr.mxu0 0.0
  %1707 = vmatpush1.xpose.msra.mxu0 0.0
  %1708 = vmatprep.subr.mxu0 0.0
  %1709 = vmatpush1.xpose.msra.mxu0 0.0
  %1710 = vmatprep.subr.mxu0 0.0
  %1711 = vmatpush1.xpose.msra.mxu0 0.0
  %1712 = vmatprep.subr.mxu0 0.0
  %1713 = vmatpush1.xpose.msra.mxu0 0.0
  %1714 = vmatprep.subr.mxu0 0.0
  %1715 = vmatpush1.xpose.msra.mxu0 0.0
  %1716 = vmatprep.subr.mxu0 0.0
  %1717 = vmatpush1.xpose.msra.mxu0 0.0
  %1718 = vmatprep.subr.mxu0 0.0
  %1719 = vmatpush1.xpose.msra.mxu0 0.0
  %1720 = vmatprep.subr.mxu0 0.0
  %1721 = vmatpush1.xpose.msra.mxu0 0.0
  %1722 = vmatprep.mubr.f32.mxu0 0.0
  %1723 = vmatmul.mubr.f32.gmra.mrb[0].mxu0 %v1090
  %v1724 = vpop.f32.mrb[0].mxu0
  %v1725 = vadd.f32 0.0, %v1724
  %v1726 = vpop.f32.mrb[0].mxu0
  %1727 = vdwg.mxu0
  %1728 = vmatprep.subr.mxu0 0.0
  %1729 = vmatpush1.xpose.msra.mxu0 %v1163
  %1730 = vmatprep.subr.mxu0 0.0
  %1731 = vmatpush1.xpose.msra.mxu0 0.0
  %1732 = vmatprep.subr.mxu0 0.0
  %1733 = vmatpush1.xpose.msra.mxu0 0.0
  %1734 = vmatprep.subr.mxu0 0.0
  %1735 = vmatpush1.xpose.msra.mxu0 0.0
  %1736 = vmatprep.subr.mxu0 0.0
  %1737 = vmatpush1.xpose.msra.mxu0 0.0
  %1738 = vmatprep.subr.mxu0 0.0
  %1739 = vmatpush1.xpose.msra.mxu0 0.0
  %1740 = vmatprep.subr.mxu0 0.0
  %1741 = vmatpush1.xpose.msra.mxu0 0.0
  %1742 = vmatprep.subr.mxu0 0.0
  %1743 = vmatpush1.xpose.msra.mxu0 0.0
  %1744 = vmatprep.subr.mxu0 0.0
  %1745 = vmatpush1.xpose.msra.mxu0 0.0
  %1746 = vmatprep.subr.mxu0 0.0
  %1747 = vmatpush1.xpose.msra.mxu0 0.0
  %1748 = vmatprep.subr.mxu0 0.0
  %1749 = vmatpush1.xpose.msra.mxu0 0.0
  %1750 = vmatprep.subr.mxu0 0.0
  %1751 = vmatpush1.xpose.msra.mxu0 0.0
  %1752 = vmatprep.subr.mxu0 0.0
  %1753 = vmatpush1.xpose.msra.mxu0 0.0
  %1754 = vmatprep.subr.mxu0 0.0
  %1755 = vmatpush1.xpose.msra.mxu0 0.0
  %1756 = vmatprep.subr.mxu0 0.0
  %1757 = vmatpush1.xpose.msra.mxu0 0.0
  %1758 = vmatprep.subr.mxu0 0.0
  %1759 = vmatpush1.xpose.msra.mxu0 0.0
  %1760 = vmatprep.subr.mxu0 0.0
  %1761 = vmatpush1.xpose.msra.mxu0 0.0
  %1762 = vmatprep.subr.mxu0 0.0
  %1763 = vmatpush1.xpose.msra.mxu0 0.0
  %1764 = vmatprep.subr.mxu0 0.0
  %1765 = vmatpush1.xpose.msra.mxu0 0.0
  %1766 = vmatprep.subr.mxu0 0.0
  %1767 = vmatpush1.xpose.msra.mxu0 0.0
  %1768 = vmatprep.subr.mxu0 0.0
  %1769 = vmatpush1.xpose.msra.mxu0 0.0
  %1770 = vmatprep.subr.mxu0 0.0
  %1771 = vmatpush1.xpose.msra.mxu0 0.0
  %1772 = vmatprep.subr.mxu0 0.0
  %1773 = vmatpush1.xpose.msra.mxu0 0.0
  %1774 = vmatprep.subr.mxu0 0.0
  %1775 = vmatpush1.xpose.msra.mxu0 0.0
  %1776 = vmatprep.subr.mxu0 0.0
  %1777 = vmatpush1.xpose.msra.mxu0 0.0
  %1778 = vmatprep.subr.mxu0 0.0
  %1779 = vmatpush1.xpose.msra.mxu0 0.0
  %1780 = vmatprep.subr.mxu0 0.0
  %1781 = vmatpush1.xpose.msra.mxu0 0.0
  %1782 = vmatprep.subr.mxu0 0.0
  %1783 = vmatpush1.xpose.msra.mxu0 0.0
  %1784 = vmatprep.subr.mxu0 0.0
  %1785 = vmatpush1.xpose.msra.mxu0 0.0
  %1786 = vmatprep.subr.mxu0 0.0
  %1787 = vmatpush1.xpose.msra.mxu0 0.0
  %1788 = vmatprep.subr.mxu0 0.0
  %1789 = vmatpush1.xpose.msra.mxu0 0.0
  %1790 = vmatprep.subr.mxu0 0.0
  %1791 = vmatpush1.xpose.msra.mxu0 0.0
  %1792 = vmatprep.mubr.f32.mxu0 0.0
  %1793 = vmatmul.mubr.f32.gmra.mrb[0].mxu0 %v1166
  %v1794 = vpop.f32.mrb[0].mxu0
  %v1795 = vadd.f32 0.0, %v1794
  %v1796 = vpop.f32.mrb[0].mxu0
  %1797 = vdwg.mxu0
  %vm1798 = vcmask 64512
  %v1799 = vsel %vm1798, %v703, -inf
  %1800 = vmax.xlane.f32.xlu0 %v1799
  %v1801 = vpop.xlane.xlu0 %1800
  %v1802 = vsel %vm1798, %v779, -inf
  %1803 = vmax.xlane.f32.xlu0 %v1802
  %v1804 = vpop.xlane.xlu0 %1803
  %v1805 = vsel %vm1798, %v855, -inf
  %1806 = vmax.xlane.f32.xlu0 %v1805
  %v1807 = vpop.xlane.xlu0 %1806
  %v1808 = vsel %vm1798, %v931, -inf
  %1809 = vmax.xlane.f32.xlu0 %v1808
  %v1810 = vpop.xlane.xlu0 %1809
  %v1811 = vsel %vm1798, %v1007, -inf
  %1812 = vmax.xlane.f32.xlu0 %v1811
  %v1813 = vpop.xlane.xlu0 %1812
  %v1814 = vsel %vm1798, %v1083, -inf
  %1815 = vmax.xlane.f32.xlu0 %v1814
  %v1816 = vpop.xlane.xlu0 %1815
  %v1817 = vsel %vm1798, %v1159, -inf
  %1818 = vmax.xlane.f32.xlu0 %v1817
  %v1819 = vpop.xlane.xlu0 %1818
  %v1820 = vsel %vm1798, %v1235, -inf
  %1821 = vmax.xlane.f32.xlu0 %v1820
  %v1822 = vpop.xlane.xlu0 %1821
  %v1823 = vsub.f32 %v703, %v1801
  %v1824 = vsub.f32 %v779, %v1804
  %v1825 = vsub.f32 %v855, %v1807
  %v1826 = vsub.f32 %v931, %v1810
  %v1827 = vsub.f32 %v1007, %v1813
  %v1828 = vsub.f32 %v1083, %v1816
  %v1829 = vsub.f32 %v1159, %v1819
  %v1830 = vsub.f32 %v1235, %v1822
  %v1831 = vmul.f32 %v1823, 1.442695
  %v1832 = vpow.pop %v1831
  %v1833 = vmul.f32 %v1824, 1.442695
  %v1834 = vpow.pop %v1833
  %v1835 = vmul.f32 %v1825, 1.442695
  %v1836 = vpow.pop %v1835
  %v1837 = vmul.f32 %v1826, 1.442695
  %v1838 = vpow.pop %v1837
  %v1839 = vmul.f32 %v1827, 1.442695
  %v1840 = vpow.pop %v1839
  %v1841 = vmul.f32 %v1828, 1.442695
  %v1842 = vpow.pop %v1841
  %v1843 = vmul.f32 %v1829, 1.442695
  %v1844 = vpow.pop %v1843
  %v1845 = vmul.f32 %v1830, 1.442695
  %v1846 = vpow.pop %v1845
  %v1847 = vsel %vm1798, %v1832, 0.0
  %1848 = vadd.xlane.f32.xlu0 %v1847
  %v1849 = vpop.xlane.xlu0 %1848
  %v1850 = vsel %vm1798, %v1834, 0.0
  %1851 = vadd.xlane.f32.xlu0 %v1850
  %v1852 = vpop.xlane.xlu0 %1851
  %v1853 = vsel %vm1798, %v1836, 0.0
  %1854 = vadd.xlane.f32.xlu0 %v1853
  %v1855 = vpop.xlane.xlu0 %1854
  %v1856 = vsel %vm1798, %v1838, 0.0
  %1857 = vadd.xlane.f32.xlu0 %v1856
  %v1858 = vpop.xlane.xlu0 %1857
  %v1859 = vsel %vm1798, %v1840, 0.0
  %1860 = vadd.xlane.f32.xlu0 %v1859
  %v1861 = vpop.xlane.xlu0 %1860
  %v1862 = vsel %vm1798, %v1842, 0.0
  %1863 = vadd.xlane.f32.xlu0 %v1862
  %v1864 = vpop.xlane.xlu0 %1863
  %v1865 = vsel %vm1798, %v1844, 0.0
  %1866 = vadd.xlane.f32.xlu0 %v1865
  %v1867 = vpop.xlane.xlu0 %1866
  %v1868 = vsel %vm1798, %v1846, 0.0
  %1869 = vadd.xlane.f32.xlu0 %v1868
  %v1870 = vpop.xlane.xlu0 %1869
  %v1871 = vrcp.pop %v1849
  %v1872 = vrcp.pop %v1852
  %v1873 = vrcp.pop %v1855
  %v1874 = vrcp.pop %v1858
  %v1875 = vrcp.pop %v1861
  %v1876 = vrcp.pop %v1864
  %v1877 = vrcp.pop %v1867
  %v1878 = vrcp.pop %v1870
  %v1879 = vmul.f32 %v1832, %v1871
  %v1880 = vmul.f32 %v1834, %v1872
  %v1881 = vmul.f32 %v1836, %v1873
  %v1882 = vmul.f32 %v1838, %v1874
  %v1883 = vmul.f32 %v1840, %v1875
  %v1884 = vmul.f32 %v1842, %v1876
  %v1885 = vmul.f32 %v1844, %v1877
  %v1886 = vmul.f32 %v1846, %v1878
  %v1888 = vsel %vm1798, %v1879, 0
  %1890 = vmatprep.subr.mxu0 0.0
  %1891 = vmatpush1.msra.mxu0 %v622
  %1892 = vmatprep.subr.mxu0 0.0
  %1893 = vmatpush1.msra.mxu0 0.0
  %1894 = vmatprep.subr.mxu0 0.0
  %1895 = vmatpush1.msra.mxu0 0.0
  %1896 = vmatprep.subr.mxu0 0.0
  %1897 = vmatpush1.msra.mxu0 0.0
  %1898 = vmatprep.subr.mxu0 0.0
  %1899 = vmatpush1.msra.mxu0 0.0
  %1900 = vmatprep.subr.mxu0 0.0
  %1901 = vmatpush1.msra.mxu0 0.0
  %1902 = vmatprep.subr.mxu0 0.0
  %1903 = vmatpush1.msra.mxu0 0.0
  %1904 = vmatprep.subr.mxu0 0.0
  %1905 = vmatpush1.msra.mxu0 0.0
  %1906 = vmatprep.subr.mxu0 0.0
  %1907 = vmatpush1.msra.mxu0 0.0
  %1908 = vmatprep.subr.mxu0 0.0
  %1909 = vmatpush1.msra.mxu0 0.0
  %1910 = vmatprep.subr.mxu0 0.0
  %1911 = vmatpush1.msra.mxu0 0.0
  %1912 = vmatprep.subr.mxu0 0.0
  %1913 = vmatpush1.msra.mxu0 0.0
  %1914 = vmatprep.subr.mxu0 0.0
  %1915 = vmatpush1.msra.mxu0 0.0
  %1916 = vmatprep.subr.mxu0 0.0
  %1917 = vmatpush1.msra.mxu0 0.0
  %1918 = vmatprep.subr.mxu0 0.0
  %1919 = vmatpush1.msra.mxu0 0.0
  %1920 = vmatprep.subr.mxu0 0.0
  %1921 = vmatpush1.msra.mxu0 0.0
  %1922 = vmatprep.subr.mxu0 0.0
  %1923 = vmatpush1.msra.mxu0 0.0
  %1924 = vmatprep.subr.mxu0 0.0
  %1925 = vmatpush1.msra.mxu0 0.0
  %1926 = vmatprep.subr.mxu0 0.0
  %1927 = vmatpush1.msra.mxu0 0.0
  %1928 = vmatprep.subr.mxu0 0.0
  %1929 = vmatpush1.msra.mxu0 0.0
  %1930 = vmatprep.subr.mxu0 0.0
  %1931 = vmatpush1.msra.mxu0 0.0
  %1932 = vmatprep.subr.mxu0 0.0
  %1933 = vmatpush1.msra.mxu0 0.0
  %1934 = vmatprep.subr.mxu0 0.0
  %1935 = vmatpush1.msra.mxu0 0.0
  %1936 = vmatprep.subr.mxu0 0.0
  %1937 = vmatpush1.msra.mxu0 0.0
  %1938 = vmatprep.subr.mxu0 0.0
  %1939 = vmatpush1.msra.mxu0 0.0
  %1940 = vmatprep.subr.mxu0 0.0
  %1941 = vmatpush1.msra.mxu0 0.0
  %1942 = vmatprep.subr.mxu0 0.0
  %1943 = vmatpush1.msra.mxu0 0.0
  %1944 = vmatprep.subr.mxu0 0.0
  %1945 = vmatpush1.msra.mxu0 0.0
  %1946 = vmatprep.subr.mxu0 0.0
  %1947 = vmatpush1.msra.mxu0 0.0
  %1948 = vmatprep.subr.mxu0 0.0
  %1949 = vmatpush1.msra.mxu0 0.0
  %1950 = vmatprep.subr.mxu0 0.0
  %1951 = vmatpush1.msra.mxu0 0.0
  %1952 = vmatprep.subr.mxu0 0.0
  %1953 = vmatpush1.msra.mxu0 0.0
  %1954 = vmatprep.mubr.f32.mxu0 0.0
  %1955 = vmatmul.mubr.f32.gmra.mrb[0].mxu0 %v1888
  %v1956 = vpop.f32.mrb[0].mxu0
  %v1957 = vadd.f32 0.0, %v1956
  %v1958 = vpop.f32.mrb[0].mxu0
  %1959 = vdwg.mxu0
  %v1961 = vsel %vm1798, %v1880, 0
  %1963 = vmatprep.subr.mxu0 0.0
  %1964 = vmatpush1.msra.mxu0 %v623
  %1965 = vmatprep.subr.mxu0 0.0
  %1966 = vmatpush1.msra.mxu0 0.0
  %1967 = vmatprep.subr.mxu0 0.0
  %1968 = vmatpush1.msra.mxu0 0.0
  %1969 = vmatprep.subr.mxu0 0.0
  %1970 = vmatpush1.msra.mxu0 0.0
  %1971 = vmatprep.subr.mxu0 0.0
  %1972 = vmatpush1.msra.mxu0 0.0
  %1973 = vmatprep.subr.mxu0 0.0
  %1974 = vmatpush1.msra.mxu0 0.0
  %1975 = vmatprep.subr.mxu0 0.0
  %1976 = vmatpush1.msra.mxu0 0.0
  %1977 = vmatprep.subr.mxu0 0.0
  %1978 = vmatpush1.msra.mxu0 0.0
  %1979 = vmatprep.subr.mxu0 0.0
  %1980 = vmatpush1.msra.mxu0 0.0
  %1981 = vmatprep.subr.mxu0 0.0
  %1982 = vmatpush1.msra.mxu0 0.0
  %1983 = vmatprep.subr.mxu0 0.0
  %1984 = vmatpush1.msra.mxu0 0.0
  %1985 = vmatprep.subr.mxu0 0.0
  %1986 = vmatpush1.msra.mxu0 0.0
  %1987 = vmatprep.subr.mxu0 0.0
  %1988 = vmatpush1.msra.mxu0 0.0
  %1989 = vmatprep.subr.mxu0 0.0
  %1990 = vmatpush1.msra.mxu0 0.0
  %1991 = vmatprep.subr.mxu0 0.0
  %1992 = vmatpush1.msra.mxu0 0.0
  %1993 = vmatprep.subr.mxu0 0.0
  %1994 = vmatpush1.msra.mxu0 0.0
  %1995 = vmatprep.subr.mxu0 0.0
  %1996 = vmatpush1.msra.mxu0 0.0
  %1997 = vmatprep.subr.mxu0 0.0
  %1998 = vmatpush1.msra.mxu0 0.0
  %1999 = vmatprep.subr.mxu0 0.0
  %2000 = vmatpush1.msra.mxu0 0.0
  %2001 = vmatprep.subr.mxu0 0.0
  %2002 = vmatpush1.msra.mxu0 0.0
  %2003 = vmatprep.subr.mxu0 0.0
  %2004 = vmatpush1.msra.mxu0 0.0
  %2005 = vmatprep.subr.mxu0 0.0
  %2006 = vmatpush1.msra.mxu0 0.0
  %2007 = vmatprep.subr.mxu0 0.0
  %2008 = vmatpush1.msra.mxu0 0.0
  %2009 = vmatprep.subr.mxu0 0.0
  %2010 = vmatpush1.msra.mxu0 0.0
  %2011 = vmatprep.subr.mxu0 0.0
  %2012 = vmatpush1.msra.mxu0 0.0
  %2013 = vmatprep.subr.mxu0 0.0
  %2014 = vmatpush1.msra.mxu0 0.0
  %2015 = vmatprep.subr.mxu0 0.0
  %2016 = vmatpush1.msra.mxu0 0.0
  %2017 = vmatprep.subr.mxu0 0.0
  %2018 = vmatpush1.msra.mxu0 0.0
  %2019 = vmatprep.subr.mxu0 0.0
  %2020 = vmatpush1.msra.mxu0 0.0
  %2021 = vmatprep.subr.mxu0 0.0
  %2022 = vmatpush1.msra.mxu0 0.0
  %2023 = vmatprep.subr.mxu0 0.0
  %2024 = vmatpush1.msra.mxu0 0.0
  %2025 = vmatprep.subr.mxu0 0.0
  %2026 = vmatpush1.msra.mxu0 0.0
  %2027 = vmatprep.mubr.f32.mxu0 0.0
  %2028 = vmatmul.mubr.f32.gmra.mrb[0].mxu0 %v1961
  %v2029 = vpop.f32.mrb[0].mxu0
  %v2030 = vadd.f32 0.0, %v2029
  %v2031 = vpop.f32.mrb[0].mxu0
  %2032 = vdwg.mxu0
  %v2034 = vsel %vm1798, %v1881, 0
  %2036 = vmatprep.subr.mxu0 0.0
  %2037 = vmatpush1.msra.mxu0 %v624
  %2038 = vmatprep.subr.mxu0 0.0
  %2039 = vmatpush1.msra.mxu0 0.0
  %2040 = vmatprep.subr.mxu0 0.0
  %2041 = vmatpush1.msra.mxu0 0.0
  %2042 = vmatprep.subr.mxu0 0.0
  %2043 = vmatpush1.msra.mxu0 0.0
  %2044 = vmatprep.subr.mxu0 0.0
  %2045 = vmatpush1.msra.mxu0 0.0
  %2046 = vmatprep.subr.mxu0 0.0
  %2047 = vmatpush1.msra.mxu0 0.0
  %2048 = vmatprep.subr.mxu0 0.0
  %2049 = vmatpush1.msra.mxu0 0.0
  %2050 = vmatprep.subr.mxu0 0.0
  %2051 = vmatpush1.msra.mxu0 0.0
  %2052 = vmatprep.subr.mxu0 0.0
  %2053 = vmatpush1.msra.mxu0 0.0
  %2054 = vmatprep.subr.mxu0 0.0
  %2055 = vmatpush1.msra.mxu0 0.0
  %2056 = vmatprep.subr.mxu0 0.0
  %2057 = vmatpush1.msra.mxu0 0.0
  %2058 = vmatprep.subr.mxu0 0.0
  %2059 = vmatpush1.msra.mxu0 0.0
  %2060 = vmatprep.subr.mxu0 0.0
  %2061 = vmatpush1.msra.mxu0 0.0
  %2062 = vmatprep.subr.mxu0 0.0
  %2063 = vmatpush1.msra.mxu0 0.0
  %2064 = vmatprep.subr.mxu0 0.0
  %2065 = vmatpush1.msra.mxu0 0.0
  %2066 = vmatprep.subr.mxu0 0.0
  %2067 = vmatpush1.msra.mxu0 0.0
  %2068 = vmatprep.subr.mxu0 0.0
  %2069 = vmatpush1.msra.mxu0 0.0
  %2070 = vmatprep.subr.mxu0 0.0
  %2071 = vmatpush1.msra.mxu0 0.0
  %2072 = vmatprep.subr.mxu0 0.0
  %2073 = vmatpush1.msra.mxu0 0.0
  %2074 = vmatprep.subr.mxu0 0.0
  %2075 = vmatpush1.msra.mxu0 0.0
  %2076 = vmatprep.subr.mxu0 0.0
  %2077 = vmatpush1.msra.mxu0 0.0
  %2078 = vmatprep.subr.mxu0 0.0
  %2079 = vmatpush1.msra.mxu0 0.0
  %2080 = vmatprep.subr.mxu0 0.0
  %2081 = vmatpush1.msra.mxu0 0.0
  %2082 = vmatprep.subr.mxu0 0.0
  %2083 = vmatpush1.msra.mxu0 0.0
  %2084 = vmatprep.subr.mxu0 0.0
  %2085 = vmatpush1.msra.mxu0 0.0
  %2086 = vmatprep.subr.mxu0 0.0
  %2087 = vmatpush1.msra.mxu0 0.0
  %2088 = vmatprep.subr.mxu0 0.0
  %2089 = vmatpush1.msra.mxu0 0.0
  %2090 = vmatprep.subr.mxu0 0.0
  %2091 = vmatpush1.msra.mxu0 0.0
  %2092 = vmatprep.subr.mxu0 0.0
  %2093 = vmatpush1.msra.mxu0 0.0
  %2094 = vmatprep.subr.mxu0 0.0
  %2095 = vmatpush1.msra.mxu0 0.0
  %2096 = vmatprep.subr.mxu0 0.0
  %2097 = vmatpush1.msra.mxu0 0.0
  %2098 = vmatprep.subr.mxu0 0.0
  %2099 = vmatpush1.msra.mxu0 0.0
  %2100 = vmatprep.mubr.f32.mxu0 0.0
  %2101 = vmatmul.mubr.f32.gmra.mrb[0].mxu0 %v2034
  %v2102 = vpop.f32.mrb[0].mxu0
  %v2103 = vadd.f32 0.0, %v2102
  %v2104 = vpop.f32.mrb[0].mxu0
  %2105 = vdwg.mxu0
  %v2107 = vsel %vm1798, %v1882, 0
  %2109 = vmatprep.subr.mxu0 0.0
  %2110 = vmatpush1.msra.mxu0 %v625
  %2111 = vmatprep.subr.mxu0 0.0
  %2112 = vmatpush1.msra.mxu0 0.0
  %2113 = vmatprep.subr.mxu0 0.0
  %2114 = vmatpush1.msra.mxu0 0.0
  %2115 = vmatprep.subr.mxu0 0.0
  %2116 = vmatpush1.msra.mxu0 0.0
  %2117 = vmatprep.subr.mxu0 0.0
  %2118 = vmatpush1.msra.mxu0 0.0
  %2119 = vmatprep.subr.mxu0 0.0
  %2120 = vmatpush1.msra.mxu0 0.0
  %2121 = vmatprep.subr.mxu0 0.0
  %2122 = vmatpush1.msra.mxu0 0.0
  %2123 = vmatprep.subr.mxu0 0.0
  %2124 = vmatpush1.msra.mxu0 0.0
  %2125 = vmatprep.subr.mxu0 0.0
  %2126 = vmatpush1.msra.mxu0 0.0
  %2127 = vmatprep.subr.mxu0 0.0
  %2128 = vmatpush1.msra.mxu0 0.0
  %2129 = vmatprep.subr.mxu0 0.0
  %2130 = vmatpush1.msra.mxu0 0.0
  %2131 = vmatprep.subr.mxu0 0.0
  %2132 = vmatpush1.msra.mxu0 0.0
  %2133 = vmatprep.subr.mxu0 0.0
  %2134 = vmatpush1.msra.mxu0 0.0
  %2135 = vmatprep.subr.mxu0 0.0
  %2136 = vmatpush1.msra.mxu0 0.0
  %2137 = vmatprep.subr.mxu0 0.0
  %2138 = vmatpush1.msra.mxu0 0.0
  %2139 = vmatprep.subr.mxu0 0.0
  %2140 = vmatpush1.msra.mxu0 0.0
  %2141 = vmatprep.subr.mxu0 0.0
  %2142 = vmatpush1.msra.mxu0 0.0
  %2143 = vmatprep.subr.mxu0 0.0
  %2144 = vmatpush1.msra.mxu0 0.0
  %2145 = vmatprep.subr.mxu0 0.0
  %2146 = vmatpush1.msra.mxu0 0.0
  %2147 = vmatprep.subr.mxu0 0.0
  %2148 = vmatpush1.msra.mxu0 0.0
  %2149 = vmatprep.subr.mxu0 0.0
  %2150 = vmatpush1.msra.mxu0 0.0
  %2151 = vmatprep.subr.mxu0 0.0
  %2152 = vmatpush1.msra.mxu0 0.0
  %2153 = vmatprep.subr.mxu0 0.0
  %2154 = vmatpush1.msra.mxu0 0.0
  %2155 = vmatprep.subr.mxu0 0.0
  %2156 = vmatpush1.msra.mxu0 0.0
  %2157 = vmatprep.subr.mxu0 0.0
  %2158 = vmatpush1.msra.mxu0 0.0
  %2159 = vmatprep.subr.mxu0 0.0
  %2160 = vmatpush1.msra.mxu0 0.0
  %2161 = vmatprep.subr.mxu0 0.0
  %2162 = vmatpush1.msra.mxu0 0.0
  %2163 = vmatprep.subr.mxu0 0.0
  %2164 = vmatpush1.msra.mxu0 0.0
  %2165 = vmatprep.subr.mxu0 0.0
  %2166 = vmatpush1.msra.mxu0 0.0
  %2167 = vmatprep.subr.mxu0 0.0
  %2168 = vmatpush1.msra.mxu0 0.0
  %2169 = vmatprep.subr.mxu0 0.0
  %2170 = vmatpush1.msra.mxu0 0.0
  %2171 = vmatprep.subr.mxu0 0.0
  %2172 = vmatpush1.msra.mxu0 0.0
  %2173 = vmatprep.mubr.f32.mxu0 0.0
  %2174 = vmatmul.mubr.f32.gmra.mrb[0].mxu0 %v2107
  %v2175 = vpop.f32.mrb[0].mxu0
  %v2176 = vadd.f32 0.0, %v2175
  %v2177 = vpop.f32.mrb[0].mxu0
  %2178 = vdwg.mxu0
  %v2180 = vsel %vm1798, %v1883, 0
  %2182 = vmatprep.subr.mxu0 0.0
  %2183 = vmatpush1.msra.mxu0 %v626
  %2184 = vmatprep.subr.mxu0 0.0
  %2185 = vmatpush1.msra.mxu0 0.0
  %2186 = vmatprep.subr.mxu0 0.0
  %2187 = vmatpush1.msra.mxu0 0.0
  %2188 = vmatprep.subr.mxu0 0.0
  %2189 = vmatpush1.msra.mxu0 0.0
  %2190 = vmatprep.subr.mxu0 0.0
  %2191 = vmatpush1.msra.mxu0 0.0
  %2192 = vmatprep.subr.mxu0 0.0
  %2193 = vmatpush1.msra.mxu0 0.0
  %2194 = vmatprep.subr.mxu0 0.0
  %2195 = vmatpush1.msra.mxu0 0.0
  %2196 = vmatprep.subr.mxu0 0.0
  %2197 = vmatpush1.msra.mxu0 0.0
  %2198 = vmatprep.subr.mxu0 0.0
  %2199 = vmatpush1.msra.mxu0 0.0
  %2200 = vmatprep.subr.mxu0 0.0
  %2201 = vmatpush1.msra.mxu0 0.0
  %2202 = vmatprep.subr.mxu0 0.0
  %2203 = vmatpush1.msra.mxu0 0.0
  %2204 = vmatprep.subr.mxu0 0.0
  %2205 = vmatpush1.msra.mxu0 0.0
  %2206 = vmatprep.subr.mxu0 0.0
  %2207 = vmatpush1.msra.mxu0 0.0
  %2208 = vmatprep.subr.mxu0 0.0
  %2209 = vmatpush1.msra.mxu0 0.0
  %2210 = vmatprep.subr.mxu0 0.0
  %2211 = vmatpush1.msra.mxu0 0.0
  %2212 = vmatprep.subr.mxu0 0.0
  %2213 = vmatpush1.msra.mxu0 0.0
  %2214 = vmatprep.subr.mxu0 0.0
  %2215 = vmatpush1.msra.mxu0 0.0
  %2216 = vmatprep.subr.mxu0 0.0
  %2217 = vmatpush1.msra.mxu0 0.0
  %2218 = vmatprep.subr.mxu0 0.0
  %2219 = vmatpush1.msra.mxu0 0.0
  %2220 = vmatprep.subr.mxu0 0.0
  %2221 = vmatpush1.msra.mxu0 0.0
  %2222 = vmatprep.subr.mxu0 0.0
  %2223 = vmatpush1.msra.mxu0 0.0
  %2224 = vmatprep.subr.mxu0 0.0
  %2225 = vmatpush1.msra.mxu0 0.0
  %2226 = vmatprep.subr.mxu0 0.0
  %2227 = vmatpush1.msra.mxu0 0.0
  %2228 = vmatprep.subr.mxu0 0.0
  %2229 = vmatpush1.msra.mxu0 0.0
  %2230 = vmatprep.subr.mxu0 0.0
  %2231 = vmatpush1.msra.mxu0 0.0
  %2232 = vmatprep.subr.mxu0 0.0
  %2233 = vmatpush1.msra.mxu0 0.0
  %2234 = vmatprep.subr.mxu0 0.0
  %2235 = vmatpush1.msra.mxu0 0.0
  %2236 = vmatprep.subr.mxu0 0.0
  %2237 = vmatpush1.msra.mxu0 0.0
  %2238 = vmatprep.subr.mxu0 0.0
  %2239 = vmatpush1.msra.mxu0 0.0
  %2240 = vmatprep.subr.mxu0 0.0
  %2241 = vmatpush1.msra.mxu0 0.0
  %2242 = vmatprep.subr.mxu0 0.0
  %2243 = vmatpush1.msra.mxu0 0.0
  %2244 = vmatprep.subr.mxu0 0.0
  %2245 = vmatpush1.msra.mxu0 0.0
  %2246 = vmatprep.mubr.f32.mxu0 0.0
  %2247 = vmatmul.mubr.f32.gmra.mrb[0].mxu0 %v2180
  %v2248 = vpop.f32.mrb[0].mxu0
  %v2249 = vadd.f32 0.0, %v2248
  %v2250 = vpop.f32.mrb[0].mxu0
  %2251 = vdwg.mxu0
  %v2253 = vsel %vm1798, %v1884, 0
  %2255 = vmatprep.subr.mxu0 0.0
  %2256 = vmatpush1.msra.mxu0 %v627
  %2257 = vmatprep.subr.mxu0 0.0
  %2258 = vmatpush1.msra.mxu0 0.0
  %2259 = vmatprep.subr.mxu0 0.0
  %2260 = vmatpush1.msra.mxu0 0.0
  %2261 = vmatprep.subr.mxu0 0.0
  %2262 = vmatpush1.msra.mxu0 0.0
  %2263 = vmatprep.subr.mxu0 0.0
  %2264 = vmatpush1.msra.mxu0 0.0
  %2265 = vmatprep.subr.mxu0 0.0
  %2266 = vmatpush1.msra.mxu0 0.0
  %2267 = vmatprep.subr.mxu0 0.0
  %2268 = vmatpush1.msra.mxu0 0.0
  %2269 = vmatprep.subr.mxu0 0.0
  %2270 = vmatpush1.msra.mxu0 0.0
  %2271 = vmatprep.subr.mxu0 0.0
  %2272 = vmatpush1.msra.mxu0 0.0
  %2273 = vmatprep.subr.mxu0 0.0
  %2274 = vmatpush1.msra.mxu0 0.0
  %2275 = vmatprep.subr.mxu0 0.0
  %2276 = vmatpush1.msra.mxu0 0.0
  %2277 = vmatprep.subr.mxu0 0.0
  %2278 = vmatpush1.msra.mxu0 0.0
  %2279 = vmatprep.subr.mxu0 0.0
  %2280 = vmatpush1.msra.mxu0 0.0
  %2281 = vmatprep.subr.mxu0 0.0
  %2282 = vmatpush1.msra.mxu0 0.0
  %2283 = vmatprep.subr.mxu0 0.0
  %2284 = vmatpush1.msra.mxu0 0.0
  %2285 = vmatprep.subr.mxu0 0.0
  %2286 = vmatpush1.msra.mxu0 0.0
  %2287 = vmatprep.subr.mxu0 0.0
  %2288 = vmatpush1.msra.mxu0 0.0
  %2289 = vmatprep.subr.mxu0 0.0
  %2290 = vmatpush1.msra.mxu0 0.0
  %2291 = vmatprep.subr.mxu0 0.0
  %2292 = vmatpush1.msra.mxu0 0.0
  %2293 = vmatprep.subr.mxu0 0.0
  %2294 = vmatpush1.msra.mxu0 0.0
  %2295 = vmatprep.subr.mxu0 0.0
  %2296 = vmatpush1.msra.mxu0 0.0
  %2297 = vmatprep.subr.mxu0 0.0
  %2298 = vmatpush1.msra.mxu0 0.0
  %2299 = vmatprep.subr.mxu0 0.0
  %2300 = vmatpush1.msra.mxu0 0.0
  %2301 = vmatprep.subr.mxu0 0.0
  %2302 = vmatpush1.msra.mxu0 0.0
  %2303 = vmatprep.subr.mxu0 0.0
  %2304 = vmatpush1.msra.mxu0 0.0
  %2305 = vmatprep.subr.mxu0 0.0
  %2306 = vmatpush1.msra.mxu0 0.0
  %2307 = vmatprep.subr.mxu0 0.0
  %2308 = vmatpush1.msra.mxu0 0.0
  %2309 = vmatprep.subr.mxu0 0.0
  %2310 = vmatpush1.msra.mxu0 0.0
  %2311 = vmatprep.subr.mxu0 0.0
  %2312 = vmatpush1.msra.mxu0 0.0
  %2313 = vmatprep.subr.mxu0 0.0
  %2314 = vmatpush1.msra.mxu0 0.0
  %2315 = vmatprep.subr.mxu0 0.0
  %2316 = vmatpush1.msra.mxu0 0.0
  %2317 = vmatprep.subr.mxu0 0.0
  %2318 = vmatpush1.msra.mxu0 0.0
  %2319 = vmatprep.mubr.f32.mxu0 0.0
  %2320 = vmatmul.mubr.f32.gmra.mrb[0].mxu0 %v2253
  %v2321 = vpop.f32.mrb[0].mxu0
  %v2322 = vadd.f32 0.0, %v2321
  %v2323 = vpop.f32.mrb[0].mxu0
  %2324 = vdwg.mxu0
  %v2326 = vsel %vm1798, %v1885, 0
  %2328 = vmatprep.subr.mxu0 0.0
  %2329 = vmatpush1.msra.mxu0 %v628
  %2330 = vmatprep.subr.mxu0 0.0
  %2331 = vmatpush1.msra.mxu0 0.0
  %2332 = vmatprep.subr.mxu0 0.0
  %2333 = vmatpush1.msra.mxu0 0.0
  %2334 = vmatprep.subr.mxu0 0.0
  %2335 = vmatpush1.msra.mxu0 0.0
  %2336 = vmatprep.subr.mxu0 0.0
  %2337 = vmatpush1.msra.mxu0 0.0
  %2338 = vmatprep.subr.mxu0 0.0
  %2339 = vmatpush1.msra.mxu0 0.0
  %2340 = vmatprep.subr.mxu0 0.0
  %2341 = vmatpush1.msra.mxu0 0.0
  %2342 = vmatprep.subr.mxu0 0.0
  %2343 = vmatpush1.msra.mxu0 0.0
  %2344 = vmatprep.subr.mxu0 0.0
  %2345 = vmatpush1.msra.mxu0 0.0
  %2346 = vmatprep.subr.mxu0 0.0
  %2347 = vmatpush1.msra.mxu0 0.0
  %2348 = vmatprep.subr.mxu0 0.0
  %2349 = vmatpush1.msra.mxu0 0.0
  %2350 = vmatprep.subr.mxu0 0.0
  %2351 = vmatpush1.msra.mxu0 0.0
  %2352 = vmatprep.subr.mxu0 0.0
  %2353 = vmatpush1.msra.mxu0 0.0
  %2354 = vmatprep.subr.mxu0 0.0
  %2355 = vmatpush1.msra.mxu0 0.0
  %2356 = vmatprep.subr.mxu0 0.0
  %2357 = vmatpush1.msra.mxu0 0.0
  %2358 = vmatprep.subr.mxu0 0.0
  %2359 = vmatpush1.msra.mxu0 0.0
  %2360 = vmatprep.subr.mxu0 0.0
  %2361 = vmatpush1.msra.mxu0 0.0
  %2362 = vmatprep.subr.mxu0 0.0
  %2363 = vmatpush1.msra.mxu0 0.0
  %2364 = vmatprep.subr.mxu0 0.0
  %2365 = vmatpush1.msra.mxu0 0.0
  %2366 = vmatprep.subr.mxu0 0.0
  %2367 = vmatpush1.msra.mxu0 0.0
  %2368 = vmatprep.subr.mxu0 0.0
  %2369 = vmatpush1.msra.mxu0 0.0
  %2370 = vmatprep.subr.mxu0 0.0
  %2371 = vmatpush1.msra.mxu0 0.0
  %2372 = vmatprep.subr.mxu0 0.0
  %2373 = vmatpush1.msra.mxu0 0.0
  %2374 = vmatprep.subr.mxu0 0.0
  %2375 = vmatpush1.msra.mxu0 0.0
  %2376 = vmatprep.subr.mxu0 0.0
  %2377 = vmatpush1.msra.mxu0 0.0
  %2378 = vmatprep.subr.mxu0 0.0
  %2379 = vmatpush1.msra.mxu0 0.0
  %2380 = vmatprep.subr.mxu0 0.0
  %2381 = vmatpush1.msra.mxu0 0.0
  %2382 = vmatprep.subr.mxu0 0.0
  %2383 = vmatpush1.msra.mxu0 0.0
  %2384 = vmatprep.subr.mxu0 0.0
  %2385 = vmatpush1.msra.mxu0 0.0
  %2386 = vmatprep.subr.mxu0 0.0
  %2387 = vmatpush1.msra.mxu0 0.0
  %2388 = vmatprep.subr.mxu0 0.0
  %2389 = vmatpush1.msra.mxu0 0.0
  %2390 = vmatprep.subr.mxu0 0.0
  %2391 = vmatpush1.msra.mxu0 0.0
  %2392 = vmatprep.mubr.f32.mxu0 0.0
  %2393 = vmatmul.mubr.f32.gmra.mrb[0].mxu0 %v2326
  %v2394 = vpop.f32.mrb[0].mxu0
  %v2395 = vadd.f32 0.0, %v2394
  %v2396 = vpop.f32.mrb[0].mxu0
  %2397 = vdwg.mxu0
  %v2399 = vsel %vm1798, %v1886, 0
  %2401 = vmatprep.subr.mxu0 0.0
  %2402 = vmatpush1.msra.mxu0 %v629
  %2403 = vmatprep.subr.mxu0 0.0
  %2404 = vmatpush1.msra.mxu0 0.0
  %2405 = vmatprep.subr.mxu0 0.0
  %2406 = vmatpush1.msra.mxu0 0.0
  %2407 = vmatprep.subr.mxu0 0.0
  %2408 = vmatpush1.msra.mxu0 0.0
  %2409 = vmatprep.subr.mxu0 0.0
  %2410 = vmatpush1.msra.mxu0 0.0
  %2411 = vmatprep.subr.mxu0 0.0
  %2412 = vmatpush1.msra.mxu0 0.0
  %2413 = vmatprep.subr.mxu0 0.0
  %2414 = vmatpush1.msra.mxu0 0.0
  %2415 = vmatprep.subr.mxu0 0.0
  %2416 = vmatpush1.msra.mxu0 0.0
  %2417 = vmatprep.subr.mxu0 0.0
  %2418 = vmatpush1.msra.mxu0 0.0
  %2419 = vmatprep.subr.mxu0 0.0
  %2420 = vmatpush1.msra.mxu0 0.0
  %2421 = vmatprep.subr.mxu0 0.0
  %2422 = vmatpush1.msra.mxu0 0.0
  %2423 = vmatprep.subr.mxu0 0.0
  %2424 = vmatpush1.msra.mxu0 0.0
  %2425 = vmatprep.subr.mxu0 0.0
  %2426 = vmatpush1.msra.mxu0 0.0
  %2427 = vmatprep.subr.mxu0 0.0
  %2428 = vmatpush1.msra.mxu0 0.0
  %2429 = vmatprep.subr.mxu0 0.0
  %2430 = vmatpush1.msra.mxu0 0.0
  %2431 = vmatprep.subr.mxu0 0.0
  %2432 = vmatpush1.msra.mxu0 0.0
  %2433 = vmatprep.subr.mxu0 0.0
  %2434 = vmatpush1.msra.mxu0 0.0
  %2435 = vmatprep.subr.mxu0 0.0
  %2436 = vmatpush1.msra.mxu0 0.0
  %2437 = vmatprep.subr.mxu0 0.0
  %2438 = vmatpush1.msra.mxu0 0.0
  %2439 = vmatprep.subr.mxu0 0.0
  %2440 = vmatpush1.msra.mxu0 0.0
  %2441 = vmatprep.subr.mxu0 0.0
  %2442 = vmatpush1.msra.mxu0 0.0
  %2443 = vmatprep.subr.mxu0 0.0
  %2444 = vmatpush1.msra.mxu0 0.0
  %2445 = vmatprep.subr.mxu0 0.0
  %2446 = vmatpush1.msra.mxu0 0.0
  %2447 = vmatprep.subr.mxu0 0.0
  %2448 = vmatpush1.msra.mxu0 0.0
  %2449 = vmatprep.subr.mxu0 0.0
  %2450 = vmatpush1.msra.mxu0 0.0
  %2451 = vmatprep.subr.mxu0 0.0
  %2452 = vmatpush1.msra.mxu0 0.0
  %2453 = vmatprep.subr.mxu0 0.0
  %2454 = vmatpush1.msra.mxu0 0.0
  %2455 = vmatprep.subr.mxu0 0.0
  %2456 = vmatpush1.msra.mxu0 0.0
  %2457 = vmatprep.subr.mxu0 0.0
  %2458 = vmatpush1.msra.mxu0 0.0
  %2459 = vmatprep.subr.mxu0 0.0
  %2460 = vmatpush1.msra.mxu0 0.0
  %2461 = vmatprep.subr.mxu0 0.0
  %2462 = vmatpush1.msra.mxu0 0.0
  %2463 = vmatprep.subr.mxu0 0.0
  %2464 = vmatpush1.msra.mxu0 0.0
  %2465 = vmatprep.mubr.f32.mxu0 0.0
  %2466 = vmatmul.mubr.f32.gmra.mrb[0].mxu0 %v2399
  %v2467 = vpop.f32.mrb[0].mxu0
  %v2468 = vadd.f32 0.0, %v2467
  %v2469 = vpop.f32.mrb[0].mxu0
  %2470 = vdwg.mxu0
  %v2471 = vsel %vm1798, %v1305, -inf
  %2472 = vmax.xlane.f32.xlu0 %v2471
  %v2473 = vpop.xlane.xlu0 %2472
  %v2474 = vsel %vm1798, %v1375, -inf
  %2475 = vmax.xlane.f32.xlu0 %v2474
  %v2476 = vpop.xlane.xlu0 %2475
  %v2477 = vsel %vm1798, %v1445, -inf
  %2478 = vmax.xlane.f32.xlu0 %v2477
  %v2479 = vpop.xlane.xlu0 %2478
  %v2480 = vsel %vm1798, %v1515, -inf
  %2481 = vmax.xlane.f32.xlu0 %v2480
  %v2482 = vpop.xlane.xlu0 %2481
  %v2483 = vsel %vm1798, %v1585, -inf
  %2484 = vmax.xlane.f32.xlu0 %v2483
  %v2485 = vpop.xlane.xlu0 %2484
  %v2486 = vsel %vm1798, %v1655, -inf
  %2487 = vmax.xlane.f32.xlu0 %v2486
  %v2488 = vpop.xlane.xlu0 %2487
  %v2489 = vsel %vm1798, %v1725, -inf
  %2490 = vmax.xlane.f32.xlu0 %v2489
  %v2491 = vpop.xlane.xlu0 %2490
  %v2492 = vsel %vm1798, %v1795, -inf
  %2493 = vmax.xlane.f32.xlu0 %v2492
  %v2494 = vpop.xlane.xlu0 %2493
  %v2495 = vsub.f32 %v1305, %v2473
  %v2496 = vsub.f32 %v1375, %v2476
  %v2497 = vsub.f32 %v1445, %v2479
  %v2498 = vsub.f32 %v1515, %v2482
  %v2499 = vsub.f32 %v1585, %v2485
  %v2500 = vsub.f32 %v1655, %v2488
  %v2501 = vsub.f32 %v1725, %v2491
  %v2502 = vsub.f32 %v1795, %v2494
  %v2503 = vmul.f32 %v2495, 1.442695
  %v2504 = vpow.pop %v2503
  %v2505 = vmul.f32 %v2496, 1.442695
  %v2506 = vpow.pop %v2505
  %v2507 = vmul.f32 %v2497, 1.442695
  %v2508 = vpow.pop %v2507
  %v2509 = vmul.f32 %v2498, 1.442695
  %v2510 = vpow.pop %v2509
  %v2511 = vmul.f32 %v2499, 1.442695
  %v2512 = vpow.pop %v2511
  %v2513 = vmul.f32 %v2500, 1.442695
  %v2514 = vpow.pop %v2513
  %v2515 = vmul.f32 %v2501, 1.442695
  %v2516 = vpow.pop %v2515
  %v2517 = vmul.f32 %v2502, 1.442695
  %v2518 = vpow.pop %v2517
  %v2519 = vsel %vm1798, %v2504, 0.0
  %2520 = vadd.xlane.f32.xlu0 %v2519
  %v2521 = vpop.xlane.xlu0 %2520
  %v2522 = vsel %vm1798, %v2506, 0.0
  %2523 = vadd.xlane.f32.xlu0 %v2522
  %v2524 = vpop.xlane.xlu0 %2523
  %v2525 = vsel %vm1798, %v2508, 0.0
  %2526 = vadd.xlane.f32.xlu0 %v2525
  %v2527 = vpop.xlane.xlu0 %2526
  %v2528 = vsel %vm1798, %v2510, 0.0
  %2529 = vadd.xlane.f32.xlu0 %v2528
  %v2530 = vpop.xlane.xlu0 %2529
  %v2531 = vsel %vm1798, %v2512, 0.0
  %2532 = vadd.xlane.f32.xlu0 %v2531
  %v2533 = vpop.xlane.xlu0 %2532
  %v2534 = vsel %vm1798, %v2514, 0.0
  %2535 = vadd.xlane.f32.xlu0 %v2534
  %v2536 = vpop.xlane.xlu0 %2535
  %v2537 = vsel %vm1798, %v2516, 0.0
  %2538 = vadd.xlane.f32.xlu0 %v2537
  %v2539 = vpop.xlane.xlu0 %2538
  %v2540 = vsel %vm1798, %v2518, 0.0
  %2541 = vadd.xlane.f32.xlu0 %v2540
  %v2542 = vpop.xlane.xlu0 %2541
  %v2543 = vrcp.pop %v2521
  %v2544 = vrcp.pop %v2524
  %v2545 = vrcp.pop %v2527
  %v2546 = vrcp.pop %v2530
  %v2547 = vrcp.pop %v2533
  %v2548 = vrcp.pop %v2536
  %v2549 = vrcp.pop %v2539
  %v2550 = vrcp.pop %v2542
  %v2551 = vmul.f32 %v2504, %v2543
  %v2552 = vmul.f32 %v2506, %v2544
  %v2553 = vmul.f32 %v2508, %v2545
  %v2554 = vmul.f32 %v2510, %v2546
  %v2555 = vmul.f32 %v2512, %v2547
  %v2556 = vmul.f32 %v2514, %v2548
  %v2557 = vmul.f32 %v2516, %v2549
  %v2558 = vmul.f32 %v2518, %v2550
  %v2560 = vsel %vm1798, %v2551, 0
  %2562 = vmatprep.subr.mxu0 0.0
  %2563 = vmatpush1.msra.mxu0 %v348
  %2564 = vmatprep.subr.mxu0 0.0
  %2565 = vmatpush1.msra.mxu0 0.0
  %2566 = vmatprep.subr.mxu0 0.0
  %2567 = vmatpush1.msra.mxu0 0.0
  %2568 = vmatprep.subr.mxu0 0.0
  %2569 = vmatpush1.msra.mxu0 0.0
  %2570 = vmatprep.subr.mxu0 0.0
  %2571 = vmatpush1.msra.mxu0 0.0
  %2572 = vmatprep.subr.mxu0 0.0
  %2573 = vmatpush1.msra.mxu0 0.0
  %2574 = vmatprep.subr.mxu0 0.0
  %2575 = vmatpush1.msra.mxu0 0.0
  %2576 = vmatprep.subr.mxu0 0.0
  %2577 = vmatpush1.msra.mxu0 0.0
  %2578 = vmatprep.subr.mxu0 0.0
  %2579 = vmatpush1.msra.mxu0 0.0
  %2580 = vmatprep.subr.mxu0 0.0
  %2581 = vmatpush1.msra.mxu0 0.0
  %2582 = vmatprep.subr.mxu0 0.0
  %2583 = vmatpush1.msra.mxu0 0.0
  %2584 = vmatprep.subr.mxu0 0.0
  %2585 = vmatpush1.msra.mxu0 0.0
  %2586 = vmatprep.subr.mxu0 0.0
  %2587 = vmatpush1.msra.mxu0 0.0
  %2588 = vmatprep.subr.mxu0 0.0
  %2589 = vmatpush1.msra.mxu0 0.0
  %2590 = vmatprep.subr.mxu0 0.0
  %2591 = vmatpush1.msra.mxu0 0.0
  %2592 = vmatprep.subr.mxu0 0.0
  %2593 = vmatpush1.msra.mxu0 0.0
  %2594 = vmatprep.subr.mxu0 0.0
  %2595 = vmatpush1.msra.mxu0 0.0
  %2596 = vmatprep.subr.mxu0 0.0
  %2597 = vmatpush1.msra.mxu0 0.0
  %2598 = vmatprep.subr.mxu0 0.0
  %2599 = vmatpush1.msra.mxu0 0.0
  %2600 = vmatprep.subr.mxu0 0.0
  %2601 = vmatpush1.msra.mxu0 0.0
  %2602 = vmatprep.subr.mxu0 0.0
  %2603 = vmatpush1.msra.mxu0 0.0
  %2604 = vmatprep.subr.mxu0 0.0
  %2605 = vmatpush1.msra.mxu0 0.0
  %2606 = vmatprep.subr.mxu0 0.0
  %2607 = vmatpush1.msra.mxu0 0.0
  %2608 = vmatprep.subr.mxu0 0.0
  %2609 = vmatpush1.msra.mxu0 0.0
  %2610 = vmatprep.subr.mxu0 0.0
  %2611 = vmatpush1.msra.mxu0 0.0
  %2612 = vmatprep.subr.mxu0 0.0
  %2613 = vmatpush1.msra.mxu0 0.0
  %2614 = vmatprep.subr.mxu0 0.0
  %2615 = vmatpush1.msra.mxu0 0.0
  %2616 = vmatprep.subr.mxu0 0.0
  %2617 = vmatpush1.msra.mxu0 0.0
  %2618 = vmatprep.subr.mxu0 0.0
  %2619 = vmatpush1.msra.mxu0 0.0
  %2620 = vmatprep.subr.mxu0 0.0
  %2621 = vmatpush1.msra.mxu0 0.0
  %2622 = vmatprep.subr.mxu0 0.0
  %2623 = vmatpush1.msra.mxu0 0.0
  %2624 = vmatprep.subr.mxu0 0.0
  %2625 = vmatpush1.msra.mxu0 0.0
  %2626 = vmatprep.mubr.f32.mxu0 0.0
  %2627 = vmatmul.mubr.f32.gmra.mrb[0].mxu0 %v2560
  %v2628 = vpop.f32.mrb[0].mxu0
  %v2629 = vadd.f32 0.0, %v2628
  %v2630 = vpop.f32.mrb[0].mxu0
  %2631 = vdwg.mxu0
  %v2633 = vsel %vm1798, %v2552, 0
  %2635 = vmatprep.subr.mxu0 0.0
  %2636 = vmatpush1.msra.mxu0 %v349
  %2637 = vmatprep.subr.mxu0 0.0
  %2638 = vmatpush1.msra.mxu0 0.0
  %2639 = vmatprep.subr.mxu0 0.0
  %2640 = vmatpush1.msra.mxu0 0.0
  %2641 = vmatprep.subr.mxu0 0.0
  %2642 = vmatpush1.msra.mxu0 0.0
  %2643 = vmatprep.subr.mxu0 0.0
  %2644 = vmatpush1.msra.mxu0 0.0
  %2645 = vmatprep.subr.mxu0 0.0
  %2646 = vmatpush1.msra.mxu0 0.0
  %2647 = vmatprep.subr.mxu0 0.0
  %2648 = vmatpush1.msra.mxu0 0.0
  %2649 = vmatprep.subr.mxu0 0.0
  %2650 = vmatpush1.msra.mxu0 0.0
  %2651 = vmatprep.subr.mxu0 0.0
  %2652 = vmatpush1.msra.mxu0 0.0
  %2653 = vmatprep.subr.mxu0 0.0
  %2654 = vmatpush1.msra.mxu0 0.0
  %2655 = vmatprep.subr.mxu0 0.0
  %2656 = vmatpush1.msra.mxu0 0.0
  %2657 = vmatprep.subr.mxu0 0.0
  %2658 = vmatpush1.msra.mxu0 0.0
  %2659 = vmatprep.subr.mxu0 0.0
  %2660 = vmatpush1.msra.mxu0 0.0
  %2661 = vmatprep.subr.mxu0 0.0
  %2662 = vmatpush1.msra.mxu0 0.0
  %2663 = vmatprep.subr.mxu0 0.0
  %2664 = vmatpush1.msra.mxu0 0.0
  %2665 = vmatprep.subr.mxu0 0.0
  %2666 = vmatpush1.msra.mxu0 0.0
  %2667 = vmatprep.subr.mxu0 0.0
  %2668 = vmatpush1.msra.mxu0 0.0
  %2669 = vmatprep.subr.mxu0 0.0
  %2670 = vmatpush1.msra.mxu0 0.0
  %2671 = vmatprep.subr.mxu0 0.0
  %2672 = vmatpush1.msra.mxu0 0.0
  %2673 = vmatprep.subr.mxu0 0.0
  %2674 = vmatpush1.msra.mxu0 0.0
  %2675 = vmatprep.subr.mxu0 0.0
  %2676 = vmatpush1.msra.mxu0 0.0
  %2677 = vmatprep.subr.mxu0 0.0
  %2678 = vmatpush1.msra.mxu0 0.0
  %2679 = vmatprep.subr.mxu0 0.0
  %2680 = vmatpush1.msra.mxu0 0.0
  %2681 = vmatprep.subr.mxu0 0.0
  %2682 = vmatpush1.msra.mxu0 0.0
  %2683 = vmatprep.subr.mxu0 0.0
  %2684 = vmatpush1.msra.mxu0 0.0
  %2685 = vmatprep.subr.mxu0 0.0
  %2686 = vmatpush1.msra.mxu0 0.0
  %2687 = vmatprep.subr.mxu0 0.0
  %2688 = vmatpush1.msra.mxu0 0.0
  %2689 = vmatprep.subr.mxu0 0.0
  %2690 = vmatpush1.msra.mxu0 0.0
  %2691 = vmatprep.subr.mxu0 0.0
  %2692 = vmatpush1.msra.mxu0 0.0
  %2693 = vmatprep.subr.mxu0 0.0
  %2694 = vmatpush1.msra.mxu0 0.0
  %2695 = vmatprep.subr.mxu0 0.0
  %2696 = vmatpush1.msra.mxu0 0.0
  %2697 = vmatprep.subr.mxu0 0.0
  %2698 = vmatpush1.msra.mxu0 0.0
  %2699 = vmatprep.mubr.f32.mxu0 0.0
  %2700 = vmatmul.mubr.f32.gmra.mrb[0].mxu0 %v2633
  %v2701 = vpop.f32.mrb[0].mxu0
  %v2702 = vadd.f32 0.0, %v2701
  %v2703 = vpop.f32.mrb[0].mxu0
  %2704 = vdwg.mxu0
  %v2706 = vsel %vm1798, %v2553, 0
  %2708 = vmatprep.subr.mxu0 0.0
  %2709 = vmatpush1.msra.mxu0 %v350
  %2710 = vmatprep.subr.mxu0 0.0
  %2711 = vmatpush1.msra.mxu0 0.0
  %2712 = vmatprep.subr.mxu0 0.0
  %2713 = vmatpush1.msra.mxu0 0.0
  %2714 = vmatprep.subr.mxu0 0.0
  %2715 = vmatpush1.msra.mxu0 0.0
  %2716 = vmatprep.subr.mxu0 0.0
  %2717 = vmatpush1.msra.mxu0 0.0
  %2718 = vmatprep.subr.mxu0 0.0
  %2719 = vmatpush1.msra.mxu0 0.0
  %2720 = vmatprep.subr.mxu0 0.0
  %2721 = vmatpush1.msra.mxu0 0.0
  %2722 = vmatprep.subr.mxu0 0.0
  %2723 = vmatpush1.msra.mxu0 0.0
  %2724 = vmatprep.subr.mxu0 0.0
  %2725 = vmatpush1.msra.mxu0 0.0
  %2726 = vmatprep.subr.mxu0 0.0
  %2727 = vmatpush1.msra.mxu0 0.0
  %2728 = vmatprep.subr.mxu0 0.0
  %2729 = vmatpush1.msra.mxu0 0.0
  %2730 = vmatprep.subr.mxu0 0.0
  %2731 = vmatpush1.msra.mxu0 0.0
  %2732 = vmatprep.subr.mxu0 0.0
  %2733 = vmatpush1.msra.mxu0 0.0
  %2734 = vmatprep.subr.mxu0 0.0
  %2735 = vmatpush1.msra.mxu0 0.0
  %2736 = vmatprep.subr.mxu0 0.0
  %2737 = vmatpush1.msra.mxu0 0.0
  %2738 = vmatprep.subr.mxu0 0.0
  %2739 = vmatpush1.msra.mxu0 0.0
  %2740 = vmatprep.subr.mxu0 0.0
  %2741 = vmatpush1.msra.mxu0 0.0
  %2742 = vmatprep.subr.mxu0 0.0
  %2743 = vmatpush1.msra.mxu0 0.0
  %2744 = vmatprep.subr.mxu0 0.0
  %2745 = vmatpush1.msra.mxu0 0.0
  %2746 = vmatprep.subr.mxu0 0.0
  %2747 = vmatpush1.msra.mxu0 0.0
  %2748 = vmatprep.subr.mxu0 0.0
  %2749 = vmatpush1.msra.mxu0 0.0
  %2750 = vmatprep.subr.mxu0 0.0
  %2751 = vmatpush1.msra.mxu0 0.0
  %2752 = vmatprep.subr.mxu0 0.0
  %2753 = vmatpush1.msra.mxu0 0.0
  %2754 = vmatprep.subr.mxu0 0.0
  %2755 = vmatpush1.msra.mxu0 0.0
  %2756 = vmatprep.subr.mxu0 0.0
  %2757 = vmatpush1.msra.mxu0 0.0
  %2758 = vmatprep.subr.mxu0 0.0
  %2759 = vmatpush1.msra.mxu0 0.0
  %2760 = vmatprep.subr.mxu0 0.0
  %2761 = vmatpush1.msra.mxu0 0.0
  %2762 = vmatprep.subr.mxu0 0.0
  %2763 = vmatpush1.msra.mxu0 0.0
  %2764 = vmatprep.subr.mxu0 0.0
  %2765 = vmatpush1.msra.mxu0 0.0
  %2766 = vmatprep.subr.mxu0 0.0
  %2767 = vmatpush1.msra.mxu0 0.0
  %2768 = vmatprep.subr.mxu0 0.0
  %2769 = vmatpush1.msra.mxu0 0.0
  %2770 = vmatprep.subr.mxu0 0.0
  %2771 = vmatpush1.msra.mxu0 0.0
  %2772 = vmatprep.mubr.f32.mxu0 0.0
  %2773 = vmatmul.mubr.f32.gmra.mrb[0].mxu0 %v2706
  %v2774 = vpop.f32.mrb[0].mxu0
  %v2775 = vadd.f32 0.0, %v2774
  %v2776 = vpop.f32.mrb[0].mxu0
  %2777 = vdwg.mxu0
  %v2779 = vsel %vm1798, %v2554, 0
  %2781 = vmatprep.subr.mxu0 0.0
  %2782 = vmatpush1.msra.mxu0 %v351
  %2783 = vmatprep.subr.mxu0 0.0
  %2784 = vmatpush1.msra.mxu0 0.0
  %2785 = vmatprep.subr.mxu0 0.0
  %2786 = vmatpush1.msra.mxu0 0.0
  %2787 = vmatprep.subr.mxu0 0.0
  %2788 = vmatpush1.msra.mxu0 0.0
  %2789 = vmatprep.subr.mxu0 0.0
  %2790 = vmatpush1.msra.mxu0 0.0
  %2791 = vmatprep.subr.mxu0 0.0
  %2792 = vmatpush1.msra.mxu0 0.0
  %2793 = vmatprep.subr.mxu0 0.0
  %2794 = vmatpush1.msra.mxu0 0.0
  %2795 = vmatprep.subr.mxu0 0.0
  %2796 = vmatpush1.msra.mxu0 0.0
  %2797 = vmatprep.subr.mxu0 0.0
  %2798 = vmatpush1.msra.mxu0 0.0
  %2799 = vmatprep.subr.mxu0 0.0
  %2800 = vmatpush1.msra.mxu0 0.0
  %2801 = vmatprep.subr.mxu0 0.0
  %2802 = vmatpush1.msra.mxu0 0.0
  %2803 = vmatprep.subr.mxu0 0.0
  %2804 = vmatpush1.msra.mxu0 0.0
  %2805 = vmatprep.subr.mxu0 0.0
  %2806 = vmatpush1.msra.mxu0 0.0
  %2807 = vmatprep.subr.mxu0 0.0
  %2808 = vmatpush1.msra.mxu0 0.0
  %2809 = vmatprep.subr.mxu0 0.0
  %2810 = vmatpush1.msra.mxu0 0.0
  %2811 = vmatprep.subr.mxu0 0.0
  %2812 = vmatpush1.msra.mxu0 0.0
  %2813 = vmatprep.subr.mxu0 0.0
  %2814 = vmatpush1.msra.mxu0 0.0
  %2815 = vmatprep.subr.mxu0 0.0
  %2816 = vmatpush1.msra.mxu0 0.0
  %2817 = vmatprep.subr.mxu0 0.0
  %2818 = vmatpush1.msra.mxu0 0.0
  %2819 = vmatprep.subr.mxu0 0.0
  %2820 = vmatpush1.msra.mxu0 0.0
  %2821 = vmatprep.subr.mxu0 0.0
  %2822 = vmatpush1.msra.mxu0 0.0
  %2823 = vmatprep.subr.mxu0 0.0
  %2824 = vmatpush1.msra.mxu0 0.0
  %2825 = vmatprep.subr.mxu0 0.0
  %2826 = vmatpush1.msra.mxu0 0.0
  %2827 = vmatprep.subr.mxu0 0.0
  %2828 = vmatpush1.msra.mxu0 0.0
  %2829 = vmatprep.subr.mxu0 0.0
  %2830 = vmatpush1.msra.mxu0 0.0
  %2831 = vmatprep.subr.mxu0 0.0
  %2832 = vmatpush1.msra.mxu0 0.0
  %2833 = vmatprep.subr.mxu0 0.0
  %2834 = vmatpush1.msra.mxu0 0.0
  %2835 = vmatprep.subr.mxu0 0.0
  %2836 = vmatpush1.msra.mxu0 0.0
  %2837 = vmatprep.subr.mxu0 0.0
  %2838 = vmatpush1.msra.mxu0 0.0
  %2839 = vmatprep.subr.mxu0 0.0
  %2840 = vmatpush1.msra.mxu0 0.0
  %2841 = vmatprep.subr.mxu0 0.0
  %2842 = vmatpush1.msra.mxu0 0.0
  %2843 = vmatprep.subr.mxu0 0.0
  %2844 = vmatpush1.msra.mxu0 0.0
  %2845 = vmatprep.mubr.f32.mxu0 0.0
  %2846 = vmatmul.mubr.f32.gmra.mrb[0].mxu0 %v2779
  %v2847 = vpop.f32.mrb[0].mxu0
  %v2848 = vadd.f32 0.0, %v2847
  %v2849 = vpop.f32.mrb[0].mxu0
  %2850 = vdwg.mxu0
  %v2852 = vsel %vm1798, %v2555, 0
  %2854 = vmatprep.subr.mxu0 0.0
  %2855 = vmatpush1.msra.mxu0 %v352
  %2856 = vmatprep.subr.mxu0 0.0
  %2857 = vmatpush1.msra.mxu0 0.0
  %2858 = vmatprep.subr.mxu0 0.0
  %2859 = vmatpush1.msra.mxu0 0.0
  %2860 = vmatprep.subr.mxu0 0.0
  %2861 = vmatpush1.msra.mxu0 0.0
  %2862 = vmatprep.subr.mxu0 0.0
  %2863 = vmatpush1.msra.mxu0 0.0
  %2864 = vmatprep.subr.mxu0 0.0
  %2865 = vmatpush1.msra.mxu0 0.0
  %2866 = vmatprep.subr.mxu0 0.0
  %2867 = vmatpush1.msra.mxu0 0.0
  %2868 = vmatprep.subr.mxu0 0.0
  %2869 = vmatpush1.msra.mxu0 0.0
  %2870 = vmatprep.subr.mxu0 0.0
  %2871 = vmatpush1.msra.mxu0 0.0
  %2872 = vmatprep.subr.mxu0 0.0
  %2873 = vmatpush1.msra.mxu0 0.0
  %2874 = vmatprep.subr.mxu0 0.0
  %2875 = vmatpush1.msra.mxu0 0.0
  %2876 = vmatprep.subr.mxu0 0.0
  %2877 = vmatpush1.msra.mxu0 0.0
  %2878 = vmatprep.subr.mxu0 0.0
  %2879 = vmatpush1.msra.mxu0 0.0
  %2880 = vmatprep.subr.mxu0 0.0
  %2881 = vmatpush1.msra.mxu0 0.0
  %2882 = vmatprep.subr.mxu0 0.0
  %2883 = vmatpush1.msra.mxu0 0.0
  %2884 = vmatprep.subr.mxu0 0.0
  %2885 = vmatpush1.msra.mxu0 0.0
  %2886 = vmatprep.subr.mxu0 0.0
  %2887 = vmatpush1.msra.mxu0 0.0
  %2888 = vmatprep.subr.mxu0 0.0
  %2889 = vmatpush1.msra.mxu0 0.0
  %2890 = vmatprep.subr.mxu0 0.0
  %2891 = vmatpush1.msra.mxu0 0.0
  %2892 = vmatprep.subr.mxu0 0.0
  %2893 = vmatpush1.msra.mxu0 0.0
  %2894 = vmatprep.subr.mxu0 0.0
  %2895 = vmatpush1.msra.mxu0 0.0
  %2896 = vmatprep.subr.mxu0 0.0
  %2897 = vmatpush1.msra.mxu0 0.0
  %2898 = vmatprep.subr.mxu0 0.0
  %2899 = vmatpush1.msra.mxu0 0.0
  %2900 = vmatprep.subr.mxu0 0.0
  %2901 = vmatpush1.msra.mxu0 0.0
  %2902 = vmatprep.subr.mxu0 0.0
  %2903 = vmatpush1.msra.mxu0 0.0
  %2904 = vmatprep.subr.mxu0 0.0
  %2905 = vmatpush1.msra.mxu0 0.0
  %2906 = vmatprep.subr.mxu0 0.0
  %2907 = vmatpush1.msra.mxu0 0.0
  %2908 = vmatprep.subr.mxu0 0.0
  %2909 = vmatpush1.msra.mxu0 0.0
  %2910 = vmatprep.subr.mxu0 0.0
  %2911 = vmatpush1.msra.mxu0 0.0
  %2912 = vmatprep.subr.mxu0 0.0
  %2913 = vmatpush1.msra.mxu0 0.0
  %2914 = vmatprep.subr.mxu0 0.0
  %2915 = vmatpush1.msra.mxu0 0.0
  %2916 = vmatprep.subr.mxu0 0.0
  %2917 = vmatpush1.msra.mxu0 0.0
  %2918 = vmatprep.mubr.f32.mxu0 0.0
  %2919 = vmatmul.mubr.f32.gmra.mrb[0].mxu0 %v2852
  %v2920 = vpop.f32.mrb[0].mxu0
  %v2921 = vadd.f32 0.0, %v2920
  %v2922 = vpop.f32.mrb[0].mxu0
  %2923 = vdwg.mxu0
  %v2925 = vsel %vm1798, %v2556, 0
  %2927 = vmatprep.subr.mxu0 0.0
  %2928 = vmatpush1.msra.mxu0 %v353
  %2929 = vmatprep.subr.mxu0 0.0
  %2930 = vmatpush1.msra.mxu0 0.0
  %2931 = vmatprep.subr.mxu0 0.0
  %2932 = vmatpush1.msra.mxu0 0.0
  %2933 = vmatprep.subr.mxu0 0.0
  %2934 = vmatpush1.msra.mxu0 0.0
  %2935 = vmatprep.subr.mxu0 0.0
  %2936 = vmatpush1.msra.mxu0 0.0
  %2937 = vmatprep.subr.mxu0 0.0
  %2938 = vmatpush1.msra.mxu0 0.0
  %2939 = vmatprep.subr.mxu0 0.0
  %2940 = vmatpush1.msra.mxu0 0.0
  %2941 = vmatprep.subr.mxu0 0.0
  %2942 = vmatpush1.msra.mxu0 0.0
  %2943 = vmatprep.subr.mxu0 0.0
  %2944 = vmatpush1.msra.mxu0 0.0
  %2945 = vmatprep.subr.mxu0 0.0
  %2946 = vmatpush1.msra.mxu0 0.0
  %2947 = vmatprep.subr.mxu0 0.0
  %2948 = vmatpush1.msra.mxu0 0.0
  %2949 = vmatprep.subr.mxu0 0.0
  %2950 = vmatpush1.msra.mxu0 0.0
  %2951 = vmatprep.subr.mxu0 0.0
  %2952 = vmatpush1.msra.mxu0 0.0
  %2953 = vmatprep.subr.mxu0 0.0
  %2954 = vmatpush1.msra.mxu0 0.0
  %2955 = vmatprep.subr.mxu0 0.0
  %2956 = vmatpush1.msra.mxu0 0.0
  %2957 = vmatprep.subr.mxu0 0.0
  %2958 = vmatpush1.msra.mxu0 0.0
  %2959 = vmatprep.subr.mxu0 0.0
  %2960 = vmatpush1.msra.mxu0 0.0
  %2961 = vmatprep.subr.mxu0 0.0
  %2962 = vmatpush1.msra.mxu0 0.0
  %2963 = vmatprep.subr.mxu0 0.0
  %2964 = vmatpush1.msra.mxu0 0.0
  %2965 = vmatprep.subr.mxu0 0.0
  %2966 = vmatpush1.msra.mxu0 0.0
  %2967 = vmatprep.subr.mxu0 0.0
  %2968 = vmatpush1.msra.mxu0 0.0
  %2969 = vmatprep.subr.mxu0 0.0
  %2970 = vmatpush1.msra.mxu0 0.0
  %2971 = vmatprep.subr.mxu0 0.0
  %2972 = vmatpush1.msra.mxu0 0.0
  %2973 = vmatprep.subr.mxu0 0.0
  %2974 = vmatpush1.msra.mxu0 0.0
  %2975 = vmatprep.subr.mxu0 0.0
  %2976 = vmatpush1.msra.mxu0 0.0
  %2977 = vmatprep.subr.mxu0 0.0
  %2978 = vmatpush1.msra.mxu0 0.0
  %2979 = vmatprep.subr.mxu0 0.0
  %2980 = vmatpush1.msra.mxu0 0.0
  %2981 = vmatprep.subr.mxu0 0.0
  %2982 = vmatpush1.msra.mxu0 0.0
  %2983 = vmatprep.subr.mxu0 0.0
  %2984 = vmatpush1.msra.mxu0 0.0
  %2985 = vmatprep.subr.mxu0 0.0
  %2986 = vmatpush1.msra.mxu0 0.0
  %2987 = vmatprep.subr.mxu0 0.0
  %2988 = vmatpush1.msra.mxu0 0.0
  %2989 = vmatprep.subr.mxu0 0.0
  %2990 = vmatpush1.msra.mxu0 0.0
  %2991 = vmatprep.mubr.f32.mxu0 0.0
  %2992 = vmatmul.mubr.f32.gmra.mrb[0].mxu0 %v2925
  %v2993 = vpop.f32.mrb[0].mxu0
  %v2994 = vadd.f32 0.0, %v2993
  %v2995 = vpop.f32.mrb[0].mxu0
  %2996 = vdwg.mxu0
  %v2998 = vsel %vm1798, %v2557, 0
  %3000 = vmatprep.subr.mxu0 0.0
  %3001 = vmatpush1.msra.mxu0 %v354
  %3002 = vmatprep.subr.mxu0 0.0
  %3003 = vmatpush1.msra.mxu0 0.0
  %3004 = vmatprep.subr.mxu0 0.0
  %3005 = vmatpush1.msra.mxu0 0.0
  %3006 = vmatprep.subr.mxu0 0.0
  %3007 = vmatpush1.msra.mxu0 0.0
  %3008 = vmatprep.subr.mxu0 0.0
  %3009 = vmatpush1.msra.mxu0 0.0
  %3010 = vmatprep.subr.mxu0 0.0
  %3011 = vmatpush1.msra.mxu0 0.0
  %3012 = vmatprep.subr.mxu0 0.0
  %3013 = vmatpush1.msra.mxu0 0.0
  %3014 = vmatprep.subr.mxu0 0.0
  %3015 = vmatpush1.msra.mxu0 0.0
  %3016 = vmatprep.subr.mxu0 0.0
  %3017 = vmatpush1.msra.mxu0 0.0
  %3018 = vmatprep.subr.mxu0 0.0
  %3019 = vmatpush1.msra.mxu0 0.0
  %3020 = vmatprep.subr.mxu0 0.0
  %3021 = vmatpush1.msra.mxu0 0.0
  %3022 = vmatprep.subr.mxu0 0.0
  %3023 = vmatpush1.msra.mxu0 0.0
  %3024 = vmatprep.subr.mxu0 0.0
  %3025 = vmatpush1.msra.mxu0 0.0
  %3026 = vmatprep.subr.mxu0 0.0
  %3027 = vmatpush1.msra.mxu0 0.0
  %3028 = vmatprep.subr.mxu0 0.0
  %3029 = vmatpush1.msra.mxu0 0.0
  %3030 = vmatprep.subr.mxu0 0.0
  %3031 = vmatpush1.msra.mxu0 0.0
  %3032 = vmatprep.subr.mxu0 0.0
  %3033 = vmatpush1.msra.mxu0 0.0
  %3034 = vmatprep.subr.mxu0 0.0
  %3035 = vmatpush1.msra.mxu0 0.0
  %3036 = vmatprep.subr.mxu0 0.0
  %3037 = vmatpush1.msra.mxu0 0.0
  %3038 = vmatprep.subr.mxu0 0.0
  %3039 = vmatpush1.msra.mxu0 0.0
  %3040 = vmatprep.subr.mxu0 0.0
  %3041 = vmatpush1.msra.mxu0 0.0
  %3042 = vmatprep.subr.mxu0 0.0
  %3043 = vmatpush1.msra.mxu0 0.0
  %3044 = vmatprep.subr.mxu0 0.0
  %3045 = vmatpush1.msra.mxu0 0.0
  %3046 = vmatprep.subr.mxu0 0.0
  %3047 = vmatpush1.msra.mxu0 0.0
  %3048 = vmatprep.subr.mxu0 0.0
  %3049 = vmatpush1.msra.mxu0 0.0
  %3050 = vmatprep.subr.mxu0 0.0
  %3051 = vmatpush1.msra.mxu0 0.0
  %3052 = vmatprep.subr.mxu0 0.0
  %3053 = vmatpush1.msra.mxu0 0.0
  %3054 = vmatprep.subr.mxu0 0.0
  %3055 = vmatpush1.msra.mxu0 0.0
  %3056 = vmatprep.subr.mxu0 0.0
  %3057 = vmatpush1.msra.mxu0 0.0
  %3058 = vmatprep.subr.mxu0 0.0
  %3059 = vmatpush1.msra.mxu0 0.0
  %3060 = vmatprep.subr.mxu0 0.0
  %3061 = vmatpush1.msra.mxu0 0.0
  %3062 = vmatprep.subr.mxu0 0.0
  %3063 = vmatpush1.msra.mxu0 0.0
  %3064 = vmatprep.mubr.f32.mxu0 0.0
  %3065 = vmatmul.mubr.f32.gmra.mrb[0].mxu0 %v2998
  %v3066 = vpop.f32.mrb[0].mxu0
  %v3067 = vadd.f32 0.0, %v3066
  %v3068 = vpop.f32.mrb[0].mxu0
  %3069 = vdwg.mxu0
  %v3071 = vsel %vm1798, %v2558, 0
  %3073 = vmatprep.subr.mxu0 0.0
  %3074 = vmatpush1.msra.mxu0 %v355
  %3075 = vmatprep.subr.mxu0 0.0
  %3076 = vmatpush1.msra.mxu0 0.0
  %3077 = vmatprep.subr.mxu0 0.0
  %3078 = vmatpush1.msra.mxu0 0.0
  %3079 = vmatprep.subr.mxu0 0.0
  %3080 = vmatpush1.msra.mxu0 0.0
  %3081 = vmatprep.subr.mxu0 0.0
  %3082 = vmatpush1.msra.mxu0 0.0
  %3083 = vmatprep.subr.mxu0 0.0
  %3084 = vmatpush1.msra.mxu0 0.0
  %3085 = vmatprep.subr.mxu0 0.0
  %3086 = vmatpush1.msra.mxu0 0.0
  %3087 = vmatprep.subr.mxu0 0.0
  %3088 = vmatpush1.msra.mxu0 0.0
  %3089 = vmatprep.subr.mxu0 0.0
  %3090 = vmatpush1.msra.mxu0 0.0
  %3091 = vmatprep.subr.mxu0 0.0
  %3092 = vmatpush1.msra.mxu0 0.0
  %3093 = vmatprep.subr.mxu0 0.0
  %3094 = vmatpush1.msra.mxu0 0.0
  %3095 = vmatprep.subr.mxu0 0.0
  %3096 = vmatpush1.msra.mxu0 0.0
  %3097 = vmatprep.subr.mxu0 0.0
  %3098 = vmatpush1.msra.mxu0 0.0
  %3099 = vmatprep.subr.mxu0 0.0
  %3100 = vmatpush1.msra.mxu0 0.0
  %3101 = vmatprep.subr.mxu0 0.0
  %3102 = vmatpush1.msra.mxu0 0.0
  %3103 = vmatprep.subr.mxu0 0.0
  %3104 = vmatpush1.msra.mxu0 0.0
  %3105 = vmatprep.subr.mxu0 0.0
  %3106 = vmatpush1.msra.mxu0 0.0
  %3107 = vmatprep.subr.mxu0 0.0
  %3108 = vmatpush1.msra.mxu0 0.0
  %3109 = vmatprep.subr.mxu0 0.0
  %3110 = vmatpush1.msra.mxu0 0.0
  %3111 = vmatprep.subr.mxu0 0.0
  %3112 = vmatpush1.msra.mxu0 0.0
  %3113 = vmatprep.subr.mxu0 0.0
  %3114 = vmatpush1.msra.mxu0 0.0
  %3115 = vmatprep.subr.mxu0 0.0
  %3116 = vmatpush1.msra.mxu0 0.0
  %3117 = vmatprep.subr.mxu0 0.0
  %3118 = vmatpush1.msra.mxu0 0.0
  %3119 = vmatprep.subr.mxu0 0.0
  %3120 = vmatpush1.msra.mxu0 0.0
  %3121 = vmatprep.subr.mxu0 0.0
  %3122 = vmatpush1.msra.mxu0 0.0
  %3123 = vmatprep.subr.mxu0 0.0
  %3124 = vmatpush1.msra.mxu0 0.0
  %3125 = vmatprep.subr.mxu0 0.0
  %3126 = vmatpush1.msra.mxu0 0.0
  %3127 = vmatprep.subr.mxu0 0.0
  %3128 = vmatpush1.msra.mxu0 0.0
  %3129 = vmatprep.subr.mxu0 0.0
  %3130 = vmatpush1.msra.mxu0 0.0
  %3131 = vmatprep.subr.mxu0 0.0
  %3132 = vmatpush1.msra.mxu0 0.0
  %3133 = vmatprep.subr.mxu0 0.0
  %3134 = vmatpush1.msra.mxu0 0.0
  %3135 = vmatprep.subr.mxu0 0.0
  %3136 = vmatpush1.msra.mxu0 0.0
  %3137 = vmatprep.mubr.f32.mxu0 0.0
  %3138 = vmatmul.mubr.f32.gmra.mrb[0].mxu0 %v3071
  %v3139 = vpop.f32.mrb[0].mxu0
  %v3140 = vadd.f32 0.0, %v3139
  %v3141 = vpop.f32.mrb[0].mxu0
  %3142 = vdwg.mxu0
  %v3144 = vsel %vm77, %v1957, 0
  %v3147 = vsel %vm77, %v2030, 0
  %v3150 = vsel %vm77, %v2103, 0
  %v3153 = vsel %vm77, %v2176, 0
  %v3156 = vsel %vm77, %v2249, 0
  %v3159 = vsel %vm77, %v2322, 0
  %v3162 = vsel %vm77, %v2395, 0
  %v3165 = vsel %vm77, %v2468, 0
  %3167 = vmatprep.subr.mxu0 0.0
  %3168 = vmatpush1.msra.mxu0 %v32
  %3169 = vmatprep.subr.mxu0 0.0
  %3170 = vmatpush1.msra.mxu0 %v33
  %3171 = vmatprep.subr.mxu0 0.0
  %3172 = vmatpush1.msra.mxu0 %v34
  %3173 = vmatprep.subr.mxu0 0.0
  %3174 = vmatpush1.msra.mxu0 %v35
  %3175 = vmatprep.subr.mxu0 0.0
  %3176 = vmatpush1.msra.mxu0 0.0
  %3177 = vmatprep.subr.mxu0 0.0
  %3178 = vmatpush1.msra.mxu0 0.0
  %3179 = vmatprep.subr.mxu0 0.0
  %3180 = vmatpush1.msra.mxu0 0.0
  %3181 = vmatprep.subr.mxu0 0.0
  %3182 = vmatpush1.msra.mxu0 0.0
  %3183 = vmatprep.subr.mxu0 0.0
  %3184 = vmatpush1.msra.mxu0 0.0
  %3185 = vmatprep.subr.mxu0 0.0
  %3186 = vmatpush1.msra.mxu0 0.0
  %3187 = vmatprep.subr.mxu0 0.0
  %3188 = vmatpush1.msra.mxu0 0.0
  %3189 = vmatprep.subr.mxu0 0.0
  %3190 = vmatpush1.msra.mxu0 0.0
  %3191 = vmatprep.subr.mxu0 0.0
  %3192 = vmatpush1.msra.mxu0 0.0
  %3193 = vmatprep.subr.mxu0 0.0
  %3194 = vmatpush1.msra.mxu0 0.0
  %3195 = vmatprep.subr.mxu0 0.0
  %3196 = vmatpush1.msra.mxu0 0.0
  %3197 = vmatprep.subr.mxu0 0.0
  %3198 = vmatpush1.msra.mxu0 0.0
  %3199 = vmatprep.subr.mxu0 0.0
  %3200 = vmatpush1.msra.mxu0 0.0
  %3201 = vmatprep.subr.mxu0 0.0
  %3202 = vmatpush1.msra.mxu0 0.0
  %3203 = vmatprep.subr.mxu0 0.0
  %3204 = vmatpush1.msra.mxu0 0.0
  %3205 = vmatprep.subr.mxu0 0.0
  %3206 = vmatpush1.msra.mxu0 0.0
  %3207 = vmatprep.subr.mxu0 0.0
  %3208 = vmatpush1.msra.mxu0 0.0
  %3209 = vmatprep.subr.mxu0 0.0
  %3210 = vmatpush1.msra.mxu0 0.0
  %3211 = vmatprep.subr.mxu0 0.0
  %3212 = vmatpush1.msra.mxu0 0.0
  %3213 = vmatprep.subr.mxu0 0.0
  %3214 = vmatpush1.msra.mxu0 0.0
  %3215 = vmatprep.subr.mxu0 0.0
  %3216 = vmatpush1.msra.mxu0 0.0
  %3217 = vmatprep.subr.mxu0 0.0
  %3218 = vmatpush1.msra.mxu0 0.0
  %3219 = vmatprep.subr.mxu0 0.0
  %3220 = vmatpush1.msra.mxu0 0.0
  %3221 = vmatprep.subr.mxu0 0.0
  %3222 = vmatpush1.msra.mxu0 0.0
  %3223 = vmatprep.subr.mxu0 0.0
  %3224 = vmatpush1.msra.mxu0 0.0
  %3225 = vmatprep.subr.mxu0 0.0
  %3226 = vmatpush1.msra.mxu0 0.0
  %3227 = vmatprep.subr.mxu0 0.0
  %3228 = vmatpush1.msra.mxu0 0.0
  %3229 = vmatprep.subr.mxu0 0.0
  %3230 = vmatpush1.msra.mxu0 0.0
  %3231 = vmatprep.mubr.f32.mxu0 0.0
  %3232 = vmatmul.mubr.f32.gmra.mrb[0].mxu0 %v3144
  %v3233 = vpop.f32.mrb[0].mxu0
  %v3234 = vadd.f32 0.0, %v3233
  %v3235 = vpop.f32.mrb[0].mxu0
  %3236 = vmatprep.mubr.f32.mxu0 0.0
  %3237 = vmatmul.mubr.f32.gmra.mrb[0].mxu0 %v3147
  %v3238 = vpop.f32.mrb[0].mxu0
  %v3239 = vadd.f32 0.0, %v3238
  %v3240 = vpop.f32.mrb[0].mxu0
  %3241 = vmatprep.mubr.f32.mxu0 0.0
  %3242 = vmatmul.mubr.f32.gmra.mrb[0].mxu0 %v3150
  %v3243 = vpop.f32.mrb[0].mxu0
  %v3244 = vadd.f32 0.0, %v3243
  %v3245 = vpop.f32.mrb[0].mxu0
  %3246 = vmatprep.mubr.f32.mxu0 0.0
  %3247 = vmatmul.mubr.f32.gmra.mrb[0].mxu0 %v3153
  %v3248 = vpop.f32.mrb[0].mxu0
  %v3249 = vadd.f32 0.0, %v3248
  %v3250 = vpop.f32.mrb[0].mxu0
  %3251 = vmatprep.mubr.f32.mxu0 0.0
  %3252 = vmatmul.mubr.f32.gmra.mrb[0].mxu0 %v3156
  %v3253 = vpop.f32.mrb[0].mxu0
  %v3254 = vadd.f32 0.0, %v3253
  %v3255 = vpop.f32.mrb[0].mxu0
  %3256 = vmatprep.mubr.f32.mxu0 0.0
  %3257 = vmatmul.mubr.f32.gmra.mrb[0].mxu0 %v3159
  %v3258 = vpop.f32.mrb[0].mxu0
  %v3259 = vadd.f32 0.0, %v3258
  %v3260 = vpop.f32.mrb[0].mxu0
  %3261 = vmatprep.mubr.f32.mxu0 0.0
  %3262 = vmatmul.mubr.f32.gmra.mrb[0].mxu0 %v3162
  %v3263 = vpop.f32.mrb[0].mxu0
  %v3264 = vadd.f32 0.0, %v3263
  %v3265 = vpop.f32.mrb[0].mxu0
  %3266 = vmatprep.mubr.f32.mxu0 0.0
  %3267 = vmatmul.mubr.f32.gmra.mrb[0].mxu0 %v3165
  %v3268 = vpop.f32.mrb[0].mxu0
  %v3269 = vadd.f32 0.0, %v3268
  %v3270 = vpop.f32.mrb[0].mxu0
  %3271 = vdwg.mxu0
  %3272 = vmatprep.subr.mxu0 0.0
  %3273 = vmatpush1.msra.mxu0 %v27
  %3274 = vmatprep.subr.mxu0 0.0
  %3275 = vmatpush1.msra.mxu0 %v28
  %3276 = vmatprep.subr.mxu0 0.0
  %3277 = vmatpush1.msra.mxu0 %v29
  %3278 = vmatprep.subr.mxu0 0.0
  %3279 = vmatpush1.msra.mxu0 %v30
  %3280 = vmatprep.subr.mxu0 0.0
  %3281 = vmatpush1.msra.mxu0 0.0
  %3282 = vmatprep.subr.mxu0 0.0
  %3283 = vmatpush1.msra.mxu0 0.0
  %3284 = vmatprep.subr.mxu0 0.0
  %3285 = vmatpush1.msra.mxu0 0.0
  %3286 = vmatprep.subr.mxu0 0.0
  %3287 = vmatpush1.msra.mxu0 0.0
  %3288 = vmatprep.subr.mxu0 0.0
  %3289 = vmatpush1.msra.mxu0 0.0
  %3290 = vmatprep.subr.mxu0 0.0
  %3291 = vmatpush1.msra.mxu0 0.0
  %3292 = vmatprep.subr.mxu0 0.0
  %3293 = vmatpush1.msra.mxu0 0.0
  %3294 = vmatprep.subr.mxu0 0.0
  %3295 = vmatpush1.msra.mxu0 0.0
  %3296 = vmatprep.subr.mxu0 0.0
  %3297 = vmatpush1.msra.mxu0 0.0
  %3298 = vmatprep.subr.mxu0 0.0
  %3299 = vmatpush1.msra.mxu0 0.0
  %3300 = vmatprep.subr.mxu0 0.0
  %3301 = vmatpush1.msra.mxu0 0.0
  %3302 = vmatprep.subr.mxu0 0.0
  %3303 = vmatpush1.msra.mxu0 0.0
  %3304 = vmatprep.subr.mxu0 0.0
  %3305 = vmatpush1.msra.mxu0 0.0
  %3306 = vmatprep.subr.mxu0 0.0
  %3307 = vmatpush1.msra.mxu0 0.0
  %3308 = vmatprep.subr.mxu0 0.0
  %3309 = vmatpush1.msra.mxu0 0.0
  %3310 = vmatprep.subr.mxu0 0.0
  %3311 = vmatpush1.msra.mxu0 0.0
  %3312 = vmatprep.subr.mxu0 0.0
  %3313 = vmatpush1.msra.mxu0 0.0
  %3314 = vmatprep.subr.mxu0 0.0
  %3315 = vmatpush1.msra.mxu0 0.0
  %3316 = vmatprep.subr.mxu0 0.0
  %3317 = vmatpush1.msra.mxu0 0.0
  %3318 = vmatprep.subr.mxu0 0.0
  %3319 = vmatpush1.msra.mxu0 0.0
  %3320 = vmatprep.subr.mxu0 0.0
  %3321 = vmatpush1.msra.mxu0 0.0
  %3322 = vmatprep.subr.mxu0 0.0
  %3323 = vmatpush1.msra.mxu0 0.0
  %3324 = vmatprep.subr.mxu0 0.0
  %3325 = vmatpush1.msra.mxu0 0.0
  %3326 = vmatprep.subr.mxu0 0.0
  %3327 = vmatpush1.msra.mxu0 0.0
  %3328 = vmatprep.subr.mxu0 0.0
  %3329 = vmatpush1.msra.mxu0 0.0
  %3330 = vmatprep.subr.mxu0 0.0
  %3331 = vmatpush1.msra.mxu0 0.0
  %3332 = vmatprep.subr.mxu0 0.0
  %3333 = vmatpush1.msra.mxu0 0.0
  %3334 = vmatprep.subr.mxu0 0.0
  %3335 = vmatpush1.msra.mxu0 0.0
  %3336 = vmatprep.mubr.f32.mxu0 0.0
  %3337 = vmatmul.mubr.f32.gmra.mrb[0].mxu0 %v631
  %v3338 = vpop.f32.mrb[0].mxu0
  %v3339 = vadd.f32 %v3234, %v3338
  %v3340 = vpop.f32.mrb[0].mxu0
  %3341 = vmatprep.mubr.f32.mxu0 0.0
  %3342 = vmatmul.mubr.f32.gmra.mrb[0].mxu0 %v707
  %v3343 = vpop.f32.mrb[0].mxu0
  %v3344 = vadd.f32 %v3239, %v3343
  %v3345 = vpop.f32.mrb[0].mxu0
  %3346 = vmatprep.mubr.f32.mxu0 0.0
  %3347 = vmatmul.mubr.f32.gmra.mrb[0].mxu0 %v783
  %v3348 = vpop.f32.mrb[0].mxu0
  %v3349 = vadd.f32 %v3244, %v3348
  %v3350 = vpop.f32.mrb[0].mxu0
  %3351 = vmatprep.mubr.f32.mxu0 0.0
  %3352 = vmatmul.mubr.f32.gmra.mrb[0].mxu0 %v859
  %v3353 = vpop.f32.mrb[0].mxu0
  %v3354 = vadd.f32 %v3249, %v3353
  %v3355 = vpop.f32.mrb[0].mxu0
  %3356 = vmatprep.mubr.f32.mxu0 0.0
  %3357 = vmatmul.mubr.f32.gmra.mrb[0].mxu0 %v935
  %v3358 = vpop.f32.mrb[0].mxu0
  %v3359 = vadd.f32 %v3254, %v3358
  %v3360 = vpop.f32.mrb[0].mxu0
  %3361 = vmatprep.mubr.f32.mxu0 0.0
  %3362 = vmatmul.mubr.f32.gmra.mrb[0].mxu0 %v1011
  %v3363 = vpop.f32.mrb[0].mxu0
  %v3364 = vadd.f32 %v3259, %v3363
  %v3365 = vpop.f32.mrb[0].mxu0
  %3366 = vmatprep.mubr.f32.mxu0 0.0
  %3367 = vmatmul.mubr.f32.gmra.mrb[0].mxu0 %v1087
  %v3368 = vpop.f32.mrb[0].mxu0
  %v3369 = vadd.f32 %v3264, %v3368
  %v3370 = vpop.f32.mrb[0].mxu0
  %3371 = vmatprep.mubr.f32.mxu0 0.0
  %3372 = vmatmul.mubr.f32.gmra.mrb[0].mxu0 %v1163
  %v3373 = vpop.f32.mrb[0].mxu0
  %v3374 = vadd.f32 %v3269, %v3373
  %v3375 = vpop.f32.mrb[0].mxu0
  %3376 = vdwg.mxu0
  %v3377 = vlaneseq
  %v3378 = vshrl.u32 %v3377, 7
  %v3379 = vsub.s32 2, %v3378
  %v3380 = vrot.slane %v56, %v3379
  %v3381 = vadd.f32 %v3339, %v3380
  %v3382 = vadd.f32 %v3344, %v3380
  %v3383 = vadd.f32 %v3349, %v3380
  %v3384 = vadd.f32 %v3354, %v3380
  %v3385 = vadd.f32 %v3359, %v3380
  %v3386 = vadd.f32 %v3364, %v3380
  %v3387 = vadd.f32 %v3369, %v3380
  %v3388 = vadd.f32 %v3374, %v3380
  %v3389 = vmax.f32 %v3381, 0.0
  %v3390 = vmax.f32 %v3382, 0.0
  %v3391 = vmax.f32 %v3383, 0.0
  %v3392 = vmax.f32 %v3384, 0.0
  %v3393 = vmax.f32 %v3385, 0.0
  %v3394 = vmax.f32 %v3386, 0.0
  %v3395 = vmax.f32 %v3387, 0.0
  %v3396 = vmax.f32 %v3388, 0.0
  %v3397 = vlaneseq
  %v3398 = vshrl.u32 %v3397, 7
  %v3399 = vsub.s32 3, %v3398
  %v3400 = vrot.slane %v56, %v3399
  %v3402 = vsel %vm77, %v3389, 0
  %v3405 = vsel %vm77, %v3390, 0
  %v3408 = vsel %vm77, %v3391, 0
  %v3411 = vsel %vm77, %v3392, 0
  %v3414 = vsel %vm77, %v3393, 0
  %v3417 = vsel %vm77, %v3394, 0
  %v3420 = vsel %vm77, %v3395, 0
  %v3423 = vsel %vm77, %v3396, 0
  %3425 = vmatprep.subr.mxu0 0.0
  %3426 = vmatpush1.msra.mxu0 %v37
  %3427 = vmatprep.subr.mxu0 0.0
  %3428 = vmatpush1.msra.mxu0 %v38
  %3429 = vmatprep.subr.mxu0 0.0
  %3430 = vmatpush1.msra.mxu0 %v39
  %3431 = vmatprep.subr.mxu0 0.0
  %3432 = vmatpush1.msra.mxu0 %v40
  %3433 = vmatprep.subr.mxu0 0.0
  %3434 = vmatpush1.msra.mxu0 0.0
  %3435 = vmatprep.subr.mxu0 0.0
  %3436 = vmatpush1.msra.mxu0 0.0
  %3437 = vmatprep.subr.mxu0 0.0
  %3438 = vmatpush1.msra.mxu0 0.0
  %3439 = vmatprep.subr.mxu0 0.0
  %3440 = vmatpush1.msra.mxu0 0.0
  %3441 = vmatprep.subr.mxu0 0.0
  %3442 = vmatpush1.msra.mxu0 0.0
  %3443 = vmatprep.subr.mxu0 0.0
  %3444 = vmatpush1.msra.mxu0 0.0
  %3445 = vmatprep.subr.mxu0 0.0
  %3446 = vmatpush1.msra.mxu0 0.0
  %3447 = vmatprep.subr.mxu0 0.0
  %3448 = vmatpush1.msra.mxu0 0.0
  %3449 = vmatprep.subr.mxu0 0.0
  %3450 = vmatpush1.msra.mxu0 0.0
  %3451 = vmatprep.subr.mxu0 0.0
  %3452 = vmatpush1.msra.mxu0 0.0
  %3453 = vmatprep.subr.mxu0 0.0
  %3454 = vmatpush1.msra.mxu0 0.0
  %3455 = vmatprep.subr.mxu0 0.0
  %3456 = vmatpush1.msra.mxu0 0.0
  %3457 = vmatprep.subr.mxu0 0.0
  %3458 = vmatpush1.msra.mxu0 0.0
  %3459 = vmatprep.subr.mxu0 0.0
  %3460 = vmatpush1.msra.mxu0 0.0
  %3461 = vmatprep.subr.mxu0 0.0
  %3462 = vmatpush1.msra.mxu0 0.0
  %3463 = vmatprep.subr.mxu0 0.0
  %3464 = vmatpush1.msra.mxu0 0.0
  %3465 = vmatprep.subr.mxu0 0.0
  %3466 = vmatpush1.msra.mxu0 0.0
  %3467 = vmatprep.subr.mxu0 0.0
  %3468 = vmatpush1.msra.mxu0 0.0
  %3469 = vmatprep.subr.mxu0 0.0
  %3470 = vmatpush1.msra.mxu0 0.0
  %3471 = vmatprep.subr.mxu0 0.0
  %3472 = vmatpush1.msra.mxu0 0.0
  %3473 = vmatprep.subr.mxu0 0.0
  %3474 = vmatpush1.msra.mxu0 0.0
  %3475 = vmatprep.subr.mxu0 0.0
  %3476 = vmatpush1.msra.mxu0 0.0
  %3477 = vmatprep.subr.mxu0 0.0
  %3478 = vmatpush1.msra.mxu0 0.0
  %3479 = vmatprep.subr.mxu0 0.0
  %3480 = vmatpush1.msra.mxu0 0.0
  %3481 = vmatprep.subr.mxu0 0.0
  %3482 = vmatpush1.msra.mxu0 0.0
  %3483 = vmatprep.subr.mxu0 0.0
  %3484 = vmatpush1.msra.mxu0 0.0
  %3485 = vmatprep.subr.mxu0 0.0
  %3486 = vmatpush1.msra.mxu0 0.0
  %3487 = vmatprep.subr.mxu0 0.0
  %3488 = vmatpush1.msra.mxu0 0.0
  %3489 = vmatprep.mubr.f32.mxu0 0.0
  %3490 = vmatmul.mubr.f32.gmra.mrb[0].mxu0 %v3402
  %v3491 = vpop.f32.mrb[0].mxu0
  %v3492 = vadd.f32 %v3400, %v3491
  %v3493 = vpop.f32.mrb[0].mxu0
  %3494 = vmatprep.mubr.f32.mxu0 0.0
  %3495 = vmatmul.mubr.f32.gmra.mrb[0].mxu0 %v3405
  %v3496 = vpop.f32.mrb[0].mxu0
  %v3497 = vadd.f32 %v3400, %v3496
  %v3498 = vpop.f32.mrb[0].mxu0
  %3499 = vmatprep.mubr.f32.mxu0 0.0
  %3500 = vmatmul.mubr.f32.gmra.mrb[0].mxu0 %v3408
  %v3501 = vpop.f32.mrb[0].mxu0
  %v3502 = vadd.f32 %v3400, %v3501
  %v3503 = vpop.f32.mrb[0].mxu0
  %3504 = vmatprep.mubr.f32.mxu0 0.0
  %3505 = vmatmul.mubr.f32.gmra.mrb[0].mxu0 %v3411
  %v3506 = vpop.f32.mrb[0].mxu0
  %v3507 = vadd.f32 %v3400, %v3506
  %v3508 = vpop.f32.mrb[0].mxu0
  %3509 = vmatprep.mubr.f32.mxu0 0.0
  %3510 = vmatmul.mubr.f32.gmra.mrb[0].mxu0 %v3414
  %v3511 = vpop.f32.mrb[0].mxu0
  %v3512 = vadd.f32 %v3400, %v3511
  %v3513 = vpop.f32.mrb[0].mxu0
  %3514 = vmatprep.mubr.f32.mxu0 0.0
  %3515 = vmatmul.mubr.f32.gmra.mrb[0].mxu0 %v3417
  %v3516 = vpop.f32.mrb[0].mxu0
  %v3517 = vadd.f32 %v3400, %v3516
  %v3518 = vpop.f32.mrb[0].mxu0
  %3519 = vmatprep.mubr.f32.mxu0 0.0
  %3520 = vmatmul.mubr.f32.gmra.mrb[0].mxu0 %v3420
  %v3521 = vpop.f32.mrb[0].mxu0
  %v3522 = vadd.f32 %v3400, %v3521
  %v3523 = vpop.f32.mrb[0].mxu0
  %3524 = vmatprep.mubr.f32.mxu0 0.0
  %3525 = vmatmul.mubr.f32.gmra.mrb[0].mxu0 %v3423
  %v3526 = vpop.f32.mrb[0].mxu0
  %v3527 = vadd.f32 %v3400, %v3526
  %v3528 = vpop.f32.mrb[0].mxu0
  %3529 = vdwg.mxu0
  %v3530 = vmax.f32 %v3492, 0.0
  %v3531 = vmax.f32 %v3497, 0.0
  %v3532 = vmax.f32 %v3502, 0.0
  %v3533 = vmax.f32 %v3507, 0.0
  %v3534 = vmax.f32 %v3512, 0.0
  %v3535 = vmax.f32 %v3517, 0.0
  %v3536 = vmax.f32 %v3522, 0.0
  %v3537 = vmax.f32 %v3527, 0.0
  %v3539 = vsel %vm77, %v2629, 0
  %v3542 = vsel %vm77, %v2702, 0
  %v3545 = vsel %vm77, %v2775, 0
  %v3548 = vsel %vm77, %v2848, 0
  %v3551 = vsel %vm77, %v2921, 0
  %v3554 = vsel %vm77, %v2994, 0
  %v3557 = vsel %vm77, %v3067, 0
  %v3560 = vsel %vm77, %v3140, 0
  %3562 = vmatprep.subr.mxu0 0.0
  %3563 = vmatpush1.msra.mxu0 %v32
  %3564 = vmatprep.subr.mxu0 0.0
  %3565 = vmatpush1.msra.mxu0 %v33
  %3566 = vmatprep.subr.mxu0 0.0
  %3567 = vmatpush1.msra.mxu0 %v34
  %3568 = vmatprep.subr.mxu0 0.0
  %3569 = vmatpush1.msra.mxu0 %v35
  %3570 = vmatprep.subr.mxu0 0.0
  %3571 = vmatpush1.msra.mxu0 0.0
  %3572 = vmatprep.subr.mxu0 0.0
  %3573 = vmatpush1.msra.mxu0 0.0
  %3574 = vmatprep.subr.mxu0 0.0
  %3575 = vmatpush1.msra.mxu0 0.0
  %3576 = vmatprep.subr.mxu0 0.0
  %3577 = vmatpush1.msra.mxu0 0.0
  %3578 = vmatprep.subr.mxu0 0.0
  %3579 = vmatpush1.msra.mxu0 0.0
  %3580 = vmatprep.subr.mxu0 0.0
  %3581 = vmatpush1.msra.mxu0 0.0
  %3582 = vmatprep.subr.mxu0 0.0
  %3583 = vmatpush1.msra.mxu0 0.0
  %3584 = vmatprep.subr.mxu0 0.0
  %3585 = vmatpush1.msra.mxu0 0.0
  %3586 = vmatprep.subr.mxu0 0.0
  %3587 = vmatpush1.msra.mxu0 0.0
  %3588 = vmatprep.subr.mxu0 0.0
  %3589 = vmatpush1.msra.mxu0 0.0
  %3590 = vmatprep.subr.mxu0 0.0
  %3591 = vmatpush1.msra.mxu0 0.0
  %3592 = vmatprep.subr.mxu0 0.0
  %3593 = vmatpush1.msra.mxu0 0.0
  %3594 = vmatprep.subr.mxu0 0.0
  %3595 = vmatpush1.msra.mxu0 0.0
  %3596 = vmatprep.subr.mxu0 0.0
  %3597 = vmatpush1.msra.mxu0 0.0
  %3598 = vmatprep.subr.mxu0 0.0
  %3599 = vmatpush1.msra.mxu0 0.0
  %3600 = vmatprep.subr.mxu0 0.0
  %3601 = vmatpush1.msra.mxu0 0.0
  %3602 = vmatprep.subr.mxu0 0.0
  %3603 = vmatpush1.msra.mxu0 0.0
  %3604 = vmatprep.subr.mxu0 0.0
  %3605 = vmatpush1.msra.mxu0 0.0
  %3606 = vmatprep.subr.mxu0 0.0
  %3607 = vmatpush1.msra.mxu0 0.0
  %3608 = vmatprep.subr.mxu0 0.0
  %3609 = vmatpush1.msra.mxu0 0.0
  %3610 = vmatprep.subr.mxu0 0.0
  %3611 = vmatpush1.msra.mxu0 0.0
  %3612 = vmatprep.subr.mxu0 0.0
  %3613 = vmatpush1.msra.mxu0 0.0
  %3614 = vmatprep.subr.mxu0 0.0
  %3615 = vmatpush1.msra.mxu0 0.0
  %3616 = vmatprep.subr.mxu0 0.0
  %3617 = vmatpush1.msra.mxu0 0.0
  %3618 = vmatprep.subr.mxu0 0.0
  %3619 = vmatpush1.msra.mxu0 0.0
  %3620 = vmatprep.subr.mxu0 0.0
  %3621 = vmatpush1.msra.mxu0 0.0
  %3622 = vmatprep.subr.mxu0 0.0
  %3623 = vmatpush1.msra.mxu0 0.0
  %3624 = vmatprep.subr.mxu0 0.0
  %3625 = vmatpush1.msra.mxu0 0.0
  %3626 = vmatprep.mubr.f32.mxu0 0.0
  %3627 = vmatmul.mubr.f32.gmra.mrb[0].mxu0 %v3539
  %v3628 = vpop.f32.mrb[0].mxu0
  %v3629 = vadd.f32 0.0, %v3628
  %v3630 = vpop.f32.mrb[0].mxu0
  %3631 = vmatprep.mubr.f32.mxu0 0.0
  %3632 = vmatmul.mubr.f32.gmra.mrb[0].mxu0 %v3542
  %v3633 = vpop.f32.mrb[0].mxu0
  %v3634 = vadd.f32 0.0, %v3633
  %v3635 = vpop.f32.mrb[0].mxu0
  %3636 = vmatprep.mubr.f32.mxu0 0.0
  %3637 = vmatmul.mubr.f32.gmra.mrb[0].mxu0 %v3545
  %v3638 = vpop.f32.mrb[0].mxu0
  %v3639 = vadd.f32 0.0, %v3638
  %v3640 = vpop.f32.mrb[0].mxu0
  %3641 = vmatprep.mubr.f32.mxu0 0.0
  %3642 = vmatmul.mubr.f32.gmra.mrb[0].mxu0 %v3548
  %v3643 = vpop.f32.mrb[0].mxu0
  %v3644 = vadd.f32 0.0, %v3643
  %v3645 = vpop.f32.mrb[0].mxu0
  %3646 = vmatprep.mubr.f32.mxu0 0.0
  %3647 = vmatmul.mubr.f32.gmra.mrb[0].mxu0 %v3551
  %v3648 = vpop.f32.mrb[0].mxu0
  %v3649 = vadd.f32 0.0, %v3648
  %v3650 = vpop.f32.mrb[0].mxu0
  %3651 = vmatprep.mubr.f32.mxu0 0.0
  %3652 = vmatmul.mubr.f32.gmra.mrb[0].mxu0 %v3554
  %v3653 = vpop.f32.mrb[0].mxu0
  %v3654 = vadd.f32 0.0, %v3653
  %v3655 = vpop.f32.mrb[0].mxu0
  %3656 = vmatprep.mubr.f32.mxu0 0.0
  %3657 = vmatmul.mubr.f32.gmra.mrb[0].mxu0 %v3557
  %v3658 = vpop.f32.mrb[0].mxu0
  %v3659 = vadd.f32 0.0, %v3658
  %v3660 = vpop.f32.mrb[0].mxu0
  %3661 = vmatprep.mubr.f32.mxu0 0.0
  %3662 = vmatmul.mubr.f32.gmra.mrb[0].mxu0 %v3560
  %v3663 = vpop.f32.mrb[0].mxu0
  %v3664 = vadd.f32 0.0, %v3663
  %v3665 = vpop.f32.mrb[0].mxu0
  %3666 = vdwg.mxu0
  %3667 = vmatprep.subr.mxu0 0.0
  %3668 = vmatpush1.msra.mxu0 %v27
  %3669 = vmatprep.subr.mxu0 0.0
  %3670 = vmatpush1.msra.mxu0 %v28
  %3671 = vmatprep.subr.mxu0 0.0
  %3672 = vmatpush1.msra.mxu0 %v29
  %3673 = vmatprep.subr.mxu0 0.0
  %3674 = vmatpush1.msra.mxu0 %v30
  %3675 = vmatprep.subr.mxu0 0.0
  %3676 = vmatpush1.msra.mxu0 0.0
  %3677 = vmatprep.subr.mxu0 0.0
  %3678 = vmatpush1.msra.mxu0 0.0
  %3679 = vmatprep.subr.mxu0 0.0
  %3680 = vmatpush1.msra.mxu0 0.0
  %3681 = vmatprep.subr.mxu0 0.0
  %3682 = vmatpush1.msra.mxu0 0.0
  %3683 = vmatprep.subr.mxu0 0.0
  %3684 = vmatpush1.msra.mxu0 0.0
  %3685 = vmatprep.subr.mxu0 0.0
  %3686 = vmatpush1.msra.mxu0 0.0
  %3687 = vmatprep.subr.mxu0 0.0
  %3688 = vmatpush1.msra.mxu0 0.0
  %3689 = vmatprep.subr.mxu0 0.0
  %3690 = vmatpush1.msra.mxu0 0.0
  %3691 = vmatprep.subr.mxu0 0.0
  %3692 = vmatpush1.msra.mxu0 0.0
  %3693 = vmatprep.subr.mxu0 0.0
  %3694 = vmatpush1.msra.mxu0 0.0
  %3695 = vmatprep.subr.mxu0 0.0
  %3696 = vmatpush1.msra.mxu0 0.0
  %3697 = vmatprep.subr.mxu0 0.0
  %3698 = vmatpush1.msra.mxu0 0.0
  %3699 = vmatprep.subr.mxu0 0.0
  %3700 = vmatpush1.msra.mxu0 0.0
  %3701 = vmatprep.subr.mxu0 0.0
  %3702 = vmatpush1.msra.mxu0 0.0
  %3703 = vmatprep.subr.mxu0 0.0
  %3704 = vmatpush1.msra.mxu0 0.0
  %3705 = vmatprep.subr.mxu0 0.0
  %3706 = vmatpush1.msra.mxu0 0.0
  %3707 = vmatprep.subr.mxu0 0.0
  %3708 = vmatpush1.msra.mxu0 0.0
  %3709 = vmatprep.subr.mxu0 0.0
  %3710 = vmatpush1.msra.mxu0 0.0
  %3711 = vmatprep.subr.mxu0 0.0
  %3712 = vmatpush1.msra.mxu0 0.0
  %3713 = vmatprep.subr.mxu0 0.0
  %3714 = vmatpush1.msra.mxu0 0.0
  %3715 = vmatprep.subr.mxu0 0.0
  %3716 = vmatpush1.msra.mxu0 0.0
  %3717 = vmatprep.subr.mxu0 0.0
  %3718 = vmatpush1.msra.mxu0 0.0
  %3719 = vmatprep.subr.mxu0 0.0
  %3720 = vmatpush1.msra.mxu0 0.0
  %3721 = vmatprep.subr.mxu0 0.0
  %3722 = vmatpush1.msra.mxu0 0.0
  %3723 = vmatprep.subr.mxu0 0.0
  %3724 = vmatpush1.msra.mxu0 0.0
  %3725 = vmatprep.subr.mxu0 0.0
  %3726 = vmatpush1.msra.mxu0 0.0
  %3727 = vmatprep.subr.mxu0 0.0
  %3728 = vmatpush1.msra.mxu0 0.0
  %3729 = vmatprep.subr.mxu0 0.0
  %3730 = vmatpush1.msra.mxu0 0.0
  %3731 = vmatprep.mubr.f32.mxu0 0.0
  %3732 = vmatmul.mubr.f32.gmra.mrb[0].mxu0 %v634
  %v3733 = vpop.f32.mrb[0].mxu0
  %v3734 = vadd.f32 %v3629, %v3733
  %v3735 = vpop.f32.mrb[0].mxu0
  %3736 = vmatprep.mubr.f32.mxu0 0.0
  %3737 = vmatmul.mubr.f32.gmra.mrb[0].mxu0 %v710
  %v3738 = vpop.f32.mrb[0].mxu0
  %v3739 = vadd.f32 %v3634, %v3738
  %v3740 = vpop.f32.mrb[0].mxu0
  %3741 = vmatprep.mubr.f32.mxu0 0.0
  %3742 = vmatmul.mubr.f32.gmra.mrb[0].mxu0 %v786
  %v3743 = vpop.f32.mrb[0].mxu0
  %v3744 = vadd.f32 %v3639, %v3743
  %v3745 = vpop.f32.mrb[0].mxu0
  %3746 = vmatprep.mubr.f32.mxu0 0.0
  %3747 = vmatmul.mubr.f32.gmra.mrb[0].mxu0 %v862
  %v3748 = vpop.f32.mrb[0].mxu0
  %v3749 = vadd.f32 %v3644, %v3748
  %v3750 = vpop.f32.mrb[0].mxu0
  %3751 = vmatprep.mubr.f32.mxu0 0.0
  %3752 = vmatmul.mubr.f32.gmra.mrb[0].mxu0 %v938
  %v3753 = vpop.f32.mrb[0].mxu0
  %v3754 = vadd.f32 %v3649, %v3753
  %v3755 = vpop.f32.mrb[0].mxu0
  %3756 = vmatprep.mubr.f32.mxu0 0.0
  %3757 = vmatmul.mubr.f32.gmra.mrb[0].mxu0 %v1014
  %v3758 = vpop.f32.mrb[0].mxu0
  %v3759 = vadd.f32 %v3654, %v3758
  %v3760 = vpop.f32.mrb[0].mxu0
  %3761 = vmatprep.mubr.f32.mxu0 0.0
  %3762 = vmatmul.mubr.f32.gmra.mrb[0].mxu0 %v1090
  %v3763 = vpop.f32.mrb[0].mxu0
  %v3764 = vadd.f32 %v3659, %v3763
  %v3765 = vpop.f32.mrb[0].mxu0
  %3766 = vmatprep.mubr.f32.mxu0 0.0
  %3767 = vmatmul.mubr.f32.gmra.mrb[0].mxu0 %v1166
  %v3768 = vpop.f32.mrb[0].mxu0
  %v3769 = vadd.f32 %v3664, %v3768
  %v3770 = vpop.f32.mrb[0].mxu0
  %3771 = vdwg.mxu0
  %v3772 = vadd.f32 %v3734, %v3380
  %v3773 = vadd.f32 %v3739, %v3380
  %v3774 = vadd.f32 %v3744, %v3380
  %v3775 = vadd.f32 %v3749, %v3380
  %v3776 = vadd.f32 %v3754, %v3380
  %v3777 = vadd.f32 %v3759, %v3380
  %v3778 = vadd.f32 %v3764, %v3380
  %v3779 = vadd.f32 %v3769, %v3380
  %v3780 = vmax.f32 %v3772, 0.0
  %v3781 = vmax.f32 %v3773, 0.0
  %v3782 = vmax.f32 %v3774, 0.0
  %v3783 = vmax.f32 %v3775, 0.0
  %v3784 = vmax.f32 %v3776, 0.0
  %v3785 = vmax.f32 %v3777, 0.0
  %v3786 = vmax.f32 %v3778, 0.0
  %v3787 = vmax.f32 %v3779, 0.0
  %v3789 = vsel %vm77, %v3780, 0
  %v3792 = vsel %vm77, %v3781, 0
  %v3795 = vsel %vm77, %v3782, 0
  %v3798 = vsel %vm77, %v3783, 0
  %v3801 = vsel %vm77, %v3784, 0
  %v3804 = vsel %vm77, %v3785, 0
  %v3807 = vsel %vm77, %v3786, 0
  %v3810 = vsel %vm77, %v3787, 0
  %3812 = vmatprep.subr.mxu0 0.0
  %3813 = vmatpush1.msra.mxu0 %v37
  %3814 = vmatprep.subr.mxu0 0.0
  %3815 = vmatpush1.msra.mxu0 %v38
  %3816 = vmatprep.subr.mxu0 0.0
  %3817 = vmatpush1.msra.mxu0 %v39
  %3818 = vmatprep.subr.mxu0 0.0
  %3819 = vmatpush1.msra.mxu0 %v40
  %3820 = vmatprep.subr.mxu0 0.0
  %3821 = vmatpush1.msra.mxu0 0.0
  %3822 = vmatprep.subr.mxu0 0.0
  %3823 = vmatpush1.msra.mxu0 0.0
  %3824 = vmatprep.subr.mxu0 0.0
  %3825 = vmatpush1.msra.mxu0 0.0
  %3826 = vmatprep.subr.mxu0 0.0
  %3827 = vmatpush1.msra.mxu0 0.0
  %3828 = vmatprep.subr.mxu0 0.0
  %3829 = vmatpush1.msra.mxu0 0.0
  %3830 = vmatprep.subr.mxu0 0.0
  %3831 = vmatpush1.msra.mxu0 0.0
  %3832 = vmatprep.subr.mxu0 0.0
  %3833 = vmatpush1.msra.mxu0 0.0
  %3834 = vmatprep.subr.mxu0 0.0
  %3835 = vmatpush1.msra.mxu0 0.0
  %3836 = vmatprep.subr.mxu0 0.0
  %3837 = vmatpush1.msra.mxu0 0.0
  %3838 = vmatprep.subr.mxu0 0.0
  %3839 = vmatpush1.msra.mxu0 0.0
  %3840 = vmatprep.subr.mxu0 0.0
  %3841 = vmatpush1.msra.mxu0 0.0
  %3842 = vmatprep.subr.mxu0 0.0
  %3843 = vmatpush1.msra.mxu0 0.0
  %3844 = vmatprep.subr.mxu0 0.0
  %3845 = vmatpush1.msra.mxu0 0.0
  %3846 = vmatprep.subr.mxu0 0.0
  %3847 = vmatpush1.msra.mxu0 0.0
  %3848 = vmatprep.subr.mxu0 0.0
  %3849 = vmatpush1.msra.mxu0 0.0
  %3850 = vmatprep.subr.mxu0 0.0
  %3851 = vmatpush1.msra.mxu0 0.0
  %3852 = vmatprep.subr.mxu0 0.0
  %3853 = vmatpush1.msra.mxu0 0.0
  %3854 = vmatprep.subr.mxu0 0.0
  %3855 = vmatpush1.msra.mxu0 0.0
  %3856 = vmatprep.subr.mxu0 0.0
  %3857 = vmatpush1.msra.mxu0 0.0
  %3858 = vmatprep.subr.mxu0 0.0
  %3859 = vmatpush1.msra.mxu0 0.0
  %3860 = vmatprep.subr.mxu0 0.0
  %3861 = vmatpush1.msra.mxu0 0.0
  %3862 = vmatprep.subr.mxu0 0.0
  %3863 = vmatpush1.msra.mxu0 0.0
  %3864 = vmatprep.subr.mxu0 0.0
  %3865 = vmatpush1.msra.mxu0 0.0
  %3866 = vmatprep.subr.mxu0 0.0
  %3867 = vmatpush1.msra.mxu0 0.0
  %3868 = vmatprep.subr.mxu0 0.0
  %3869 = vmatpush1.msra.mxu0 0.0
  %3870 = vmatprep.subr.mxu0 0.0
  %3871 = vmatpush1.msra.mxu0 0.0
  %3872 = vmatprep.subr.mxu0 0.0
  %3873 = vmatpush1.msra.mxu0 0.0
  %3874 = vmatprep.subr.mxu0 0.0
  %3875 = vmatpush1.msra.mxu0 0.0
  %3876 = vmatprep.mubr.f32.mxu0 0.0
  %3877 = vmatmul.mubr.f32.gmra.mrb[0].mxu0 %v3789
  %v3878 = vpop.f32.mrb[0].mxu0
  %v3879 = vadd.f32 %v3400, %v3878
  %v3880 = vpop.f32.mrb[0].mxu0
  %3881 = vmatprep.mubr.f32.mxu0 0.0
  %3882 = vmatmul.mubr.f32.gmra.mrb[0].mxu0 %v3792
  %v3883 = vpop.f32.mrb[0].mxu0
  %v3884 = vadd.f32 %v3400, %v3883
  %v3885 = vpop.f32.mrb[0].mxu0
  %3886 = vmatprep.mubr.f32.mxu0 0.0
  %3887 = vmatmul.mubr.f32.gmra.mrb[0].mxu0 %v3795
  %v3888 = vpop.f32.mrb[0].mxu0
  %v3889 = vadd.f32 %v3400, %v3888
  %v3890 = vpop.f32.mrb[0].mxu0
  %3891 = vmatprep.mubr.f32.mxu0 0.0
  %3892 = vmatmul.mubr.f32.gmra.mrb[0].mxu0 %v3798
  %v3893 = vpop.f32.mrb[0].mxu0
  %v3894 = vadd.f32 %v3400, %v3893
  %v3895 = vpop.f32.mrb[0].mxu0
  %3896 = vmatprep.mubr.f32.mxu0 0.0
  %3897 = vmatmul.mubr.f32.gmra.mrb[0].mxu0 %v3801
  %v3898 = vpop.f32.mrb[0].mxu0
  %v3899 = vadd.f32 %v3400, %v3898
  %v3900 = vpop.f32.mrb[0].mxu0
  %3901 = vmatprep.mubr.f32.mxu0 0.0
  %3902 = vmatmul.mubr.f32.gmra.mrb[0].mxu0 %v3804
  %v3903 = vpop.f32.mrb[0].mxu0
  %v3904 = vadd.f32 %v3400, %v3903
  %v3905 = vpop.f32.mrb[0].mxu0
  %3906 = vmatprep.mubr.f32.mxu0 0.0
  %3907 = vmatmul.mubr.f32.gmra.mrb[0].mxu0 %v3807
  %v3908 = vpop.f32.mrb[0].mxu0
  %v3909 = vadd.f32 %v3400, %v3908
  %v3910 = vpop.f32.mrb[0].mxu0
  %3911 = vmatprep.mubr.f32.mxu0 0.0
  %3912 = vmatmul.mubr.f32.gmra.mrb[0].mxu0 %v3810
  %v3913 = vpop.f32.mrb[0].mxu0
  %v3914 = vadd.f32 %v3400, %v3913
  %v3915 = vpop.f32.mrb[0].mxu0
  %3916 = vdwg.mxu0
  %v3917 = vmax.f32 %v3879, 0.0
  %v3918 = vmax.f32 %v3884, 0.0
  %v3919 = vmax.f32 %v3889, 0.0
  %v3920 = vmax.f32 %v3894, 0.0
  %v3921 = vmax.f32 %v3899, 0.0
  %v3922 = vmax.f32 %v3904, 0.0
  %v3923 = vmax.f32 %v3909, 0.0
  %v3924 = vmax.f32 %v3914, 0.0
  %v3925 = vsel %vm77, %v3530, 0.0
  %v3926 = vrot.slane %v3925, 4
  %v3927 = vadd.f32 %v3925, %v3926
  %v3928 = vrot.slane %v3927, 2
  %v3929 = vadd.f32 %v3927, %v3928
  %v3930 = vrot.slane %v3929, 1
  %v3931 = vadd.f32 %v3929, %v3930
  %v3932 = vsel %vm77, %v3531, 0.0
  %v3933 = vrot.slane %v3932, 4
  %v3934 = vadd.f32 %v3932, %v3933
  %v3935 = vrot.slane %v3934, 2
  %v3936 = vadd.f32 %v3934, %v3935
  %v3937 = vrot.slane %v3936, 1
  %v3938 = vadd.f32 %v3936, %v3937
  %v3939 = vsel %vm77, %v3532, 0.0
  %v3940 = vrot.slane %v3939, 4
  %v3941 = vadd.f32 %v3939, %v3940
  %v3942 = vrot.slane %v3941, 2
  %v3943 = vadd.f32 %v3941, %v3942
  %v3944 = vrot.slane %v3943, 1
  %v3945 = vadd.f32 %v3943, %v3944
  %v3946 = vsel %vm77, %v3533, 0.0
  %v3947 = vrot.slane %v3946, 4
  %v3948 = vadd.f32 %v3946, %v3947
  %v3949 = vrot.slane %v3948, 2
  %v3950 = vadd.f32 %v3948, %v3949
  %v3951 = vrot.slane %v3950, 1
  %v3952 = vadd.f32 %v3950, %v3951
  %v3953 = vsel %vm77, %v3534, 0.0
  %v3954 = vrot.slane %v3953, 4
  %v3955 = vadd.f32 %v3953, %v3954
  %v3956 = vrot.slane %v3955, 2
  %v3957 = vadd.f32 %v3955, %v3956
  %v3958 = vrot.slane %v3957, 1
  %v3959 = vadd.f32 %v3957, %v3958
  %v3960 = vsel %vm77, %v3535, 0.0
  %v3961 = vrot.slane %v3960, 4
  %v3962 = vadd.f32 %v3960, %v3961
  %v3963 = vrot.slane %v3962, 2
  %v3964 = vadd.f32 %v3962, %v3963
  %v3965 = vrot.slane %v3964, 1
  %v3966 = vadd.f32 %v3964, %v3965
  %v3967 = vsel %vm77, %v3536, 0.0
  %v3968 = vrot.slane %v3967, 4
  %v3969 = vadd.f32 %v3967, %v3968
  %v3970 = vrot.slane %v3969, 2
  %v3971 = vadd.f32 %v3969, %v3970
  %v3972 = vrot.slane %v3971, 1
  %v3973 = vadd.f32 %v3971, %v3972
  %v3974 = vsel %vm77, %v3537, 0.0
  %v3975 = vrot.slane %v3974, 4
  %v3976 = vadd.f32 %v3974, %v3975
  %v3977 = vrot.slane %v3976, 2
  %v3978 = vadd.f32 %v3976, %v3977
  %v3979 = vrot.slane %v3978, 1
  %v3980 = vadd.f32 %v3978, %v3979
  %v3981 = vsel %vm77, %v3917, 0.0
  %v3982 = vrot.slane %v3981, 4
  %v3983 = vadd.f32 %v3981, %v3982
  %v3984 = vrot.slane %v3983, 2
  %v3985 = vadd.f32 %v3983, %v3984
  %v3986 = vrot.slane %v3985, 1
  %v3987 = vadd.f32 %v3985, %v3986
  %v3988 = vsel %vm77, %v3918, 0.0
  %v3989 = vrot.slane %v3988, 4
  %v3990 = vadd.f32 %v3988, %v3989
  %v3991 = vrot.slane %v3990, 2
  %v3992 = vadd.f32 %v3990, %v3991
  %v3993 = vrot.slane %v3992, 1
  %v3994 = vadd.f32 %v3992, %v3993
  %v3995 = vsel %vm77, %v3919, 0.0
  %v3996 = vrot.slane %v3995, 4
  %v3997 = vadd.f32 %v3995, %v3996
  %v3998 = vrot.slane %v3997, 2
  %v3999 = vadd.f32 %v3997, %v3998
  %v4000 = vrot.slane %v3999, 1
  %v4001 = vadd.f32 %v3999, %v4000
  %v4002 = vsel %vm77, %v3920, 0.0
  %v4003 = vrot.slane %v4002, 4
  %v4004 = vadd.f32 %v4002, %v4003
  %v4005 = vrot.slane %v4004, 2
  %v4006 = vadd.f32 %v4004, %v4005
  %v4007 = vrot.slane %v4006, 1
  %v4008 = vadd.f32 %v4006, %v4007
  %v4009 = vsel %vm77, %v3921, 0.0
  %v4010 = vrot.slane %v4009, 4
  %v4011 = vadd.f32 %v4009, %v4010
  %v4012 = vrot.slane %v4011, 2
  %v4013 = vadd.f32 %v4011, %v4012
  %v4014 = vrot.slane %v4013, 1
  %v4015 = vadd.f32 %v4013, %v4014
  %v4016 = vsel %vm77, %v3922, 0.0
  %v4017 = vrot.slane %v4016, 4
  %v4018 = vadd.f32 %v4016, %v4017
  %v4019 = vrot.slane %v4018, 2
  %v4020 = vadd.f32 %v4018, %v4019
  %v4021 = vrot.slane %v4020, 1
  %v4022 = vadd.f32 %v4020, %v4021
  %v4023 = vsel %vm77, %v3923, 0.0
  %v4024 = vrot.slane %v4023, 4
  %v4025 = vadd.f32 %v4023, %v4024
  %v4026 = vrot.slane %v4025, 2
  %v4027 = vadd.f32 %v4025, %v4026
  %v4028 = vrot.slane %v4027, 1
  %v4029 = vadd.f32 %v4027, %v4028
  %v4030 = vsel %vm77, %v3924, 0.0
  %v4031 = vrot.slane %v4030, 4
  %v4032 = vadd.f32 %v4030, %v4031
  %v4033 = vrot.slane %v4032, 2
  %v4034 = vadd.f32 %v4032, %v4033
  %v4035 = vrot.slane %v4034, 1
  %v4036 = vadd.f32 %v4034, %v4035
  %vm4045 = vcmask 1041409
  %v4046 = vsel %vm4045, %v3994, %v3987
  %vm4047 = vcmask 1042434
  %v4048 = vsel %vm4047, %v4001, %v4046
  %vm4049 = vcmask 1043459
  %v4050 = vsel %vm4049, %v4008, %v4048
  %vm4051 = vcmask 1044484
  %v4052 = vsel %vm4051, %v4015, %v4050
  %vm4053 = vcmask 1045509
  %v4054 = vsel %vm4053, %v4022, %v4052
  %vm4055 = vcmask 1046534
  %v4056 = vsel %vm4055, %v4029, %v4054
  %vm4057 = vcmask 1047559
  %v4058 = vsel %vm4057, %v4036, %v4056
  %v4059 = vsel %vm77, %v4058, 0
  %4061 = vmatprep.subr.mxu0 0.0
  %4062 = vmatpush1.msra.mxu0 %v47
  %4063 = vmatprep.subr.mxu0 0.0
  %4064 = vmatpush1.msra.mxu0 %v48
  %4065 = vmatprep.subr.mxu0 0.0
  %4066 = vmatpush1.msra.mxu0 %v49
  %4067 = vmatprep.subr.mxu0 0.0
  %4068 = vmatpush1.msra.mxu0 %v50
  %4069 = vmatprep.subr.mxu0 0.0
  %4070 = vmatpush1.msra.mxu0 0.0
  %4071 = vmatprep.subr.mxu0 0.0
  %4072 = vmatpush1.msra.mxu0 0.0
  %4073 = vmatprep.subr.mxu0 0.0
  %4074 = vmatpush1.msra.mxu0 0.0
  %4075 = vmatprep.subr.mxu0 0.0
  %4076 = vmatpush1.msra.mxu0 0.0
  %4077 = vmatprep.subr.mxu0 0.0
  %4078 = vmatpush1.msra.mxu0 0.0
  %4079 = vmatprep.subr.mxu0 0.0
  %4080 = vmatpush1.msra.mxu0 0.0
  %4081 = vmatprep.subr.mxu0 0.0
  %4082 = vmatpush1.msra.mxu0 0.0
  %4083 = vmatprep.subr.mxu0 0.0
  %4084 = vmatpush1.msra.mxu0 0.0
  %4085 = vmatprep.subr.mxu0 0.0
  %4086 = vmatpush1.msra.mxu0 0.0
  %4087 = vmatprep.subr.mxu0 0.0
  %4088 = vmatpush1.msra.mxu0 0.0
  %4089 = vmatprep.subr.mxu0 0.0
  %4090 = vmatpush1.msra.mxu0 0.0
  %4091 = vmatprep.subr.mxu0 0.0
  %4092 = vmatpush1.msra.mxu0 0.0
  %4093 = vmatprep.subr.mxu0 0.0
  %4094 = vmatpush1.msra.mxu0 0.0
  %4095 = vmatprep.subr.mxu0 0.0
  %4096 = vmatpush1.msra.mxu0 0.0
  %4097 = vmatprep.subr.mxu0 0.0
  %4098 = vmatpush1.msra.mxu0 0.0
  %4099 = vmatprep.subr.mxu0 0.0
  %4100 = vmatpush1.msra.mxu0 0.0
  %4101 = vmatprep.subr.mxu0 0.0
  %4102 = vmatpush1.msra.mxu0 0.0
  %4103 = vmatprep.subr.mxu0 0.0
  %4104 = vmatpush1.msra.mxu0 0.0
  %4105 = vmatprep.subr.mxu0 0.0
  %4106 = vmatpush1.msra.mxu0 0.0
  %4107 = vmatprep.subr.mxu0 0.0
  %4108 = vmatpush1.msra.mxu0 0.0
  %4109 = vmatprep.subr.mxu0 0.0
  %4110 = vmatpush1.msra.mxu0 0.0
  %4111 = vmatprep.subr.mxu0 0.0
  %4112 = vmatpush1.msra.mxu0 0.0
  %4113 = vmatprep.subr.mxu0 0.0
  %4114 = vmatpush1.msra.mxu0 0.0
  %4115 = vmatprep.subr.mxu0 0.0
  %4116 = vmatpush1.msra.mxu0 0.0
  %4117 = vmatprep.subr.mxu0 0.0
  %4118 = vmatpush1.msra.mxu0 0.0
  %4119 = vmatprep.subr.mxu0 0.0
  %4120 = vmatpush1.msra.mxu0 0.0
  %4121 = vmatprep.subr.mxu0 0.0
  %4122 = vmatpush1.msra.mxu0 0.0
  %4123 = vmatprep.subr.mxu0 0.0
  %4124 = vmatpush1.msra.mxu0 0.0
  %4125 = vmatprep.mubr.f32.mxu0 0.0
  %4126 = vmatmul.mubr.f32.gmra.mrb[0].mxu0 %v4059
  %v4127 = vpop.f32.mrb[0].mxu0
  %v4128 = vadd.f32 0.0, %v4127
  %v4129 = vpop.f32.mrb[0].mxu0
  %4130 = vdwg.mxu0
  %v4139 = vsel %vm4045, %v3938, %v3931
  %v4140 = vsel %vm4047, %v3945, %v4139
  %v4141 = vsel %vm4049, %v3952, %v4140
  %v4142 = vsel %vm4051, %v3959, %v4141
  %v4143 = vsel %vm4053, %v3966, %v4142
  %v4144 = vsel %vm4055, %v3973, %v4143
  %v4145 = vsel %vm4057, %v3980, %v4144
  %v4146 = vsel %vm77, %v4145, 0
  %4148 = vmatprep.subr.mxu0 0.0
  %4149 = vmatpush1.msra.mxu0 %v42
  %4150 = vmatprep.subr.mxu0 0.0
  %4151 = vmatpush1.msra.mxu0 %v43
  %4152 = vmatprep.subr.mxu0 0.0
  %4153 = vmatpush1.msra.mxu0 %v44
  %4154 = vmatprep.subr.mxu0 0.0
  %4155 = vmatpush1.msra.mxu0 %v45
  %4156 = vmatprep.subr.mxu0 0.0
  %4157 = vmatpush1.msra.mxu0 0.0
  %4158 = vmatprep.subr.mxu0 0.0
  %4159 = vmatpush1.msra.mxu0 0.0
  %4160 = vmatprep.subr.mxu0 0.0
  %4161 = vmatpush1.msra.mxu0 0.0
  %4162 = vmatprep.subr.mxu0 0.0
  %4163 = vmatpush1.msra.mxu0 0.0
  %4164 = vmatprep.subr.mxu0 0.0
  %4165 = vmatpush1.msra.mxu0 0.0
  %4166 = vmatprep.subr.mxu0 0.0
  %4167 = vmatpush1.msra.mxu0 0.0
  %4168 = vmatprep.subr.mxu0 0.0
  %4169 = vmatpush1.msra.mxu0 0.0
  %4170 = vmatprep.subr.mxu0 0.0
  %4171 = vmatpush1.msra.mxu0 0.0
  %4172 = vmatprep.subr.mxu0 0.0
  %4173 = vmatpush1.msra.mxu0 0.0
  %4174 = vmatprep.subr.mxu0 0.0
  %4175 = vmatpush1.msra.mxu0 0.0
  %4176 = vmatprep.subr.mxu0 0.0
  %4177 = vmatpush1.msra.mxu0 0.0
  %4178 = vmatprep.subr.mxu0 0.0
  %4179 = vmatpush1.msra.mxu0 0.0
  %4180 = vmatprep.subr.mxu0 0.0
  %4181 = vmatpush1.msra.mxu0 0.0
  %4182 = vmatprep.subr.mxu0 0.0
  %4183 = vmatpush1.msra.mxu0 0.0
  %4184 = vmatprep.subr.mxu0 0.0
  %4185 = vmatpush1.msra.mxu0 0.0
  %4186 = vmatprep.subr.mxu0 0.0
  %4187 = vmatpush1.msra.mxu0 0.0
  %4188 = vmatprep.subr.mxu0 0.0
  %4189 = vmatpush1.msra.mxu0 0.0
  %4190 = vmatprep.subr.mxu0 0.0
  %4191 = vmatpush1.msra.mxu0 0.0
  %4192 = vmatprep.subr.mxu0 0.0
  %4193 = vmatpush1.msra.mxu0 0.0
  %4194 = vmatprep.subr.mxu0 0.0
  %4195 = vmatpush1.msra.mxu0 0.0
  %4196 = vmatprep.subr.mxu0 0.0
  %4197 = vmatpush1.msra.mxu0 0.0
  %4198 = vmatprep.subr.mxu0 0.0
  %4199 = vmatpush1.msra.mxu0 0.0
  %4200 = vmatprep.subr.mxu0 0.0
  %4201 = vmatpush1.msra.mxu0 0.0
  %4202 = vmatprep.subr.mxu0 0.0
  %4203 = vmatpush1.msra.mxu0 0.0
  %4204 = vmatprep.subr.mxu0 0.0
  %4205 = vmatpush1.msra.mxu0 0.0
  %4206 = vmatprep.subr.mxu0 0.0
  %4207 = vmatpush1.msra.mxu0 0.0
  %4208 = vmatprep.subr.mxu0 0.0
  %4209 = vmatpush1.msra.mxu0 0.0
  %4210 = vmatprep.subr.mxu0 0.0
  %4211 = vmatpush1.msra.mxu0 0.0
  %4212 = vmatprep.mubr.f32.mxu0 0.0
  %4213 = vmatmul.mubr.f32.gmra.mrb[0].mxu0 %v4146
  %v4214 = vpop.f32.mrb[0].mxu0
  %v4215 = vadd.f32 %v4128, %v4214
  %v4216 = vpop.f32.mrb[0].mxu0
  %4217 = vdwg.mxu0
  %v4218 = vlaneseq
  %v4219 = vshrl.u32 %v4218, 7
  %v4220 = vsub.s32 4, %v4219
  %v4221 = vrot.slane %v56, %v4220
  %v4222 = vadd.f32 %v4215, %v4221
  %v4223 = vmax.f32 %v4222, 0.0
  %v4224 = vlaneseq
  %v4225 = vshrl.u32 %v4224, 7
  %v4226 = vsub.s32 5, %v4225
  %v4227 = vrot.slane %v56, %v4226
  %v4229 = vsel %vm77, %v4223, 0
  %4231 = vmatprep.subr.mxu0 0.0
  %4232 = vmatpush1.msra.mxu0 %v52
  %4233 = vmatprep.subr.mxu0 0.0
  %4234 = vmatpush1.msra.mxu0 %v53
  %4235 = vmatprep.subr.mxu0 0.0
  %4236 = vmatpush1.msra.mxu0 %v54
  %4237 = vmatprep.subr.mxu0 0.0
  %4238 = vmatpush1.msra.mxu0 %v55
  %4239 = vmatprep.subr.mxu0 0.0
  %4240 = vmatpush1.msra.mxu0 0.0
  %4241 = vmatprep.subr.mxu0 0.0
  %4242 = vmatpush1.msra.mxu0 0.0
  %4243 = vmatprep.subr.mxu0 0.0
  %4244 = vmatpush1.msra.mxu0 0.0
  %4245 = vmatprep.subr.mxu0 0.0
  %4246 = vmatpush1.msra.mxu0 0.0
  %4247 = vmatprep.subr.mxu0 0.0
  %4248 = vmatpush1.msra.mxu0 0.0
  %4249 = vmatprep.subr.mxu0 0.0
  %4250 = vmatpush1.msra.mxu0 0.0
  %4251 = vmatprep.subr.mxu0 0.0
  %4252 = vmatpush1.msra.mxu0 0.0
  %4253 = vmatprep.subr.mxu0 0.0
  %4254 = vmatpush1.msra.mxu0 0.0
  %4255 = vmatprep.subr.mxu0 0.0
  %4256 = vmatpush1.msra.mxu0 0.0
  %4257 = vmatprep.subr.mxu0 0.0
  %4258 = vmatpush1.msra.mxu0 0.0
  %4259 = vmatprep.subr.mxu0 0.0
  %4260 = vmatpush1.msra.mxu0 0.0
  %4261 = vmatprep.subr.mxu0 0.0
  %4262 = vmatpush1.msra.mxu0 0.0
  %4263 = vmatprep.subr.mxu0 0.0
  %4264 = vmatpush1.msra.mxu0 0.0
  %4265 = vmatprep.subr.mxu0 0.0
  %4266 = vmatpush1.msra.mxu0 0.0
  %4267 = vmatprep.subr.mxu0 0.0
  %4268 = vmatpush1.msra.mxu0 0.0
  %4269 = vmatprep.subr.mxu0 0.0
  %4270 = vmatpush1.msra.mxu0 0.0
  %4271 = vmatprep.subr.mxu0 0.0
  %4272 = vmatpush1.msra.mxu0 0.0
  %4273 = vmatprep.subr.mxu0 0.0
  %4274 = vmatpush1.msra.mxu0 0.0
  %4275 = vmatprep.subr.mxu0 0.0
  %4276 = vmatpush1.msra.mxu0 0.0
  %4277 = vmatprep.subr.mxu0 0.0
  %4278 = vmatpush1.msra.mxu0 0.0
  %4279 = vmatprep.subr.mxu0 0.0
  %4280 = vmatpush1.msra.mxu0 0.0
  %4281 = vmatprep.subr.mxu0 0.0
  %4282 = vmatpush1.msra.mxu0 0.0
  %4283 = vmatprep.subr.mxu0 0.0
  %4284 = vmatpush1.msra.mxu0 0.0
  %4285 = vmatprep.subr.mxu0 0.0
  %4286 = vmatpush1.msra.mxu0 0.0
  %4287 = vmatprep.subr.mxu0 0.0
  %4288 = vmatpush1.msra.mxu0 0.0
  %4289 = vmatprep.subr.mxu0 0.0
  %4290 = vmatpush1.msra.mxu0 0.0
  %4291 = vmatprep.subr.mxu0 0.0
  %4292 = vmatpush1.msra.mxu0 0.0
  %4293 = vmatprep.subr.mxu0 0.0
  %4294 = vmatpush1.msra.mxu0 0.0
  %4295 = vmatprep.mubr.f32.mxu0 0.0
  %4296 = vmatmul.mubr.f32.gmra.mrb[0].mxu0 %v4229
  %v4297 = vpop.f32.mrb[0].mxu0
  %v4298 = vadd.f32 %v4227, %v4297
  %v4299 = vpop.f32.mrb[0].mxu0
  %4300 = vdwg.mxu0
  %v4301 = vmax.f32 %v4298, 0.0
  %4302 = vst.msk [vmem:[%s4] sm:$0xff] %vm77, %v4301
  // Predicated region
  $region18: #{self_attention_forward.1} parent=0 // pred_check
    _
  $region19: #{self_attention_forward.1} parent=0 // pred_check_branch
    %4304 = sbr.rel (0) target = $region21
  $region20: #{self_attention_forward.1} parent=0 // pred_region
    _
  $region21: #{self_attention_forward.1} parent=0 // pred_fallthru
    _
  // Predicated region
  $region22: #{self_attention_forward.1} parent=0 // pred_check
    _
  $region23: #{self_attention_forward.1} parent=0 // pred_check_branch
    %4306 = sbr.rel (0) target = $region25
  $region24: #{self_attention_forward.1} parent=0 // pred_region
    _
  $region25: #{self_attention_forward.1} parent=0 // pred_fallthru
    _

</llo_original>
